<compile_context>
chip_gen: v7x
topology: tpu7x:2x2x1
jax: 0.10.0
libtpu: 0.0.40
codegen_flags: <defaults>
</compile_context>

<pallas_src>
import math
import jax
import jax.numpy as jnp
from jax.experimental import pallas as pl
from jax.experimental.pallas import tpu as pltpu

H = 128            # hidden size (stroke_selector_fc input dim)
D_POINT = 5        # '5point' stroke encoding
D_PAD = 8          # lane-friendly padded feature dim (extra cols are zero => inert)
N_CLASSES = 2      # stroke_selector_fc output classes
LANES = 128        # lane-dense head output width (sliced to N_CLASSES in the wrapper)

# MXU operand dtype (f32 accumulation everywhere). Set to jnp.float32 for bit-parity.
_MXU_DTYPE = jnp.bfloat16
_VMEM_LIMIT = 48 * 1024 * 1024


def _mxu_dot(a, b):
    return jnp.dot(a.astype(_MXU_DTYPE), b.astype(_MXU_DTYPE),
                   preferred_element_type=jnp.float32)


# ------------------------------------------------------------------ shared scan ---
def _lstm_cell(gates, c):
    i = jax.nn.sigmoid(gates[:, 0:H])
    f = jax.nn.sigmoid(gates[:, H:2 * H])
    g = jnp.tanh(gates[:, 2 * H:3 * H])
    o = jax.nn.sigmoid(gates[:, 3 * H:4 * H])
    c_new = f * c + i * g
    h_new = o * jnp.tanh(c_new)
    return h_new, c_new


def _bilstm_scan(xp_f, xp_b, whh_f, whh_b, lens, want_all):
    """Fully-unrolled fwd + reversed-bwd masked scan (packed-sequence semantics).

    xp_f/xp_b: [T, N, 4H] pre-projected gate inputs (x @ W_ih + b), f32.
    lens:      [N, 1] int32 valid lengths.
    Returns (h_last_f, h_last_b, all_f, all_b) with all_* lists of [N, H] per step
    (zeros at padded steps), or None entries when want_all is False.
    """
    T, N, _ = xp_f.shape
    whh_f = whh_f.astype(_MXU_DTYPE)            # cast recurrent weights once
    whh_b = whh_b.astype(_MXU_DTYPE)
    h_f = c_f = h_b = c_b = jnp.zeros((N, H), jnp.float32)
    all_f = [None] * T
    all_b = [None] * T
    for step in range(T):                       # short static trip count -> full unroll
        t_f, t_b = step, T - 1 - step
        # issue both directions' recurrent matmuls back-to-back so the second fills
        # the MXU pipeline while the first drains (M = row-block is small).
        rec_f = jnp.dot(h_f.astype(_MXU_DTYPE), whh_f, preferred_element_type=jnp.float32)
        rec_b = jnp.dot(h_b.astype(_MXU_DTYPE), whh_b, preferred_element_type=jnp.float32)
        hn_f, cn_f = _lstm_cell(xp_f[t_f] + rec_f, c_f)
        hn_b, cn_b = _lstm_cell(xp_b[t_b] + rec_b, c_b)
        v_f = t_f < lens                        # [N,1] bool -> pack_padded masking
        v_b = t_b < lens                        # reversed direction: first update at len-1
        h_f = jnp.where(v_f, hn_f, h_f)
        c_f = jnp.where(v_f, cn_f, c_f)
        h_b = jnp.where(v_b, hn_b, h_b)
        c_b = jnp.where(v_b, cn_b, c_b)
        if want_all:
            all_f[t_f] = jnp.where(v_f, hn_f, 0.0)   # zeros at padded steps
            all_b[t_b] = jnp.where(v_b, hn_b, 0.0)
    return h_f, h_b, all_f, all_b


# ---------------------------------------------------------------------- kernels ---
def _stroke_bilstm_kernel(x_ref, len_ref,
                          wihf_ref, whhf_ref, bf_ref,
                          wihb_ref, whhb_ref, bb_ref,
                          e1w_ref, e1b_ref, o_ref):
    # x_ref: [T, BN, D_PAD] time-major block of point sequences.
    T, N, D = x_ref.shape
    xf = x_ref[...].reshape(T * N, D)
    # single-shot pre-projection for both directions (no HBM roundtrip of gates)
    xp_f = (_mxu_dot(xf, wihf_ref[...]) + bf_ref[...]).reshape(T, N, 4 * H)
    xp_b = (_mxu_dot(xf, wihb_ref[...]) + bb_ref[...]).reshape(T, N, 4 * H)
    h_f, h_b, _, _ = _bilstm_scan(xp_f, xp_b, whhf_ref[...], whhb_ref[...],
                                  len_ref[...], want_all=False)
    h_cat = jnp.concatenate([h_f, h_b], axis=-1)               # [BN, 2H]
    # fused emb1: Linear(2H -> H)
    o_ref[...] = _mxu_dot(h_cat, e1w_ref[...]) + e1b_ref[...]


def _global_bilstm_head_kernel(xs_ref, ns_ref,
                               wihf_ref, whhf_ref, bf_ref,
                               wihb_ref, whhb_ref, bb_ref,
                               e2w_ref, e2b_ref, lng_ref, lnb_ref,
                               selw_ref, selb_ref, o_ref):
    # xs_ref: [S, BB, H] time-major block of per-sketch stroke embeddings.
    S, B, Hin = xs_ref.shape
    xf = xs_ref[...].reshape(S * B, Hin)
    xp_f = (_mxu_dot(xf, wihf_ref[...]) + bf_ref[...]).reshape(S, B, 4 * H)
    xp_b = (_mxu_dot(xf, wihb_ref[...]) + bb_ref[...]).reshape(S, B, 4 * H)
    _, _, all_f, all_b = _bilstm_scan(xp_f, xp_b, whhf_ref[...], whhb_ref[...],
                                      ns_ref[...], want_all=True)
    # fused epilogue: emb2 Linear + LayerNorm + selector fc + masked softmax
    h2 = jnp.concatenate(
        [jnp.concatenate([all_f[t], all_b[t]], axis=-1) for t in range(S)], axis=0)  # [S*B, 2H]
    y = _mxu_dot(h2, e2w_ref[...]) + e2b_ref[...]                                    # [S*B, H]
    mu = jnp.mean(y, axis=-1, keepdims=True)
    var = jnp.mean((y - mu) ** 2, axis=-1, keepdims=True)
    y = (y - mu) * jax.lax.rsqrt(var + 1e-5) * lng_ref[...] + lnb_ref[...]
    logits = _mxu_dot(y, selw_ref[...]) + selb_ref[...]          # [S*B, 128] lane-padded
    lane = jax.lax.broadcasted_iota(jnp.int32, logits.shape, 1)
    logits = jnp.where(lane < N_CLASSES, logits, -1e30)          # mask padded classes
    m = jnp.max(logits, axis=-1, keepdims=True)
    e = jnp.exp(logits - m)
    probs = e / jnp.sum(e, axis=-1, keepdims=True)
    o_ref[...] = probs.reshape(S, B, LANES)                      # lane-dense store


# ---------------------------------------------------------------- pallas wrappers ---
def _round_up(n, m):
    return ((n + m - 1) // m) * m


def _row_block(n, t):
    # Size the row block so the two f32 pre-projected gate tensors (2 * t * 4H * 4B
    # per row) stay within ~16 MiB -> safe on v7x (64 MiB physical VMEM) with
    # double-buffered inputs; cap at 128 rows.
    per_row = 2 * t * 4 * H * 4
    cap = max(8, min(128, (16 * 1024 * 1024 // max(per_row, 1)) // 8 * 8))
    return min(cap, _round_up(max(n, 1), 8))


def _pad_rows(a, n_to):
    extra = n_to - a.shape[0]
    if extra == 0:
        return a
    return jnp.pad(a, ((0, extra),) + ((0, 0),) * (a.ndim - 1))


def _rep(a):  # whole-array block, identical for every grid step (no re-DMA)
    return pl.BlockSpec(a.shape, lambda i: (0, 0))


_CPARAMS = pltpu.CompilerParams(dimension_semantics=("parallel",),
                                vmem_limit_bytes=_VMEM_LIMIT)


def stroke_bilstm(x_tm, lens2, p, e1w, e1b, block_n):
    T, Np, D = x_tm.shape
    return pl.pallas_call(
        _stroke_bilstm_kernel,
        out_shape=jax.ShapeDtypeStruct((Np, H), jnp.float32),
        grid=(Np // block_n,),
        in_specs=[
            pl.BlockSpec((T, block_n, D), lambda i: (0, i, 0)),
            pl.BlockSpec((block_n, 1), lambda i: (i, 0)),
            _rep(p['w_ih_f']), _rep(p['w_hh_f']), _rep(p['b_f']),
            _rep(p['w_ih_b']), _rep(p['w_hh_b']), _rep(p['b_b']),
            _rep(e1w), _rep(e1b),
        ],
        out_specs=pl.BlockSpec((block_n, H), lambda i: (i, 0)),
        compiler_params=_CPARAMS,
    )(x_tm, lens2, p['w_ih_f'], p['w_hh_f'], p['b_f'],
      p['w_ih_b'], p['w_hh_b'], p['b_b'], e1w, e1b)


def global_bilstm_head(xs_tm, ns2, p, e2w, e2b, ln_g, ln_b, selw, selb, block_b):
    S, Bp, Hin = xs_tm.shape
    return pl.pallas_call(
        _global_bilstm_head_kernel,
        out_shape=jax.ShapeDtypeStruct((S, Bp, LANES), jnp.float32),
        grid=(Bp // block_b,),
        in_specs=[
            pl.BlockSpec((S, block_b, Hin), lambda i: (0, i, 0)),
            pl.BlockSpec((block_b, 1), lambda i: (i, 0)),
            _rep(p['w_ih_f']), _rep(p['w_hh_f']), _rep(p['b_f']),
            _rep(p['w_ih_b']), _rep(p['w_hh_b']), _rep(p['b_b']),
            _rep(e2w), _rep(e2b), _rep(ln_g), _rep(ln_b),
            _rep(selw), _rep(selb),
        ],
        out_specs=pl.BlockSpec((S, block_b, LANES), lambda i: (0, i, 0)),
        compiler_params=_CPARAMS,
    )(xs_tm, ns2, p['w_ih_f'], p['w_hh_f'], p['b_f'],
      p['w_ih_b'], p['w_hh_b'], p['b_b'], e2w, e2b, ln_g, ln_b, selw, selb)


# ------------------------------------------------------------------------- glue ---
def sketch_actor_forward(params, stroke_points, every_stroke_len, num_stroke_per_sketch):
    N, T, d = stroke_points.shape
    x = jnp.pad(stroke_points.astype(jnp.float32), ((0, 0), (0, 0), (0, D_PAD - d)))
    lens = jnp.asarray(every_stroke_len, jnp.int32).reshape(N, 1)

    # ---- Stroke_Embedding_Network: stroke-level bi-LSTM + emb1 (one fused kernel) ----
    bn = _row_block(N, T)
    n_pad = _round_up(N, bn)
    x_tm = _pad_rows(x, n_pad).transpose(1, 0, 2)           # [T, n_pad, D_PAD] (tiny raw-input transpose)
    x_stroke = stroke_bilstm(x_tm, _pad_rows(lens, n_pad), params['lstm_stroke'],
                             params['emb1_w'], params['emb1_b'], bn)[:N]   # [N, H]

    # pad_sequence of per-sketch stroke embeddings (host glue, tiny)
    B = len(num_stroke_per_sketch)
    S = max(num_stroke_per_sketch)
    chunks, start = [], 0
    for ns in num_stroke_per_sketch:
        c = x_stroke[start:start + ns]
        if ns < S:
            c = jnp.concatenate([c, jnp.zeros((S - ns, H), jnp.float32)], 0)
        chunks.append(c)
        start += ns
    xs = jnp.stack(chunks)                                   # [B, S, H]

    # ---- global bi-LSTM + emb2 + LayerNorm + selector fc + softmax (one fused kernel) ----
    bb = _row_block(B, S)
    b_pad = _round_up(B, bb)
    xs_tm = _pad_rows(xs, b_pad).transpose(1, 0, 2)          # [S, b_pad, H]
    ns2 = _pad_rows(jnp.asarray(num_stroke_per_sketch, jnp.int32).reshape(B, 1), b_pad)
    selw_p = jnp.pad(params['sel_w'], ((0, 0), (0, LANES - N_CLASSES)))
    selb_p = jnp.pad(params['sel_b'], ((0, 0), (0, LANES - N_CLASSES)))

    probs_pad = global_bilstm_head(xs_tm, ns2, params['lstm_global'],
                                   params['emb2_w'], params['emb2_b'],
                                   params['ln_g'], params['ln_b'],
                                   selw_p, selb_p, bb)        # [S, b_pad, 128]

    probs = probs_pad[:, :B, :N_CLASSES].transpose(1, 0, 2)   # [B, S, 2]
    output = jnp.concatenate(
        [probs[b, :ns] for b, ns in enumerate(num_stroke_per_sketch)], 0)  # [N, 2]
    # TODO(synk): torch.distributions.Categorical has no Pallas equivalent; the
    #             distribution's probability matrix is returned instead.
    return output, num_stroke_per_sketch


# ------------------------------------------------------------------------ params ---
def _uniform(key, shape, bound):
    return jax.random.uniform(key, shape, jnp.float32, -bound, bound)


def init_params(key):
    ks = iter(jax.random.split(key, 32))
    bl = 1.0 / math.sqrt(H)

    def lstm(d_in):
        # w_ih rows beyond the real input dim multiply zero-padded columns -> inert
        return dict(
            w_ih_f=_uniform(next(ks), (d_in, 4 * H), bl),
            w_hh_f=_uniform(next(ks), (H, 4 * H), bl),
            b_f=_uniform(next(ks), (1, 4 * H), bl),
            w_ih_b=_uniform(next(ks), (d_in, 4 * H), bl),
            w_hh_b=_uniform(next(ks), (H, 4 * H), bl),
            b_b=_uniform(next(ks), (1, 4 * H), bl),
        )

    be = 1.0 / math.sqrt(2 * H)
    bs = 1.0 / math.sqrt(H)
    return dict(
        lstm_stroke=lstm(D_PAD),
        lstm_global=lstm(H),
        emb1_w=_uniform(next(ks), (2 * H, H), be),
        emb1_b=_uniform(next(ks), (1, H), be),
        emb2_w=_uniform(next(ks), (2 * H, H), be),
        emb2_b=_uniform(next(ks), (1, H), be),
        ln_g=jnp.ones((1, H), jnp.float32),
        ln_b=jnp.zeros((1, H), jnp.float32),
        sel_w=_uniform(next(ks), (H, N_CLASSES), bs),
        sel_b=_uniform(next(ks), (1, N_CLASSES), bs),
    )


if __name__ == "__main__":
    key = jax.random.PRNGKey(0)
    k_x, k_p = jax.random.split(key)

    num_stroke_per_sketch = [3, 2]      # 2 sketches, 5 strokes total
    N = sum(num_stroke_per_sketch)
    T = 8                               # max points per stroke
    stroke_points = jax.random.normal(k_x, (N, T, D_POINT), jnp.float32)
    every_stroke_len = jnp.array([8, 5, 6, 7, 4], jnp.int32)

    params = init_params(k_p)
    probs, num_stroke_x = sketch_actor_forward(
        params, stroke_points, every_stroke_len, num_stroke_per_sketch)
    probs = jax.block_until_ready(probs)

    assert probs.shape == (N, N_CLASSES)
    assert bool(jnp.all(jnp.abs(probs.sum(axis=1) - 1.0) < 1e-5))
    assert bool(jnp.all(jnp.isfinite(probs)))
    print("KERNEL_OK")
</pallas_src>

<mosaic_0001>
module attributes {stable_mosaic.version = 11 : i64} {
  func.func @_stroke_bilstm_kernel(%arg0: i32, %arg1: memref<8x8x8xf32, #tpu.memory_space<vmem>>, %arg2: memref<8x1xi32, #tpu.memory_space<vmem>>, %arg3: memref<8x512xf32, #tpu.memory_space<vmem>>, %arg4: memref<128x512xf32, #tpu.memory_space<vmem>>, %arg5: memref<1x512xf32, #tpu.memory_space<vmem>>, %arg6: memref<8x512xf32, #tpu.memory_space<vmem>>, %arg7: memref<128x512xf32, #tpu.memory_space<vmem>>, %arg8: memref<1x512xf32, #tpu.memory_space<vmem>>, %arg9: memref<256x128xf32, #tpu.memory_space<vmem>>, %arg10: memref<1x128xf32, #tpu.memory_space<vmem>>, %arg11: memref<8x128xf32, #tpu.memory_space<vmem>>) attributes {dimension_semantics = [#tpu.dimension_semantics<parallel>], iteration_bounds = array<i64: 1>, scalar_prefetch = 0 : i64, scratch_operands = 0 : i64, tpu.core_type = #tpu.core_type<tc>, window_params = [{transform_indices = @transform_0, window_bounds = array<i64: 8, 8, 8>}, {transform_indices = @transform_1, window_bounds = array<i64: 8, 1>}, {pipeline_mode = #tpu.pipeline_mode<synchronous>, transform_indices = @transform_2, window_bounds = array<i64: 8, 512>}, {pipeline_mode = #tpu.pipeline_mode<synchronous>, transform_indices = @transform_3, window_bounds = array<i64: 128, 512>}, {pipeline_mode = #tpu.pipeline_mode<synchronous>, transform_indices = @transform_4, window_bounds = array<i64: 1, 512>}, {pipeline_mode = #tpu.pipeline_mode<synchronous>, transform_indices = @transform_5, window_bounds = array<i64: 8, 512>}, {pipeline_mode = #tpu.pipeline_mode<synchronous>, transform_indices = @transform_6, window_bounds = array<i64: 128, 512>}, {pipeline_mode = #tpu.pipeline_mode<synchronous>, transform_indices = @transform_7, window_bounds = array<i64: 1, 512>}, {pipeline_mode = #tpu.pipeline_mode<synchronous>, transform_indices = @transform_8, window_bounds = array<i64: 256, 128>}, {pipeline_mode = #tpu.pipeline_mode<synchronous>, transform_indices = @transform_9, window_bounds = array<i64: 1, 128>}, {transform_indices = @transform_10, window_bounds = array<i64: 8, 128>}]} {
    %c0 = arith.constant 0 : index
    %c0_0 = arith.constant 0 : index
    %c0_1 = arith.constant 0 : index
    %0 = vector.load %arg1[%c0, %c0_0, %c0_1] : memref<8x8x8xf32, #tpu.memory_space<vmem>>, vector<8x8x8xf32>
    %1 = vector.shape_cast %0 : vector<8x8x8xf32> to vector<64x8xf32>
    %c0_2 = arith.constant 0 : index
    %c0_3 = arith.constant 0 : index
    %2 = vector.load %arg3[%c0_2, %c0_3] : memref<8x512xf32, #tpu.memory_space<vmem>>, vector<8x512xf32>
    %3 = arith.truncf %1 : vector<64x8xf32> to vector<64x8xbf16>
    %4 = arith.truncf %2 : vector<8x512xf32> to vector<8x512xbf16>
    %cst = arith.constant dense<0.000000e+00> : vector<64x512xf32>
    %5 = tpu.matmul %3, %4, %cst {dimension_numbers = #tpu.dot_dimension_numbers<[1], [0], [0], [1], [0, 0, 1, 1], [], []>} : vector<64x8xbf16>, vector<8x512xbf16>, vector<64x512xf32> -> vector<64x512xf32>
    %c0_4 = arith.constant 0 : index
    %c0_5 = arith.constant 0 : index
    %6 = vector.load %arg5[%c0_4, %c0_5] : memref<1x512xf32, #tpu.memory_space<vmem>>, vector<1x512xf32>
    %7 = vector.broadcast %6 : vector<1x512xf32> to vector<64x512xf32>
    %8 = arith.addf %5, %7 : vector<64x512xf32>
    %9 = vector.shape_cast %8 : vector<64x512xf32> to vector<8x8x512xf32>
    %c0_6 = arith.constant 0 : index
    %c0_7 = arith.constant 0 : index
    %10 = vector.load %arg6[%c0_6, %c0_7] : memref<8x512xf32, #tpu.memory_space<vmem>>, vector<8x512xf32>
    %11 = arith.truncf %1 : vector<64x8xf32> to vector<64x8xbf16>
    %12 = arith.truncf %10 : vector<8x512xf32> to vector<8x512xbf16>
    %cst_8 = arith.constant dense<0.000000e+00> : vector<64x512xf32>
    %13 = tpu.matmul %11, %12, %cst_8 {dimension_numbers = #tpu.dot_dimension_numbers<[1], [0], [0], [1], [0, 0, 1, 1], [], []>} : vector<64x8xbf16>, vector<8x512xbf16>, vector<64x512xf32> -> vector<64x512xf32>
    %c0_9 = arith.constant 0 : index
    %c0_10 = arith.constant 0 : index
    %14 = vector.load %arg8[%c0_9, %c0_10] : memref<1x512xf32, #tpu.memory_space<vmem>>, vector<1x512xf32>
    %15 = vector.broadcast %14 : vector<1x512xf32> to vector<64x512xf32>
    %16 = arith.addf %13, %15 : vector<64x512xf32>
    %17 = vector.shape_cast %16 : vector<64x512xf32> to vector<8x8x512xf32>
    %c0_11 = arith.constant 0 : index
    %c0_12 = arith.constant 0 : index
    %18 = vector.load %arg4[%c0_11, %c0_12] : memref<128x512xf32, #tpu.memory_space<vmem>>, vector<128x512xf32>
    %c0_13 = arith.constant 0 : index
    %c0_14 = arith.constant 0 : index
    %19 = vector.load %arg7[%c0_13, %c0_14] : memref<128x512xf32, #tpu.memory_space<vmem>>, vector<128x512xf32>
    %c0_15 = arith.constant 0 : index
    %c0_16 = arith.constant 0 : index
    %20 = vector.load %arg2[%c0_15, %c0_16] : memref<8x1xi32, #tpu.memory_space<vmem>>, vector<8x1xi32>
    %21 = arith.truncf %18 : vector<128x512xf32> to vector<128x512xbf16>
    %22 = arith.truncf %19 : vector<128x512xf32> to vector<128x512xbf16>
    %cst_17 = arith.constant 0.000000e+00 : f32
    %23 = vector.broadcast %cst_17 : f32 to vector<8x128xf32>
    %24 = arith.truncf %23 : vector<8x128xf32> to vector<8x128xbf16>
    %cst_18 = arith.constant dense<0.000000e+00> : vector<8x512xf32>
    %25 = tpu.matmul %24, %21, %cst_18 {dimension_numbers = #tpu.dot_dimension_numbers<[1], [0], [0], [1], [0, 0, 1, 1], [], []>} : vector<8x128xbf16>, vector<128x512xbf16>, vector<8x512xf32> -> vector<8x512xf32>
    %26 = arith.truncf %23 : vector<8x128xf32> to vector<8x128xbf16>
    %cst_19 = arith.constant dense<0.000000e+00> : vector<8x512xf32>
    %27 = tpu.matmul %26, %22, %cst_19 {dimension_numbers = #tpu.dot_dimension_numbers<[1], [0], [0], [1], [0, 0, 1, 1], [], []>} : vector<8x128xbf16>, vector<128x512xbf16>, vector<8x512xf32> -> vector<8x512xf32>
    %28 = vector.extract_strided_slice %9 {offsets = [0, 0, 0], sizes = [1, 8, 512], strides = [1, 1, 1]} : vector<8x8x512xf32> to vector<1x8x512xf32>
    %29 = vector.shape_cast %28 : vector<1x8x512xf32> to vector<8x512xf32>
    %30 = arith.addf %29, %25 : vector<8x512xf32>
    %31 = vector.extract_strided_slice %30 {offsets = [0, 0], sizes = [8, 128], strides = [1, 1]} : vector<8x512xf32> to vector<8x128xf32>
    %32 = arith.negf %31 : vector<8x128xf32>
    %33 = math.exp %32 : vector<8x128xf32>
    %cst_20 = arith.constant 1.000000e+00 : f32
    %34 = vector.broadcast %cst_20 : f32 to vector<8x128xf32>
    %35 = arith.addf %34, %33 : vector<8x128xf32>
    %36 = arith.divf %34, %35 : vector<8x128xf32>
    %37 = vector.extract_strided_slice %30 {offsets = [0, 128], sizes = [8, 128], strides = [1, 1]} : vector<8x512xf32> to vector<8x128xf32>
    %38 = arith.negf %37 : vector<8x128xf32>
    %39 = math.exp %38 : vector<8x128xf32>
    %cst_21 = arith.constant 1.000000e+00 : f32
    %40 = vector.broadcast %cst_21 : f32 to vector<8x128xf32>
    %41 = arith.addf %40, %39 : vector<8x128xf32>
    %42 = arith.divf %40, %41 : vector<8x128xf32>
    %43 = vector.extract_strided_slice %30 {offsets = [0, 256], sizes = [8, 128], strides = [1, 1]} : vector<8x512xf32> to vector<8x128xf32>
    %44 = math.tanh %43 : vector<8x128xf32>
    %45 = vector.extract_strided_slice %30 {offsets = [0, 384], sizes = [8, 128], strides = [1, 1]} : vector<8x512xf32> to vector<8x128xf32>
    %46 = arith.negf %45 : vector<8x128xf32>
    %47 = math.exp %46 : vector<8x128xf32>
    %cst_22 = arith.constant 1.000000e+00 : f32
    %48 = vector.broadcast %cst_22 : f32 to vector<8x128xf32>
    %49 = arith.addf %48, %47 : vector<8x128xf32>
    %50 = arith.divf %48, %49 : vector<8x128xf32>
    %51 = arith.mulf %42, %23 : vector<8x128xf32>
    %52 = arith.mulf %36, %44 : vector<8x128xf32>
    %53 = arith.addf %51, %52 : vector<8x128xf32>
    %54 = math.tanh %53 : vector<8x128xf32>
    %55 = arith.mulf %50, %54 : vector<8x128xf32>
    %56 = vector.extract_strided_slice %17 {offsets = [7, 0, 0], sizes = [1, 8, 512], strides = [1, 1, 1]} : vector<8x8x512xf32> to vector<1x8x512xf32>
    %57 = vector.shape_cast %56 : vector<1x8x512xf32> to vector<8x512xf32>
    %58 = arith.addf %57, %27 : vector<8x512xf32>
    %59 = vector.extract_strided_slice %58 {offsets = [0, 0], sizes = [8, 128], strides = [1, 1]} : vector<8x512xf32> to vector<8x128xf32>
    %60 = arith.negf %59 : vector<8x128xf32>
    %61 = math.exp %60 : vector<8x128xf32>
    %cst_23 = arith.constant 1.000000e+00 : f32
    %62 = vector.broadcast %cst_23 : f32 to vector<8x128xf32>
    %63 = arith.addf %62, %61 : vector<8x128xf32>
    %64 = arith.divf %62, %63 : vector<8x128xf32>
    %65 = vector.extract_strided_slice %58 {offsets = [0, 128], sizes = [8, 128], strides = [1, 1]} : vector<8x512xf32> to vector<8x128xf32>
    %66 = arith.negf %65 : vector<8x128xf32>
    %67 = math.exp %66 : vector<8x128xf32>
    %cst_24 = arith.constant 1.000000e+00 : f32
    %68 = vector.broadcast %cst_24 : f32 to vector<8x128xf32>
    %69 = arith.addf %68, %67 : vector<8x128xf32>
    %70 = arith.divf %68, %69 : vector<8x128xf32>
    %71 = vector.extract_strided_slice %58 {offsets = [0, 256], sizes = [8, 128], strides = [1, 1]} : vector<8x512xf32> to vector<8x128xf32>
    %72 = math.tanh %71 : vector<8x128xf32>
    %73 = vector.extract_strided_slice %58 {offsets = [0, 384], sizes = [8, 128], strides = [1, 1]} : vector<8x512xf32> to vector<8x128xf32>
    %74 = arith.negf %73 : vector<8x128xf32>
    %75 = math.exp %74 : vector<8x128xf32>
    %cst_25 = arith.constant 1.000000e+00 : f32
    %76 = vector.broadcast %cst_25 : f32 to vector<8x128xf32>
    %77 = arith.addf %76, %75 : vector<8x128xf32>
    %78 = arith.divf %76, %77 : vector<8x128xf32>
    %79 = arith.mulf %70, %23 : vector<8x128xf32>
    %80 = arith.mulf %64, %72 : vector<8x128xf32>
    %81 = arith.addf %79, %80 : vector<8x128xf32>
    %82 = math.tanh %81 : vector<8x128xf32>
    %83 = arith.mulf %78, %82 : vector<8x128xf32>
    %c0_i32 = arith.constant 0 : i32
    %84 = vector.broadcast %c0_i32 : i32 to vector<8x1xi32>
    %85 = arith.cmpi sgt, %20, %84 : vector<8x1xi32>
    %c7_i32 = arith.constant 7 : i32
    %86 = vector.broadcast %c7_i32 : i32 to vector<8x1xi32>
    %87 = arith.cmpi sgt, %20, %86 : vector<8x1xi32>
    %88 = vector.shape_cast %85 : vector<8x1xi1> to vector<8x1xi1>
    %89 = vector.broadcast %88 : vector<8x1xi1> to vector<8x128xi1>
    %90 = arith.select %89, %55, %23 : vector<8x128xi1>, vector<8x128xf32>
    %91 = vector.shape_cast %85 : vector<8x1xi1> to vector<8x1xi1>
    %92 = vector.broadcast %91 : vector<8x1xi1> to vector<8x128xi1>
    %93 = arith.select %92, %53, %23 : vector<8x128xi1>, vector<8x128xf32>
    %94 = vector.shape_cast %87 : vector<8x1xi1> to vector<8x1xi1>
    %95 = vector.broadcast %94 : vector<8x1xi1> to vector<8x128xi1>
    %96 = arith.select %95, %83, %23 : vector<8x128xi1>, vector<8x128xf32>
    %97 = vector.shape_cast %87 : vector<8x1xi1> to vector<8x1xi1>
    %98 = vector.broadcast %97 : vector<8x1xi1> to vector<8x128xi1>
    %99 = arith.select %98, %81, %23 : vector<8x128xi1>, vector<8x128xf32>
    %100 = arith.truncf %90 : vector<8x128xf32> to vector<8x128xbf16>
    %cst_26 = arith.constant dense<0.000000e+00> : vector<8x512xf32>
    %101 = tpu.matmul %100, %21, %cst_26 {dimension_numbers = #tpu.dot_dimension_numbers<[1], [0], [0], [1], [0, 0, 1, 1], [], []>} : vector<8x128xbf16>, vector<128x512xbf16>, vector<8x512xf32> -> vector<8x512xf32>
    %102 = arith.truncf %96 : vector<8x128xf32> to vector<8x128xbf16>
    %cst_27 = arith.constant dense<0.000000e+00> : vector<8x512xf32>
    %103 = tpu.matmul %102, %22, %cst_27 {dimension_numbers = #tpu.dot_dimension_numbers<[1], [0], [0], [1], [0, 0, 1, 1], [], []>} : vector<8x128xbf16>, vector<128x512xbf16>, vector<8x512xf32> -> vector<8x512xf32>
    %104 = vector.extract_strided_slice %9 {offsets = [1, 0, 0], sizes = [1, 8, 512], strides = [1, 1, 1]} : vector<8x8x512xf32> to vector<1x8x512xf32>
    %105 = vector.shape_cast %104 : vector<1x8x512xf32> to vector<8x512xf32>
    %106 = arith.addf %105, %101 : vector<8x512xf32>
    %107 = vector.extract_strided_slice %106 {offsets = [0, 0], sizes = [8, 128], strides = [1, 1]} : vector<8x512xf32> to vector<8x128xf32>
    %108 = arith.negf %107 : vector<8x128xf32>
    %109 = math.exp %108 : vector<8x128xf32>
    %cst_28 = arith.constant 1.000000e+00 : f32
    %110 = vector.broadcast %cst_28 : f32 to vector<8x128xf32>
    %111 = arith.addf %110, %109 : vector<8x128xf32>
    %112 = arith.divf %110, %111 : vector<8x128xf32>
    %113 = vector.extract_strided_slice %106 {offsets = [0, 128], sizes = [8, 128], strides = [1, 1]} : vector<8x512xf32> to vector<8x128xf32>
    %114 = arith.negf %113 : vector<8x128xf32>
    %115 = math.exp %114 : vector<8x128xf32>
    %cst_29 = arith.constant 1.000000e+00 : f32
    %116 = vector.broadcast %cst_29 : f32 to vector<8x128xf32>
    %117 = arith.addf %116, %115 : vector<8x128xf32>
    %118 = arith.divf %116, %117 : vector<8x128xf32>
    %119 = vector.extract_strided_slice %106 {offsets = [0, 256], sizes = [8, 128], strides = [1, 1]} : vector<8x512xf32> to vector<8x128xf32>
    %120 = math.tanh %119 : vector<8x128xf32>
    %121 = vector.extract_strided_slice %106 {offsets = [0, 384], sizes = [8, 128], strides = [1, 1]} : vector<8x512xf32> to vector<8x128xf32>
    %122 = arith.negf %121 : vector<8x128xf32>
    %123 = math.exp %122 : vector<8x128xf32>
    %cst_30 = arith.constant 1.000000e+00 : f32
    %124 = vector.broadcast %cst_30 : f32 to vector<8x128xf32>
    %125 = arith.addf %124, %123 : vector<8x128xf32>
    %126 = arith.divf %124, %125 : vector<8x128xf32>
    %127 = arith.mulf %118, %93 : vector<8x128xf32>
    %128 = arith.mulf %112, %120 : vector<8x128xf32>
    %129 = arith.addf %127, %128 : vector<8x128xf32>
    %130 = math.tanh %129 : vector<8x128xf32>
    %131 = arith.mulf %126, %130 : vector<8x128xf32>
    %132 = vector.extract_strided_slice %17 {offsets = [6, 0, 0], sizes = [1, 8, 512], strides = [1, 1, 1]} : vector<8x8x512xf32> to vector<1x8x512xf32>
    %133 = vector.shape_cast %132 : vector<1x8x512xf32> to vector<8x512xf32>
    %134 = arith.addf %133, %103 : vector<8x512xf32>
    %135 = vector.extract_strided_slice %134 {offsets = [0, 0], sizes = [8, 128], strides = [1, 1]} : vector<8x512xf32> to vector<8x128xf32>
    %136 = arith.negf %135 : vector<8x128xf32>
    %137 = math.exp %136 : vector<8x128xf32>
    %cst_31 = arith.constant 1.000000e+00 : f32
    %138 = vector.broadcast %cst_31 : f32 to vector<8x128xf32>
    %139 = arith.addf %138, %137 : vector<8x128xf32>
    %140 = arith.divf %138, %139 : vector<8x128xf32>
    %141 = vector.extract_strided_slice %134 {offsets = [0, 128], sizes = [8, 128], strides = [1, 1]} : vector<8x512xf32> to vector<8x128xf32>
    %142 = arith.negf %141 : vector<8x128xf32>
    %143 = math.exp %142 : vector<8x128xf32>
    %cst_32 = arith.constant 1.000000e+00 : f32
    %144 = vector.broadcast %cst_32 : f32 to vector<8x128xf32>
    %145 = arith.addf %144, %143 : vector<8x128xf32>
    %146 = arith.divf %144, %145 : vector<8x128xf32>
    %147 = vector.extract_strided_slice %134 {offsets = [0, 256], sizes = [8, 128], strides = [1, 1]} : vector<8x512xf32> to vector<8x128xf32>
    %148 = math.tanh %147 : vector<8x128xf32>
    %149 = vector.extract_strided_slice %134 {offsets = [0, 384], sizes = [8, 128], strides = [1, 1]} : vector<8x512xf32> to vector<8x128xf32>
    %150 = arith.negf %149 : vector<8x128xf32>
    %151 = math.exp %150 : vector<8x128xf32>
    %cst_33 = arith.constant 1.000000e+00 : f32
    %152 = vector.broadcast %cst_33 : f32 to vector<8x128xf32>
    %153 = arith.addf %152, %151 : vector<8x128xf32>
    %154 = arith.divf %152, %153 : vector<8x128xf32>
    %155 = arith.mulf %146, %99 : vector<8x128xf32>
    %156 = arith.mulf %140, %148 : vector<8x128xf32>
    %157 = arith.addf %155, %156 : vector<8x128xf32>
    %158 = math.tanh %157 : vector<8x128xf32>
    %159 = arith.mulf %154, %158 : vector<8x128xf32>
    %c1_i32 = arith.constant 1 : i32
    %160 = vector.broadcast %c1_i32 : i32 to vector<8x1xi32>
    %161 = arith.cmpi sgt, %20, %160 : vector<8x1xi32>
    %c6_i32 = arith.constant 6 : i32
    %162 = vector.broadcast %c6_i32 : i32 to vector<8x1xi32>
    %163 = arith.cmpi sgt, %20, %162 : vector<8x1xi32>
    %164 = vector.shape_cast %161 : vector<8x1xi1> to vector<8x1xi1>
    %165 = vector.broadcast %164 : vector<8x1xi1> to vector<8x128xi1>
    %166 = arith.select %165, %131, %90 : vector<8x128xi1>, vector<8x128xf32>
    %167 = vector.shape_cast %161 : vector<8x1xi1> to vector<8x1xi1>
    %168 = vector.broadcast %167 : vector<8x1xi1> to vector<8x128xi1>
    %169 = arith.select %168, %129, %93 : vector<8x128xi1>, vector<8x128xf32>
    %170 = vector.shape_cast %163 : vector<8x1xi1> to vector<8x1xi1>
    %171 = vector.broadcast %170 : vector<8x1xi1> to vector<8x128xi1>
    %172 = arith.select %171, %159, %96 : vector<8x128xi1>, vector<8x128xf32>
    %173 = vector.shape_cast %163 : vector<8x1xi1> to vector<8x1xi1>
    %174 = vector.broadcast %173 : vector<8x1xi1> to vector<8x128xi1>
    %175 = arith.select %174, %157, %99 : vector<8x128xi1>, vector<8x128xf32>
    %176 = arith.truncf %166 : vector<8x128xf32> to vector<8x128xbf16>
    %cst_34 = arith.constant dense<0.000000e+00> : vector<8x512xf32>
    %177 = tpu.matmul %176, %21, %cst_34 {dimension_numbers = #tpu.dot_dimension_numbers<[1], [0], [0], [1], [0, 0, 1, 1], [], []>} : vector<8x128xbf16>, vector<128x512xbf16>, vector<8x512xf32> -> vector<8x512xf32>
    %178 = arith.truncf %172 : vector<8x128xf32> to vector<8x128xbf16>
    %cst_35 = arith.constant dense<0.000000e+00> : vector<8x512xf32>
    %179 = tpu.matmul %178, %22, %cst_35 {dimension_numbers = #tpu.dot_dimension_numbers<[1], [0], [0], [1], [0, 0, 1, 1], [], []>} : vector<8x128xbf16>, vector<128x512xbf16>, vector<8x512xf32> -> vector<8x512xf32>
    %180 = vector.extract_strided_slice %9 {offsets = [2, 0, 0], sizes = [1, 8, 512], strides = [1, 1, 1]} : vector<8x8x512xf32> to vector<1x8x512xf32>
    %181 = vector.shape_cast %180 : vector<1x8x512xf32> to vector<8x512xf32>
    %182 = arith.addf %181, %177 : vector<8x512xf32>
    %183 = vector.extract_strided_slice %182 {offsets = [0, 0], sizes = [8, 128], strides = [1, 1]} : vector<8x512xf32> to vector<8x128xf32>
    %184 = arith.negf %183 : vector<8x128xf32>
    %185 = math.exp %184 : vector<8x128xf32>
    %cst_36 = arith.constant 1.000000e+00 : f32
    %186 = vector.broadcast %cst_36 : f32 to vector<8x128xf32>
    %187 = arith.addf %186, %185 : vector<8x128xf32>
    %188 = arith.divf %186, %187 : vector<8x128xf32>
    %189 = vector.extract_strided_slice %182 {offsets = [0, 128], sizes = [8, 128], strides = [1, 1]} : vector<8x512xf32> to vector<8x128xf32>
    %190 = arith.negf %189 : vector<8x128xf32>
    %191 = math.exp %190 : vector<8x128xf32>
    %cst_37 = arith.constant 1.000000e+00 : f32
    %192 = vector.broadcast %cst_37 : f32 to vector<8x128xf32>
    %193 = arith.addf %192, %191 : vector<8x128xf32>
    %194 = arith.divf %192, %193 : vector<8x128xf32>
    %195 = vector.extract_strided_slice %182 {offsets = [0, 256], sizes = [8, 128], strides = [1, 1]} : vector<8x512xf32> to vector<8x128xf32>
    %196 = math.tanh %195 : vector<8x128xf32>
    %197 = vector.extract_strided_slice %182 {offsets = [0, 384], sizes = [8, 128], strides = [1, 1]} : vector<8x512xf32> to vector<8x128xf32>
    %198 = arith.negf %197 : vector<8x128xf32>
    %199 = math.exp %198 : vector<8x128xf32>
    %cst_38 = arith.constant 1.000000e+00 : f32
    %200 = vector.broadcast %cst_38 : f32 to vector<8x128xf32>
    %201 = arith.addf %200, %199 : vector<8x128xf32>
    %202 = arith.divf %200, %201 : vector<8x128xf32>
    %203 = arith.mulf %194, %169 : vector<8x128xf32>
    %204 = arith.mulf %188, %196 : vector<8x128xf32>
    %205 = arith.addf %203, %204 : vector<8x128xf32>
    %206 = math.tanh %205 : vector<8x128xf32>
    %207 = arith.mulf %202, %206 : vector<8x128xf32>
    %208 = vector.extract_strided_slice %17 {offsets = [5, 0, 0], sizes = [1, 8, 512], strides = [1, 1, 1]} : vector<8x8x512xf32> to vector<1x8x512xf32>
    %209 = vector.shape_cast %208 : vector<1x8x512xf32> to vector<8x512xf32>
    %210 = arith.addf %209, %179 : vector<8x512xf32>
    %211 = vector.extract_strided_slice %210 {offsets = [0, 0], sizes = [8, 128], strides = [1, 1]} : vector<8x512xf32> to vector<8x128xf32>
    %212 = arith.negf %211 : vector<8x128xf32>
    %213 = math.exp %212 : vector<8x128xf32>
    %cst_39 = arith.constant 1.000000e+00 : f32
    %214 = vector.broadcast %cst_39 : f32 to vector<8x128xf32>
    %215 = arith.addf %214, %213 : vector<8x128xf32>
    %216 = arith.divf %214, %215 : vector<8x128xf32>
    %217 = vector.extract_strided_slice %210 {offsets = [0, 128], sizes = [8, 128], strides = [1, 1]} : vector<8x512xf32> to vector<8x128xf32>
    %218 = arith.negf %217 : vector<8x128xf32>
    %219 = math.exp %218 : vector<8x128xf32>
    %cst_40 = arith.constant 1.000000e+00 : f32
    %220 = vector.broadcast %cst_40 : f32 to vector<8x128xf32>
    %221 = arith.addf %220, %219 : vector<8x128xf32>
    %222 = arith.divf %220, %221 : vector<8x128xf32>
    %223 = vector.extract_strided_slice %210 {offsets = [0, 256], sizes = [8, 128], strides = [1, 1]} : vector<8x512xf32> to vector<8x128xf32>
    %224 = math.tanh %223 : vector<8x128xf32>
    %225 = vector.extract_strided_slice %210 {offsets = [0, 384], sizes = [8, 128], strides = [1, 1]} : vector<8x512xf32> to vector<8x128xf32>
    %226 = arith.negf %225 : vector<8x128xf32>
    %227 = math.exp %226 : vector<8x128xf32>
    %cst_41 = arith.constant 1.000000e+00 : f32
    %228 = vector.broadcast %cst_41 : f32 to vector<8x128xf32>
    %229 = arith.addf %228, %227 : vector<8x128xf32>
    %230 = arith.divf %228, %229 : vector<8x128xf32>
    %231 = arith.mulf %222, %175 : vector<8x128xf32>
    %232 = arith.mulf %216, %224 : vector<8x128xf32>
    %233 = arith.addf %231, %232 : vector<8x128xf32>
    %234 = math.tanh %233 : vector<8x128xf32>
    %235 = arith.mulf %230, %234 : vector<8x128xf32>
    %c2_i32 = arith.constant 2 : i32
    %236 = vector.broadcast %c2_i32 : i32 to vector<8x1xi32>
    %237 = arith.cmpi sgt, %20, %236 : vector<8x1xi32>
    %c5_i32 = arith.constant 5 : i32
    %238 = vector.broadcast %c5_i32 : i32 to vector<8x1xi32>
    %239 = arith.cmpi sgt, %20, %238 : vector<8x1xi32>
    %240 = vector.shape_cast %237 : vector<8x1xi1> to vector<8x1xi1>
    %241 = vector.broadcast %240 : vector<8x1xi1> to vector<8x128xi1>
    %242 = arith.select %241, %207, %166 : vector<8x128xi1>, vector<8x128xf32>
    %243 = vector.shape_cast %237 : vector<8x1xi1> to vector<8x1xi1>
    %244 = vector.broadcast %243 : vector<8x1xi1> to vector<8x128xi1>
    %245 = arith.select %244, %205, %169 : vector<8x128xi1>, vector<8x128xf32>
    %246 = vector.shape_cast %239 : vector<8x1xi1> to vector<8x1xi1>
    %247 = vector.broadcast %246 : vector<8x1xi1> to vector<8x128xi1>
    %248 = arith.select %247, %235, %172 : vector<8x128xi1>, vector<8x128xf32>
    %249 = vector.shape_cast %239 : vector<8x1xi1> to vector<8x1xi1>
    %250 = vector.broadcast %249 : vector<8x1xi1> to vector<8x128xi1>
    %251 = arith.select %250, %233, %175 : vector<8x128xi1>, vector<8x128xf32>
    %252 = arith.truncf %242 : vector<8x128xf32> to vector<8x128xbf16>
    %cst_42 = arith.constant dense<0.000000e+00> : vector<8x512xf32>
    %253 = tpu.matmul %252, %21, %cst_42 {dimension_numbers = #tpu.dot_dimension_numbers<[1], [0], [0], [1], [0, 0, 1, 1], [], []>} : vector<8x128xbf16>, vector<128x512xbf16>, vector<8x512xf32> -> vector<8x512xf32>
    %254 = arith.truncf %248 : vector<8x128xf32> to vector<8x128xbf16>
    %cst_43 = arith.constant dense<0.000000e+00> : vector<8x512xf32>
    %255 = tpu.matmul %254, %22, %cst_43 {dimension_numbers = #tpu.dot_dimension_numbers<[1], [0], [0], [1], [0, 0, 1, 1], [], []>} : vector<8x128xbf16>, vector<128x512xbf16>, vector<8x512xf32> -> vector<8x512xf32>
    %256 = vector.extract_strided_slice %9 {offsets = [3, 0, 0], sizes = [1, 8, 512], strides = [1, 1, 1]} : vector<8x8x512xf32> to vector<1x8x512xf32>
    %257 = vector.shape_cast %256 : vector<1x8x512xf32> to vector<8x512xf32>
    %258 = arith.addf %257, %253 : vector<8x512xf32>
    %259 = vector.extract_strided_slice %258 {offsets = [0, 0], sizes = [8, 128], strides = [1, 1]} : vector<8x512xf32> to vector<8x128xf32>
    %260 = arith.negf %259 : vector<8x128xf32>
    %261 = math.exp %260 : vector<8x128xf32>
    %cst_44 = arith.constant 1.000000e+00 : f32
    %262 = vector.broadcast %cst_44 : f32 to vector<8x128xf32>
    %263 = arith.addf %262, %261 : vector<8x128xf32>
    %264 = arith.divf %262, %263 : vector<8x128xf32>
    %265 = vector.extract_strided_slice %258 {offsets = [0, 128], sizes = [8, 128], strides = [1, 1]} : vector<8x512xf32> to vector<8x128xf32>
    %266 = arith.negf %265 : vector<8x128xf32>
    %267 = math.exp %266 : vector<8x128xf32>
    %cst_45 = arith.constant 1.000000e+00 : f32
    %268 = vector.broadcast %cst_45 : f32 to vector<8x128xf32>
    %269 = arith.addf %268, %267 : vector<8x128xf32>
    %270 = arith.divf %268, %269 : vector<8x128xf32>
    %271 = vector.extract_strided_slice %258 {offsets = [0, 256], sizes = [8, 128], strides = [1, 1]} : vector<8x512xf32> to vector<8x128xf32>
    %272 = math.tanh %271 : vector<8x128xf32>
    %273 = vector.extract_strided_slice %258 {offsets = [0, 384], sizes = [8, 128], strides = [1, 1]} : vector<8x512xf32> to vector<8x128xf32>
    %274 = arith.negf %273 : vector<8x128xf32>
    %275 = math.exp %274 : vector<8x128xf32>
    %cst_46 = arith.constant 1.000000e+00 : f32
    %276 = vector.broadcast %cst_46 : f32 to vector<8x128xf32>
    %277 = arith.addf %276, %275 : vector<8x128xf32>
    %278 = arith.divf %276, %277 : vector<8x128xf32>
    %279 = arith.mulf %270, %245 : vector<8x128xf32>
    %280 = arith.mulf %264, %272 : vector<8x128xf32>
    %281 = arith.addf %279, %280 : vector<8x128xf32>
    %282 = math.tanh %281 : vector<8x128xf32>
    %283 = arith.mulf %278, %282 : vector<8x128xf32>
    %284 = vector.extract_strided_slice %17 {offsets = [4, 0, 0], sizes = [1, 8, 512], strides = [1, 1, 1]} : vector<8x8x512xf32> to vector<1x8x512xf32>
    %285 = vector.shape_cast %284 : vector<1x8x512xf32> to vector<8x512xf32>
    %286 = arith.addf %285, %255 : vector<8x512xf32>
    %287 = vector.extract_strided_slice %286 {offsets = [0, 0], sizes = [8, 128], strides = [1, 1]} : vector<8x512xf32> to vector<8x128xf32>
    %288 = arith.negf %287 : vector<8x128xf32>
    %289 = math.exp %288 : vector<8x128xf32>
    %cst_47 = arith.constant 1.000000e+00 : f32
    %290 = vector.broadcast %cst_47 : f32 to vector<8x128xf32>
    %291 = arith.addf %290, %289 : vector<8x128xf32>
    %292 = arith.divf %290, %291 : vector<8x128xf32>
    %293 = vector.extract_strided_slice %286 {offsets = [0, 128], sizes = [8, 128], strides = [1, 1]} : vector<8x512xf32> to vector<8x128xf32>
    %294 = arith.negf %293 : vector<8x128xf32>
    %295 = math.exp %294 : vector<8x128xf32>
    %cst_48 = arith.constant 1.000000e+00 : f32
    %296 = vector.broadcast %cst_48 : f32 to vector<8x128xf32>
    %297 = arith.addf %296, %295 : vector<8x128xf32>
    %298 = arith.divf %296, %297 : vector<8x128xf32>
    %299 = vector.extract_strided_slice %286 {offsets = [0, 256], sizes = [8, 128], strides = [1, 1]} : vector<8x512xf32> to vector<8x128xf32>
    %300 = math.tanh %299 : vector<8x128xf32>
    %301 = vector.extract_strided_slice %286 {offsets = [0, 384], sizes = [8, 128], strides = [1, 1]} : vector<8x512xf32> to vector<8x128xf32>
    %302 = arith.negf %301 : vector<8x128xf32>
    %303 = math.exp %302 : vector<8x128xf32>
    %cst_49 = arith.constant 1.000000e+00 : f32
    %304 = vector.broadcast %cst_49 : f32 to vector<8x128xf32>
    %305 = arith.addf %304, %303 : vector<8x128xf32>
    %306 = arith.divf %304, %305 : vector<8x128xf32>
    %307 = arith.mulf %298, %251 : vector<8x128xf32>
    %308 = arith.mulf %292, %300 : vector<8x128xf32>
    %309 = arith.addf %307, %308 : vector<8x128xf32>
    %310 = math.tanh %309 : vector<8x128xf32>
    %311 = arith.mulf %306, %310 : vector<8x128xf32>
    %c3_i32 = arith.constant 3 : i32
    %312 = vector.broadcast %c3_i32 : i32 to vector<8x1xi32>
    %313 = arith.cmpi sgt, %20, %312 : vector<8x1xi32>
    %c4_i32 = arith.constant 4 : i32
    %314 = vector.broadcast %c4_i32 : i32 to vector<8x1xi32>
    %315 = arith.cmpi sgt, %20, %314 : vector<8x1xi32>
    %316 = vector.shape_cast %313 : vector<8x1xi1> to vector<8x1xi1>
    %317 = vector.broadcast %316 : vector<8x1xi1> to vector<8x128xi1>
    %318 = arith.select %317, %283, %242 : vector<8x128xi1>, vector<8x128xf32>
    %319 = vector.shape_cast %313 : vector<8x1xi1> to vector<8x1xi1>
    %320 = vector.broadcast %319 : vector<8x1xi1> to vector<8x128xi1>
    %321 = arith.select %320, %281, %245 : vector<8x128xi1>, vector<8x128xf32>
    %322 = vector.shape_cast %315 : vector<8x1xi1> to vector<8x1xi1>
    %323 = vector.broadcast %322 : vector<8x1xi1> to vector<8x128xi1>
    %324 = arith.select %323, %311, %248 : vector<8x128xi1>, vector<8x128xf32>
    %325 = vector.shape_cast %315 : vector<8x1xi1> to vector<8x1xi1>
    %326 = vector.broadcast %325 : vector<8x1xi1> to vector<8x128xi1>
    %327 = arith.select %326, %309, %251 : vector<8x128xi1>, vector<8x128xf32>
    %328 = arith.truncf %318 : vector<8x128xf32> to vector<8x128xbf16>
    %cst_50 = arith.constant dense<0.000000e+00> : vector<8x512xf32>
    %329 = tpu.matmul %328, %21, %cst_50 {dimension_numbers = #tpu.dot_dimension_numbers<[1], [0], [0], [1], [0, 0, 1, 1], [], []>} : vector<8x128xbf16>, vector<128x512xbf16>, vector<8x512xf32> -> vector<8x512xf32>
    %330 = arith.truncf %324 : vector<8x128xf32> to vector<8x128xbf16>
    %cst_51 = arith.constant dense<0.000000e+00> : vector<8x512xf32>
    %331 = tpu.matmul %330, %22, %cst_51 {dimension_numbers = #tpu.dot_dimension_numbers<[1], [0], [0], [1], [0, 0, 1, 1], [], []>} : vector<8x128xbf16>, vector<128x512xbf16>, vector<8x512xf32> -> vector<8x512xf32>
    %332 = vector.extract_strided_slice %9 {offsets = [4, 0, 0], sizes = [1, 8, 512], strides = [1, 1, 1]} : vector<8x8x512xf32> to vector<1x8x512xf32>
    %333 = vector.shape_cast %332 : vector<1x8x512xf32> to vector<8x512xf32>
    %334 = arith.addf %333, %329 : vector<8x512xf32>
    %335 = vector.extract_strided_slice %334 {offsets = [0, 0], sizes = [8, 128], strides = [1, 1]} : vector<8x512xf32> to vector<8x128xf32>
    %336 = arith.negf %335 : vector<8x128xf32>
    %337 = math.exp %336 : vector<8x128xf32>
    %cst_52 = arith.constant 1.000000e+00 : f32
    %338 = vector.broadcast %cst_52 : f32 to vector<8x128xf32>
    %339 = arith.addf %338, %337 : vector<8x128xf32>
    %340 = arith.divf %338, %339 : vector<8x128xf32>
    %341 = vector.extract_strided_slice %334 {offsets = [0, 128], sizes = [8, 128], strides = [1, 1]} : vector<8x512xf32> to vector<8x128xf32>
    %342 = arith.negf %341 : vector<8x128xf32>
    %343 = math.exp %342 : vector<8x128xf32>
    %cst_53 = arith.constant 1.000000e+00 : f32
    %344 = vector.broadcast %cst_53 : f32 to vector<8x128xf32>
    %345 = arith.addf %344, %343 : vector<8x128xf32>
    %346 = arith.divf %344, %345 : vector<8x128xf32>
    %347 = vector.extract_strided_slice %334 {offsets = [0, 256], sizes = [8, 128], strides = [1, 1]} : vector<8x512xf32> to vector<8x128xf32>
    %348 = math.tanh %347 : vector<8x128xf32>
    %349 = vector.extract_strided_slice %334 {offsets = [0, 384], sizes = [8, 128], strides = [1, 1]} : vector<8x512xf32> to vector<8x128xf32>
    %350 = arith.negf %349 : vector<8x128xf32>
    %351 = math.exp %350 : vector<8x128xf32>
    %cst_54 = arith.constant 1.000000e+00 : f32
    %352 = vector.broadcast %cst_54 : f32 to vector<8x128xf32>
    %353 = arith.addf %352, %351 : vector<8x128xf32>
    %354 = arith.divf %352, %353 : vector<8x128xf32>
    %355 = arith.mulf %346, %321 : vector<8x128xf32>
    %356 = arith.mulf %340, %348 : vector<8x128xf32>
    %357 = arith.addf %355, %356 : vector<8x128xf32>
    %358 = math.tanh %357 : vector<8x128xf32>
    %359 = arith.mulf %354, %358 : vector<8x128xf32>
    %360 = vector.extract_strided_slice %17 {offsets = [3, 0, 0], sizes = [1, 8, 512], strides = [1, 1, 1]} : vector<8x8x512xf32> to vector<1x8x512xf32>
    %361 = vector.shape_cast %360 : vector<1x8x512xf32> to vector<8x512xf32>
    %362 = arith.addf %361, %331 : vector<8x512xf32>
    %363 = vector.extract_strided_slice %362 {offsets = [0, 0], sizes = [8, 128], strides = [1, 1]} : vector<8x512xf32> to vector<8x128xf32>
    %364 = arith.negf %363 : vector<8x128xf32>
    %365 = math.exp %364 : vector<8x128xf32>
    %cst_55 = arith.constant 1.000000e+00 : f32
    %366 = vector.broadcast %cst_55 : f32 to vector<8x128xf32>
    %367 = arith.addf %366, %365 : vector<8x128xf32>
    %368 = arith.divf %366, %367 : vector<8x128xf32>
    %369 = vector.extract_strided_slice %362 {offsets = [0, 128], sizes = [8, 128], strides = [1, 1]} : vector<8x512xf32> to vector<8x128xf32>
    %370 = arith.negf %369 : vector<8x128xf32>
    %371 = math.exp %370 : vector<8x128xf32>
    %cst_56 = arith.constant 1.000000e+00 : f32
    %372 = vector.broadcast %cst_56 : f32 to vector<8x128xf32>
    %373 = arith.addf %372, %371 : vector<8x128xf32>
    %374 = arith.divf %372, %373 : vector<8x128xf32>
    %375 = vector.extract_strided_slice %362 {offsets = [0, 256], sizes = [8, 128], strides = [1, 1]} : vector<8x512xf32> to vector<8x128xf32>
    %376 = math.tanh %375 : vector<8x128xf32>
    %377 = vector.extract_strided_slice %362 {offsets = [0, 384], sizes = [8, 128], strides = [1, 1]} : vector<8x512xf32> to vector<8x128xf32>
    %378 = arith.negf %377 : vector<8x128xf32>
    %379 = math.exp %378 : vector<8x128xf32>
    %cst_57 = arith.constant 1.000000e+00 : f32
    %380 = vector.broadcast %cst_57 : f32 to vector<8x128xf32>
    %381 = arith.addf %380, %379 : vector<8x128xf32>
    %382 = arith.divf %380, %381 : vector<8x128xf32>
    %383 = arith.mulf %374, %327 : vector<8x128xf32>
    %384 = arith.mulf %368, %376 : vector<8x128xf32>
    %385 = arith.addf %383, %384 : vector<8x128xf32>
    %386 = math.tanh %385 : vector<8x128xf32>
    %387 = arith.mulf %382, %386 : vector<8x128xf32>
    %c4_i32_58 = arith.constant 4 : i32
    %388 = vector.broadcast %c4_i32_58 : i32 to vector<8x1xi32>
    %389 = arith.cmpi sgt, %20, %388 : vector<8x1xi32>
    %c3_i32_59 = arith.constant 3 : i32
    %390 = vector.broadcast %c3_i32_59 : i32 to vector<8x1xi32>
    %391 = arith.cmpi sgt, %20, %390 : vector<8x1xi32>
    %392 = vector.shape_cast %389 : vector<8x1xi1> to vector<8x1xi1>
    %393 = vector.broadcast %392 : vector<8x1xi1> to vector<8x128xi1>
    %394 = arith.select %393, %359, %318 : vector<8x128xi1>, vector<8x128xf32>
    %395 = vector.shape_cast %389 : vector<8x1xi1> to vector<8x1xi1>
    %396 = vector.broadcast %395 : vector<8x1xi1> to vector<8x128xi1>
    %397 = arith.select %396, %357, %321 : vector<8x128xi1>, vector<8x128xf32>
    %398 = vector.shape_cast %391 : vector<8x1xi1> to vector<8x1xi1>
    %399 = vector.broadcast %398 : vector<8x1xi1> to vector<8x128xi1>
    %400 = arith.select %399, %387, %324 : vector<8x128xi1>, vector<8x128xf32>
    %401 = vector.shape_cast %391 : vector<8x1xi1> to vector<8x1xi1>
    %402 = vector.broadcast %401 : vector<8x1xi1> to vector<8x128xi1>
    %403 = arith.select %402, %385, %327 : vector<8x128xi1>, vector<8x128xf32>
    %404 = arith.truncf %394 : vector<8x128xf32> to vector<8x128xbf16>
    %cst_60 = arith.constant dense<0.000000e+00> : vector<8x512xf32>
    %405 = tpu.matmul %404, %21, %cst_60 {dimension_numbers = #tpu.dot_dimension_numbers<[1], [0], [0], [1], [0, 0, 1, 1], [], []>} : vector<8x128xbf16>, vector<128x512xbf16>, vector<8x512xf32> -> vector<8x512xf32>
    %406 = arith.truncf %400 : vector<8x128xf32> to vector<8x128xbf16>
    %cst_61 = arith.constant dense<0.000000e+00> : vector<8x512xf32>
    %407 = tpu.matmul %406, %22, %cst_61 {dimension_numbers = #tpu.dot_dimension_numbers<[1], [0], [0], [1], [0, 0, 1, 1], [], []>} : vector<8x128xbf16>, vector<128x512xbf16>, vector<8x512xf32> -> vector<8x512xf32>
    %408 = vector.extract_strided_slice %9 {offsets = [5, 0, 0], sizes = [1, 8, 512], strides = [1, 1, 1]} : vector<8x8x512xf32> to vector<1x8x512xf32>
    %409 = vector.shape_cast %408 : vector<1x8x512xf32> to vector<8x512xf32>
    %410 = arith.addf %409, %405 : vector<8x512xf32>
    %411 = vector.extract_strided_slice %410 {offsets = [0, 0], sizes = [8, 128], strides = [1, 1]} : vector<8x512xf32> to vector<8x128xf32>
    %412 = arith.negf %411 : vector<8x128xf32>
    %413 = math.exp %412 : vector<8x128xf32>
    %cst_62 = arith.constant 1.000000e+00 : f32
    %414 = vector.broadcast %cst_62 : f32 to vector<8x128xf32>
    %415 = arith.addf %414, %413 : vector<8x128xf32>
    %416 = arith.divf %414, %415 : vector<8x128xf32>
    %417 = vector.extract_strided_slice %410 {offsets = [0, 128], sizes = [8, 128], strides = [1, 1]} : vector<8x512xf32> to vector<8x128xf32>
    %418 = arith.negf %417 : vector<8x128xf32>
    %419 = math.exp %418 : vector<8x128xf32>
    %cst_63 = arith.constant 1.000000e+00 : f32
    %420 = vector.broadcast %cst_63 : f32 to vector<8x128xf32>
    %421 = arith.addf %420, %419 : vector<8x128xf32>
    %422 = arith.divf %420, %421 : vector<8x128xf32>
    %423 = vector.extract_strided_slice %410 {offsets = [0, 256], sizes = [8, 128], strides = [1, 1]} : vector<8x512xf32> to vector<8x128xf32>
    %424 = math.tanh %423 : vector<8x128xf32>
    %425 = vector.extract_strided_slice %410 {offsets = [0, 384], sizes = [8, 128], strides = [1, 1]} : vector<8x512xf32> to vector<8x128xf32>
    %426 = arith.negf %425 : vector<8x128xf32>
    %427 = math.exp %426 : vector<8x128xf32>
    %cst_64 = arith.constant 1.000000e+00 : f32
    %428 = vector.broadcast %cst_64 : f32 to vector<8x128xf32>
    %429 = arith.addf %428, %427 : vector<8x128xf32>
    %430 = arith.divf %428, %429 : vector<8x128xf32>
    %431 = arith.mulf %422, %397 : vector<8x128xf32>
    %432 = arith.mulf %416, %424 : vector<8x128xf32>
    %433 = arith.addf %431, %432 : vector<8x128xf32>
    %434 = math.tanh %433 : vector<8x128xf32>
    %435 = arith.mulf %430, %434 : vector<8x128xf32>
    %436 = vector.extract_strided_slice %17 {offsets = [2, 0, 0], sizes = [1, 8, 512], strides = [1, 1, 1]} : vector<8x8x512xf32> to vector<1x8x512xf32>
    %437 = vector.shape_cast %436 : vector<1x8x512xf32> to vector<8x512xf32>
    %438 = arith.addf %437, %407 : vector<8x512xf32>
    %439 = vector.extract_strided_slice %438 {offsets = [0, 0], sizes = [8, 128], strides = [1, 1]} : vector<8x512xf32> to vector<8x128xf32>
    %440 = arith.negf %439 : vector<8x128xf32>
    %441 = math.exp %440 : vector<8x128xf32>
    %cst_65 = arith.constant 1.000000e+00 : f32
    %442 = vector.broadcast %cst_65 : f32 to vector<8x128xf32>
    %443 = arith.addf %442, %441 : vector<8x128xf32>
    %444 = arith.divf %442, %443 : vector<8x128xf32>
    %445 = vector.extract_strided_slice %438 {offsets = [0, 128], sizes = [8, 128], strides = [1, 1]} : vector<8x512xf32> to vector<8x128xf32>
    %446 = arith.negf %445 : vector<8x128xf32>
    %447 = math.exp %446 : vector<8x128xf32>
    %cst_66 = arith.constant 1.000000e+00 : f32
    %448 = vector.broadcast %cst_66 : f32 to vector<8x128xf32>
    %449 = arith.addf %448, %447 : vector<8x128xf32>
    %450 = arith.divf %448, %449 : vector<8x128xf32>
    %451 = vector.extract_strided_slice %438 {offsets = [0, 256], sizes = [8, 128], strides = [1, 1]} : vector<8x512xf32> to vector<8x128xf32>
    %452 = math.tanh %451 : vector<8x128xf32>
    %453 = vector.extract_strided_slice %438 {offsets = [0, 384], sizes = [8, 128], strides = [1, 1]} : vector<8x512xf32> to vector<8x128xf32>
    %454 = arith.negf %453 : vector<8x128xf32>
    %455 = math.exp %454 : vector<8x128xf32>
    %cst_67 = arith.constant 1.000000e+00 : f32
    %456 = vector.broadcast %cst_67 : f32 to vector<8x128xf32>
    %457 = arith.addf %456, %455 : vector<8x128xf32>
    %458 = arith.divf %456, %457 : vector<8x128xf32>
    %459 = arith.mulf %450, %403 : vector<8x128xf32>
    %460 = arith.mulf %444, %452 : vector<8x128xf32>
    %461 = arith.addf %459, %460 : vector<8x128xf32>
    %462 = math.tanh %461 : vector<8x128xf32>
    %463 = arith.mulf %458, %462 : vector<8x128xf32>
    %c5_i32_68 = arith.constant 5 : i32
    %464 = vector.broadcast %c5_i32_68 : i32 to vector<8x1xi32>
    %465 = arith.cmpi sgt, %20, %464 : vector<8x1xi32>
    %c2_i32_69 = arith.constant 2 : i32
    %466 = vector.broadcast %c2_i32_69 : i32 to vector<8x1xi32>
    %467 = arith.cmpi sgt, %20, %466 : vector<8x1xi32>
    %468 = vector.shape_cast %465 : vector<8x1xi1> to vector<8x1xi1>
    %469 = vector.broadcast %468 : vector<8x1xi1> to vector<8x128xi1>
    %470 = arith.select %469, %435, %394 : vector<8x128xi1>, vector<8x128xf32>
    %471 = vector.shape_cast %465 : vector<8x1xi1> to vector<8x1xi1>
    %472 = vector.broadcast %471 : vector<8x1xi1> to vector<8x128xi1>
    %473 = arith.select %472, %433, %397 : vector<8x128xi1>, vector<8x128xf32>
    %474 = vector.shape_cast %467 : vector<8x1xi1> to vector<8x1xi1>
    %475 = vector.broadcast %474 : vector<8x1xi1> to vector<8x128xi1>
    %476 = arith.select %475, %463, %400 : vector<8x128xi1>, vector<8x128xf32>
    %477 = vector.shape_cast %467 : vector<8x1xi1> to vector<8x1xi1>
    %478 = vector.broadcast %477 : vector<8x1xi1> to vector<8x128xi1>
    %479 = arith.select %478, %461, %403 : vector<8x128xi1>, vector<8x128xf32>
    %480 = arith.truncf %470 : vector<8x128xf32> to vector<8x128xbf16>
    %cst_70 = arith.constant dense<0.000000e+00> : vector<8x512xf32>
    %481 = tpu.matmul %480, %21, %cst_70 {dimension_numbers = #tpu.dot_dimension_numbers<[1], [0], [0], [1], [0, 0, 1, 1], [], []>} : vector<8x128xbf16>, vector<128x512xbf16>, vector<8x512xf32> -> vector<8x512xf32>
    %482 = arith.truncf %476 : vector<8x128xf32> to vector<8x128xbf16>
    %cst_71 = arith.constant dense<0.000000e+00> : vector<8x512xf32>
    %483 = tpu.matmul %482, %22, %cst_71 {dimension_numbers = #tpu.dot_dimension_numbers<[1], [0], [0], [1], [0, 0, 1, 1], [], []>} : vector<8x128xbf16>, vector<128x512xbf16>, vector<8x512xf32> -> vector<8x512xf32>
    %484 = vector.extract_strided_slice %9 {offsets = [6, 0, 0], sizes = [1, 8, 512], strides = [1, 1, 1]} : vector<8x8x512xf32> to vector<1x8x512xf32>
    %485 = vector.shape_cast %484 : vector<1x8x512xf32> to vector<8x512xf32>
    %486 = arith.addf %485, %481 : vector<8x512xf32>
    %487 = vector.extract_strided_slice %486 {offsets = [0, 0], sizes = [8, 128], strides = [1, 1]} : vector<8x512xf32> to vector<8x128xf32>
    %488 = arith.negf %487 : vector<8x128xf32>
    %489 = math.exp %488 : vector<8x128xf32>
    %cst_72 = arith.constant 1.000000e+00 : f32
    %490 = vector.broadcast %cst_72 : f32 to vector<8x128xf32>
    %491 = arith.addf %490, %489 : vector<8x128xf32>
    %492 = arith.divf %490, %491 : vector<8x128xf32>
    %493 = vector.extract_strided_slice %486 {offsets = [0, 128], sizes = [8, 128], strides = [1, 1]} : vector<8x512xf32> to vector<8x128xf32>
    %494 = arith.negf %493 : vector<8x128xf32>
    %495 = math.exp %494 : vector<8x128xf32>
    %cst_73 = arith.constant 1.000000e+00 : f32
    %496 = vector.broadcast %cst_73 : f32 to vector<8x128xf32>
    %497 = arith.addf %496, %495 : vector<8x128xf32>
    %498 = arith.divf %496, %497 : vector<8x128xf32>
    %499 = vector.extract_strided_slice %486 {offsets = [0, 256], sizes = [8, 128], strides = [1, 1]} : vector<8x512xf32> to vector<8x128xf32>
    %500 = math.tanh %499 : vector<8x128xf32>
    %501 = vector.extract_strided_slice %486 {offsets = [0, 384], sizes = [8, 128], strides = [1, 1]} : vector<8x512xf32> to vector<8x128xf32>
    %502 = arith.negf %501 : vector<8x128xf32>
    %503 = math.exp %502 : vector<8x128xf32>
    %cst_74 = arith.constant 1.000000e+00 : f32
    %504 = vector.broadcast %cst_74 : f32 to vector<8x128xf32>
    %505 = arith.addf %504, %503 : vector<8x128xf32>
    %506 = arith.divf %504, %505 : vector<8x128xf32>
    %507 = arith.mulf %498, %473 : vector<8x128xf32>
    %508 = arith.mulf %492, %500 : vector<8x128xf32>
    %509 = arith.addf %507, %508 : vector<8x128xf32>
    %510 = math.tanh %509 : vector<8x128xf32>
    %511 = arith.mulf %506, %510 : vector<8x128xf32>
    %512 = vector.extract_strided_slice %17 {offsets = [1, 0, 0], sizes = [1, 8, 512], strides = [1, 1, 1]} : vector<8x8x512xf32> to vector<1x8x512xf32>
    %513 = vector.shape_cast %512 : vector<1x8x512xf32> to vector<8x512xf32>
    %514 = arith.addf %513, %483 : vector<8x512xf32>
    %515 = vector.extract_strided_slice %514 {offsets = [0, 0], sizes = [8, 128], strides = [1, 1]} : vector<8x512xf32> to vector<8x128xf32>
    %516 = arith.negf %515 : vector<8x128xf32>
    %517 = math.exp %516 : vector<8x128xf32>
    %cst_75 = arith.constant 1.000000e+00 : f32
    %518 = vector.broadcast %cst_75 : f32 to vector<8x128xf32>
    %519 = arith.addf %518, %517 : vector<8x128xf32>
    %520 = arith.divf %518, %519 : vector<8x128xf32>
    %521 = vector.extract_strided_slice %514 {offsets = [0, 128], sizes = [8, 128], strides = [1, 1]} : vector<8x512xf32> to vector<8x128xf32>
    %522 = arith.negf %521 : vector<8x128xf32>
    %523 = math.exp %522 : vector<8x128xf32>
    %cst_76 = arith.constant 1.000000e+00 : f32
    %524 = vector.broadcast %cst_76 : f32 to vector<8x128xf32>
    %525 = arith.addf %524, %523 : vector<8x128xf32>
    %526 = arith.divf %524, %525 : vector<8x128xf32>
    %527 = vector.extract_strided_slice %514 {offsets = [0, 256], sizes = [8, 128], strides = [1, 1]} : vector<8x512xf32> to vector<8x128xf32>
    %528 = math.tanh %527 : vector<8x128xf32>
    %529 = vector.extract_strided_slice %514 {offsets = [0, 384], sizes = [8, 128], strides = [1, 1]} : vector<8x512xf32> to vector<8x128xf32>
    %530 = arith.negf %529 : vector<8x128xf32>
    %531 = math.exp %530 : vector<8x128xf32>
    %cst_77 = arith.constant 1.000000e+00 : f32
    %532 = vector.broadcast %cst_77 : f32 to vector<8x128xf32>
    %533 = arith.addf %532, %531 : vector<8x128xf32>
    %534 = arith.divf %532, %533 : vector<8x128xf32>
    %535 = arith.mulf %526, %479 : vector<8x128xf32>
    %536 = arith.mulf %520, %528 : vector<8x128xf32>
    %537 = arith.addf %535, %536 : vector<8x128xf32>
    %538 = math.tanh %537 : vector<8x128xf32>
    %539 = arith.mulf %534, %538 : vector<8x128xf32>
    %c6_i32_78 = arith.constant 6 : i32
    %540 = vector.broadcast %c6_i32_78 : i32 to vector<8x1xi32>
    %541 = arith.cmpi sgt, %20, %540 : vector<8x1xi32>
    %c1_i32_79 = arith.constant 1 : i32
    %542 = vector.broadcast %c1_i32_79 : i32 to vector<8x1xi32>
    %543 = arith.cmpi sgt, %20, %542 : vector<8x1xi32>
    %544 = vector.shape_cast %541 : vector<8x1xi1> to vector<8x1xi1>
    %545 = vector.broadcast %544 : vector<8x1xi1> to vector<8x128xi1>
    %546 = arith.select %545, %511, %470 : vector<8x128xi1>, vector<8x128xf32>
    %547 = vector.shape_cast %541 : vector<8x1xi1> to vector<8x1xi1>
    %548 = vector.broadcast %547 : vector<8x1xi1> to vector<8x128xi1>
    %549 = arith.select %548, %509, %473 : vector<8x128xi1>, vector<8x128xf32>
    %550 = vector.shape_cast %543 : vector<8x1xi1> to vector<8x1xi1>
    %551 = vector.broadcast %550 : vector<8x1xi1> to vector<8x128xi1>
    %552 = arith.select %551, %539, %476 : vector<8x128xi1>, vector<8x128xf32>
    %553 = vector.shape_cast %543 : vector<8x1xi1> to vector<8x1xi1>
    %554 = vector.broadcast %553 : vector<8x1xi1> to vector<8x128xi1>
    %555 = arith.select %554, %537, %479 : vector<8x128xi1>, vector<8x128xf32>
    %556 = arith.truncf %546 : vector<8x128xf32> to vector<8x128xbf16>
    %cst_80 = arith.constant dense<0.000000e+00> : vector<8x512xf32>
    %557 = tpu.matmul %556, %21, %cst_80 {dimension_numbers = #tpu.dot_dimension_numbers<[1], [0], [0], [1], [0, 0, 1, 1], [], []>} : vector<8x128xbf16>, vector<128x512xbf16>, vector<8x512xf32> -> vector<8x512xf32>
    %558 = arith.truncf %552 : vector<8x128xf32> to vector<8x128xbf16>
    %cst_81 = arith.constant dense<0.000000e+00> : vector<8x512xf32>
    %559 = tpu.matmul %558, %22, %cst_81 {dimension_numbers = #tpu.dot_dimension_numbers<[1], [0], [0], [1], [0, 0, 1, 1], [], []>} : vector<8x128xbf16>, vector<128x512xbf16>, vector<8x512xf32> -> vector<8x512xf32>
    %560 = vector.extract_strided_slice %9 {offsets = [7, 0, 0], sizes = [1, 8, 512], strides = [1, 1, 1]} : vector<8x8x512xf32> to vector<1x8x512xf32>
    %561 = vector.shape_cast %560 : vector<1x8x512xf32> to vector<8x512xf32>
    %562 = arith.addf %561, %557 : vector<8x512xf32>
    %563 = vector.extract_strided_slice %562 {offsets = [0, 0], sizes = [8, 128], strides = [1, 1]} : vector<8x512xf32> to vector<8x128xf32>
    %564 = arith.negf %563 : vector<8x128xf32>
    %565 = math.exp %564 : vector<8x128xf32>
    %cst_82 = arith.constant 1.000000e+00 : f32
    %566 = vector.broadcast %cst_82 : f32 to vector<8x128xf32>
    %567 = arith.addf %566, %565 : vector<8x128xf32>
    %568 = arith.divf %566, %567 : vector<8x128xf32>
    %569 = vector.extract_strided_slice %562 {offsets = [0, 128], sizes = [8, 128], strides = [1, 1]} : vector<8x512xf32> to vector<8x128xf32>
    %570 = arith.negf %569 : vector<8x128xf32>
    %571 = math.exp %570 : vector<8x128xf32>
    %cst_83 = arith.constant 1.000000e+00 : f32
    %572 = vector.broadcast %cst_83 : f32 to vector<8x128xf32>
    %573 = arith.addf %572, %571 : vector<8x128xf32>
    %574 = arith.divf %572, %573 : vector<8x128xf32>
    %575 = vector.extract_strided_slice %562 {offsets = [0, 256], sizes = [8, 128], strides = [1, 1]} : vector<8x512xf32> to vector<8x128xf32>
    %576 = math.tanh %575 : vector<8x128xf32>
    %577 = vector.extract_strided_slice %562 {offsets = [0, 384], sizes = [8, 128], strides = [1, 1]} : vector<8x512xf32> to vector<8x128xf32>
    %578 = arith.negf %577 : vector<8x128xf32>
    %579 = math.exp %578 : vector<8x128xf32>
    %cst_84 = arith.constant 1.000000e+00 : f32
    %580 = vector.broadcast %cst_84 : f32 to vector<8x128xf32>
    %581 = arith.addf %580, %579 : vector<8x128xf32>
    %582 = arith.divf %580, %581 : vector<8x128xf32>
    %583 = arith.mulf %574, %549 : vector<8x128xf32>
    %584 = arith.mulf %568, %576 : vector<8x128xf32>
    %585 = arith.addf %583, %584 : vector<8x128xf32>
    %586 = math.tanh %585 : vector<8x128xf32>
    %587 = arith.mulf %582, %586 : vector<8x128xf32>
    %588 = vector.extract_strided_slice %17 {offsets = [0, 0, 0], sizes = [1, 8, 512], strides = [1, 1, 1]} : vector<8x8x512xf32> to vector<1x8x512xf32>
    %589 = vector.shape_cast %588 : vector<1x8x512xf32> to vector<8x512xf32>
    %590 = arith.addf %589, %559 : vector<8x512xf32>
    %591 = vector.extract_strided_slice %590 {offsets = [0, 0], sizes = [8, 128], strides = [1, 1]} : vector<8x512xf32> to vector<8x128xf32>
    %592 = arith.negf %591 : vector<8x128xf32>
    %593 = math.exp %592 : vector<8x128xf32>
    %cst_85 = arith.constant 1.000000e+00 : f32
    %594 = vector.broadcast %cst_85 : f32 to vector<8x128xf32>
    %595 = arith.addf %594, %593 : vector<8x128xf32>
    %596 = arith.divf %594, %595 : vector<8x128xf32>
    %597 = vector.extract_strided_slice %590 {offsets = [0, 128], sizes = [8, 128], strides = [1, 1]} : vector<8x512xf32> to vector<8x128xf32>
    %598 = arith.negf %597 : vector<8x128xf32>
    %599 = math.exp %598 : vector<8x128xf32>
    %cst_86 = arith.constant 1.000000e+00 : f32
    %600 = vector.broadcast %cst_86 : f32 to vector<8x128xf32>
    %601 = arith.addf %600, %599 : vector<8x128xf32>
    %602 = arith.divf %600, %601 : vector<8x128xf32>
    %603 = vector.extract_strided_slice %590 {offsets = [0, 256], sizes = [8, 128], strides = [1, 1]} : vector<8x512xf32> to vector<8x128xf32>
    %604 = math.tanh %603 : vector<8x128xf32>
    %605 = vector.extract_strided_slice %590 {offsets = [0, 384], sizes = [8, 128], strides = [1, 1]} : vector<8x512xf32> to vector<8x128xf32>
    %606 = arith.negf %605 : vector<8x128xf32>
    %607 = math.exp %606 : vector<8x128xf32>
    %cst_87 = arith.constant 1.000000e+00 : f32
    %608 = vector.broadcast %cst_87 : f32 to vector<8x128xf32>
    %609 = arith.addf %608, %607 : vector<8x128xf32>
    %610 = arith.divf %608, %609 : vector<8x128xf32>
    %611 = arith.mulf %602, %555 : vector<8x128xf32>
    %612 = arith.mulf %596, %604 : vector<8x128xf32>
    %613 = arith.addf %611, %612 : vector<8x128xf32>
    %614 = math.tanh %613 : vector<8x128xf32>
    %615 = arith.mulf %610, %614 : vector<8x128xf32>
    %c7_i32_88 = arith.constant 7 : i32
    %616 = vector.broadcast %c7_i32_88 : i32 to vector<8x1xi32>
    %617 = arith.cmpi sgt, %20, %616 : vector<8x1xi32>
    %c0_i32_89 = arith.constant 0 : i32
    %618 = vector.broadcast %c0_i32_89 : i32 to vector<8x1xi32>
    %619 = arith.cmpi sgt, %20, %618 : vector<8x1xi32>
    %620 = vector.shape_cast %617 : vector<8x1xi1> to vector<8x1xi1>
    %621 = vector.broadcast %620 : vector<8x1xi1> to vector<8x128xi1>
    %622 = arith.select %621, %587, %546 : vector<8x128xi1>, vector<8x128xf32>
    %623 = vector.shape_cast %619 : vector<8x1xi1> to vector<8x1xi1>
    %624 = vector.broadcast %623 : vector<8x1xi1> to vector<8x128xi1>
    %625 = arith.select %624, %615, %552 : vector<8x128xi1>, vector<8x128xf32>
    %626 = tpu.concatenate %622, %625 in 1 : vector<8x128xf32>, vector<8x128xf32> -> vector<8x256xf32>
    %c0_90 = arith.constant 0 : index
    %c0_91 = arith.constant 0 : index
    %627 = vector.load %arg9[%c0_90, %c0_91] : memref<256x128xf32, #tpu.memory_space<vmem>>, vector<256x128xf32>
    %628 = arith.truncf %626 : vector<8x256xf32> to vector<8x256xbf16>
    %629 = arith.truncf %627 : vector<256x128xf32> to vector<256x128xbf16>
    %cst_92 = arith.constant dense<0.000000e+00> : vector<8x128xf32>
    %630 = tpu.matmul %628, %629, %cst_92 {dimension_numbers = #tpu.dot_dimension_numbers<[1], [0], [0], [1], [0, 0, 1, 1], [], []>} : vector<8x256xbf16>, vector<256x128xbf16>, vector<8x128xf32> -> vector<8x128xf32>
    %c0_93 = arith.constant 0 : index
    %c0_94 = arith.constant 0 : index
    %631 = vector.load %arg10[%c0_93, %c0_94] : memref<1x128xf32, #tpu.memory_space<vmem>>, vector<1x128xf32>
    %632 = vector.broadcast %631 : vector<1x128xf32> to vector<8x128xf32>
    %633 = arith.addf %630, %632 : vector<8x128xf32>
    %c0_95 = arith.constant 0 : index
    %c0_96 = arith.constant 0 : index
    %634 = vector.load %arg11[%c0_95, %c0_96] : memref<8x128xf32, #tpu.memory_space<vmem>>, vector<8x128xf32>
    tpu.vector_store %arg11[%c0_95, %c0_96], %633 {strides = array<i32>} : memref<8x128xf32, #tpu.memory_space<vmem>>, vector<8x128xf32>,
    return
  }
  func.func @transform_0(%arg0: i32) -> (i32, i32, i32) {
    %c0_i32 = arith.constant 0 : i32
    %c0_i32_0 = arith.constant 0 : i32
    %c0_i32_1 = arith.constant 0 : i32
    return %c0_i32, %arg0, %c0_i32_0 : i32, i32, i32
  }
  func.func @transform_1(%arg0: i32) -> (i32, i32) {
    %c0_i32 = arith.constant 0 : i32
    %c0_i32_0 = arith.constant 0 : i32
    return %arg0, %c0_i32 : i32, i32
  }
  func.func @transform_2(%arg0: i32) -> (i32, i32) {
    %c0_i32 = arith.constant 0 : i32
    %c0_i32_0 = arith.constant 0 : i32
    %c0_i32_1 = arith.constant 0 : i32
    return %c0_i32, %c0_i32_0 : i32, i32
  }
  func.func @transform_3(%arg0: i32) -> (i32, i32) {
    %c0_i32 = arith.constant 0 : i32
    %c0_i32_0 = arith.constant 0 : i32
    %c0_i32_1 = arith.constant 0 : i32
    return %c0_i32, %c0_i32_0 : i32, i32
  }
  func.func @transform_4(%arg0: i32) -> (i32, i32) {
    %c0_i32 = arith.constant 0 : i32
    %c0_i32_0 = arith.constant 0 : i32
    %c0_i32_1 = arith.constant 0 : i32
    return %c0_i32, %c0_i32_0 : i32, i32
  }
  func.func @transform_5(%arg0: i32) -> (i32, i32) {
    %c0_i32 = arith.constant 0 : i32
    %c0_i32_0 = arith.constant 0 : i32
    %c0_i32_1 = arith.constant 0 : i32
    return %c0_i32, %c0_i32_0 : i32, i32
  }
  func.func @transform_6(%arg0: i32) -> (i32, i32) {
    %c0_i32 = arith.constant 0 : i32
    %c0_i32_0 = arith.constant 0 : i32
    %c0_i32_1 = arith.constant 0 : i32
    return %c0_i32, %c0_i32_0 : i32, i32
  }
  func.func @transform_7(%arg0: i32) -> (i32, i32) {
    %c0_i32 = arith.constant 0 : i32
    %c0_i32_0 = arith.constant 0 : i32
    %c0_i32_1 = arith.constant 0 : i32
    return %c0_i32, %c0_i32_0 : i32, i32
  }
  func.func @transform_8(%arg0: i32) -> (i32, i32) {
    %c0_i32 = arith.constant 0 : i32
    %c0_i32_0 = arith.constant 0 : i32
    %c0_i32_1 = arith.constant 0 : i32
    return %c0_i32, %c0_i32_0 : i32, i32
  }
  func.func @transform_9(%arg0: i32) -> (i32, i32) {
    %c0_i32 = arith.constant 0 : i32
    %c0_i32_0 = arith.constant 0 : i32
    %c0_i32_1 = arith.constant 0 : i32
    return %c0_i32, %c0_i32_0 : i32, i32
  }
  func.func @transform_10(%arg0: i32) -> (i32, i32) {
    %c0_i32 = arith.constant 0 : i32
    %c0_i32_0 = arith.constant 0 : i32
    return %arg0, %c0_i32 : i32, i32
  }
}

</mosaic_0001>

<llo_original>
// kernel: tpu_custom_call.1
$region0: #{tpu_custom_call.1}
  #allocation0 [shape = 'u32[]', space=smem, size = 0x4, offset = 0x4, fixed_abs, tag = 'smem constant byte address 0x4 - core index']
  #allocation1 [shape = 'u32[144,128]{1,0:T(1,128)}', space=vmem, size = 0x12000, scoped, tag = 'internal scratch']
  %s0 = inlined_call_operand.hbm [shape: f32[8,8,8], index: 0, kind: input, shape index: {}]
  %s1 = inlined_call_operand.vmem [shape: s32[8,1], index: 1, kind: input, shape index: {}]
  %s2 = inlined_call_operand.hbm [shape: f32[8,512], index: 2, kind: input, shape index: {}]
  %s3 = inlined_call_operand.hbm [shape: f32[128,512], index: 3, kind: input, shape index: {}]
  %s4 = inlined_call_operand.vmem [shape: f32[1,512], index: 4, kind: input, shape index: {}]
  %s5 = inlined_call_operand.hbm [shape: f32[8,512], index: 5, kind: input, shape index: {}]
  %s6 = inlined_call_operand.hbm [shape: f32[128,512], index: 6, kind: input, shape index: {}]
  %s7 = inlined_call_operand.vmem [shape: f32[1,512], index: 7, kind: input, shape index: {}]
  %s8 = inlined_call_operand.hbm [shape: f32[256,128], index: 8, kind: input, shape index: {}]
  %s9 = inlined_call_operand.vmem [shape: f32[1,128], index: 9, kind: input, shape index: {}]
  %s10 = inlined_call_operand.hbm [shape: f32[8,128], index: 10, kind: output, shape index: {}]
  %s11 = sld [smem:[#allocation0]]
  $region74: #{tpu_custom_call.1} parent=0
    _
  %s13 = ssub.s32 1, %s11
  %s14 = scalar_select 0, %s13, %s11
  $region1: #{tpu_custom_call.1} parent=0
    #allocation2 [shape = 'u8[32768]{0}', space=vmem, size = 0x8000, scoped, tag = 'input window, operand 0, single buffered']
    #allocation3 [shape = 's32[1]{0}', space=sflag, size = 0x4, scoped, tag = 'scoped memory for tpu_custom_call.1']
    #allocation4 [shape = 's32[1]{0}', space=sflag, size = 0x4, scoped, tag = 'scoped memory for tpu_custom_call.1']
    #allocation5 [shape = 'u8[16384]{0}', space=vmem, size = 0x4000, scoped, tag = 'input window, operand 2, single buffered']
    #allocation6 [shape = 's32[1]{0}', space=sflag, size = 0x4, scoped, tag = 'scoped memory for tpu_custom_call.1']
    #allocation7 [shape = 'u8[262144]{0}', space=vmem, size = 0x40000, scoped, tag = 'input window, operand 3, single buffered']
    #allocation8 [shape = 'u8[16384]{0}', space=vmem, size = 0x4000, scoped, tag = 'input window, operand 5, single buffered']
    #allocation9 [shape = 's32[1]{0}', space=sflag, size = 0x4, scoped, tag = 'scoped memory for tpu_custom_call.1']
    #allocation10 [shape = 'u8[262144]{0}', space=vmem, size = 0x40000, scoped, tag = 'input window, operand 6, single buffered']
    #allocation11 [shape = 'u8[131072]{0}', space=vmem, size = 0x20000, scoped, tag = 'input window, operand 8, single buffered']
    #allocation12 [shape = 's32[1]{0}', space=sflag, size = 0x4, scoped, tag = 'scoped memory for tpu_custom_call.1']
    #allocation13 [shape = 'u8[4096]{0}', space=vmem, size = 0x1000, scoped, tag = 'output window, operand 0, single buffered']
    %15 = vsyncpa [#allocation3], 0
    %16 = vsyncpa [#allocation6], 0
    %17 = vsyncpa [#allocation9], 0
    %18 = vsyncpa [#allocation12], 0
    %19 = vsyncpa [#allocation4], 0
    // Predicated region
    $region2: #{tpu_custom_call.1} parent=1 // pred_check
      _
    $region3: #{tpu_custom_call.1} parent=1 // pred_check_branch
      %21 = sbr.rel (0) target = $region5
    $region4: #{tpu_custom_call.1} parent=1 // pred_region
      %s23 = ssub.s32 1024, 1024
      %24 = vsyncadd [#allocation3], %s23
      %s25 = sshll.u32 [#allocation2], 4
      %s26 = int_to_ptr.vmem [resolvable:$true] %s25
      %31 = dma.hbm_to_vmem [thread:$0]  %s0, 1024, %s26, [#allocation3], 128, 128, 8
    $region5: #{tpu_custom_call.1} parent=1 // pred_fallthru
      _
    // Predicated region
    $region6: #{tpu_custom_call.1} parent=1 // pred_check
      _
    $region7: #{tpu_custom_call.1} parent=1 // pred_check_branch
      %33 = sbr.rel (0) target = $region9
    $region8: #{tpu_custom_call.1} parent=1 // pred_region
      _
    $region9: #{tpu_custom_call.1} parent=1 // pred_fallthru
      _
    // Predicated region
    $region10: #{tpu_custom_call.1} parent=1 // pred_check
      _
    $region11: #{tpu_custom_call.1} parent=1 // pred_check_branch
      %35 = sbr.rel (0) target = $region13
    $region12: #{tpu_custom_call.1} parent=1 // pred_region
      %s37 = ssub.s32 512, 512
      %38 = vsyncadd [#allocation6], %s37
      %s40 = sshll.u32 [#allocation5], 4
      %s41 = int_to_ptr.vmem [resolvable:$true] %s40
      %43 = dma.hbm_to_vmem [thread:$0]  %s2, 512, %s41, [#allocation6]
    $region13: #{tpu_custom_call.1} parent=1 // pred_fallthru
      _
    // Predicated region
    $region14: #{tpu_custom_call.1} parent=1 // pred_check
      _
    $region15: #{tpu_custom_call.1} parent=1 // pred_check_branch
      %45 = sbr.rel (0) target = $region17
    $region16: #{tpu_custom_call.1} parent=1 // pred_region
      %s47 = ssub.s32 8192, 8192
      %48 = vsyncadd [#allocation6], %s47
      %s49 = sshll.u32 [#allocation7], 4
      %s50 = int_to_ptr.vmem [resolvable:$true] %s49
      %55 = dma.hbm_to_vmem [thread:$0]  %s3, 8192, %s50, [#allocation6], 512, 512, 32
    $region17: #{tpu_custom_call.1} parent=1 // pred_fallthru
      _
    // Predicated region
    $region18: #{tpu_custom_call.1} parent=1 // pred_check
      _
    $region19: #{tpu_custom_call.1} parent=1 // pred_check_branch
      %57 = sbr.rel (0) target = $region21
    $region20: #{tpu_custom_call.1} parent=1 // pred_region
      _
    $region21: #{tpu_custom_call.1} parent=1 // pred_fallthru
      _
    // Predicated region
    $region22: #{tpu_custom_call.1} parent=1 // pred_check
      _
    $region23: #{tpu_custom_call.1} parent=1 // pred_check_branch
      %59 = sbr.rel (0) target = $region25
    $region24: #{tpu_custom_call.1} parent=1 // pred_region
      %s61 = ssub.s32 512, 512
      %62 = vsyncadd [#allocation9], %s61
      %s64 = sshll.u32 [#allocation8], 4
      %s65 = int_to_ptr.vmem [resolvable:$true] %s64
      %67 = dma.hbm_to_vmem [thread:$0]  %s5, 512, %s65, [#allocation9]
    $region25: #{tpu_custom_call.1} parent=1 // pred_fallthru
      _
    // Predicated region
    $region26: #{tpu_custom_call.1} parent=1 // pred_check
      _
    $region27: #{tpu_custom_call.1} parent=1 // pred_check_branch
      %69 = sbr.rel (0) target = $region29
    $region28: #{tpu_custom_call.1} parent=1 // pred_region
      %s71 = ssub.s32 8192, 8192
      %72 = vsyncadd [#allocation9], %s71
      %s73 = sshll.u32 [#allocation10], 4
      %s74 = int_to_ptr.vmem [resolvable:$true] %s73
      %79 = dma.hbm_to_vmem [thread:$0]  %s6, 8192, %s74, [#allocation9], 512, 512, 32
    $region29: #{tpu_custom_call.1} parent=1 // pred_fallthru
      _
    // Predicated region
    $region30: #{tpu_custom_call.1} parent=1 // pred_check
      _
    $region31: #{tpu_custom_call.1} parent=1 // pred_check_branch
      %81 = sbr.rel (0) target = $region33
    $region32: #{tpu_custom_call.1} parent=1 // pred_region
      _
    $region33: #{tpu_custom_call.1} parent=1 // pred_fallthru
      _
    // Predicated region
    $region34: #{tpu_custom_call.1} parent=1 // pred_check
      _
    $region35: #{tpu_custom_call.1} parent=1 // pred_check_branch
      %83 = sbr.rel (0) target = $region37
    $region36: #{tpu_custom_call.1} parent=1 // pred_region
      %s85 = ssub.s32 4096, 4096
      %86 = vsyncadd [#allocation12], %s85
      %s87 = sshll.u32 [#allocation11], 4
      %s88 = int_to_ptr.vmem [resolvable:$true] %s87
      %93 = dma.hbm_to_vmem [thread:$0]  %s8, 4096, %s88, [#allocation12], 128, 128, 8
    $region37: #{tpu_custom_call.1} parent=1 // pred_fallthru
      _
    // Predicated region
    $region38: #{tpu_custom_call.1} parent=1 // pred_check
      _
    $region39: #{tpu_custom_call.1} parent=1 // pred_check_branch
      %95 = sbr.rel (0) target = $region41
    $region40: #{tpu_custom_call.1} parent=1 // pred_region
      _
    $region41: #{tpu_custom_call.1} parent=1 // pred_fallthru
      _
    // Predicated region
    $region42: #{tpu_custom_call.1} parent=1 // pred_check
      _
    $region43: #{tpu_custom_call.1} parent=1 // pred_check_branch
      %97 = sbr.rel (0) target = $region45
    $region44: #{tpu_custom_call.1} parent=1 // pred_region
      %98 = dma.done [#allocation3], 1024
    $region45: #{tpu_custom_call.1} parent=1 // pred_fallthru
      _
    // Predicated region
    $region46: #{tpu_custom_call.1} parent=1 // pred_check
      _
    $region47: #{tpu_custom_call.1} parent=1 // pred_check_branch
      %100 = sbr.rel (0) target = $region49
    $region48: #{tpu_custom_call.1} parent=1 // pred_region
      %101 = dma.done [#allocation6], 512
    $region49: #{tpu_custom_call.1} parent=1 // pred_fallthru
      _
    // Predicated region
    $region50: #{tpu_custom_call.1} parent=1 // pred_check
      _
    $region51: #{tpu_custom_call.1} parent=1 // pred_check_branch
      %103 = sbr.rel (0) target = $region53
    $region52: #{tpu_custom_call.1} parent=1 // pred_region
      %104 = dma.done [#allocation6], 8192
    $region53: #{tpu_custom_call.1} parent=1 // pred_fallthru
      _
    // Predicated region
    $region54: #{tpu_custom_call.1} parent=1 // pred_check
      _
    $region55: #{tpu_custom_call.1} parent=1 // pred_check_branch
      %106 = sbr.rel (0) target = $region57
    $region56: #{tpu_custom_call.1} parent=1 // pred_region
      %107 = dma.done [#allocation9], 512
    $region57: #{tpu_custom_call.1} parent=1 // pred_fallthru
      _
    // Predicated region
    $region58: #{tpu_custom_call.1} parent=1 // pred_check
      _
    $region59: #{tpu_custom_call.1} parent=1 // pred_check_branch
      %109 = sbr.rel (0) target = $region61
    $region60: #{tpu_custom_call.1} parent=1 // pred_region
      %110 = dma.done [#allocation9], 8192
    $region61: #{tpu_custom_call.1} parent=1 // pred_fallthru
      _
    // Predicated region
    $region62: #{tpu_custom_call.1} parent=1 // pred_check
      _
    $region63: #{tpu_custom_call.1} parent=1 // pred_check_branch
      %112 = sbr.rel (0) target = $region65
    $region64: #{tpu_custom_call.1} parent=1 // pred_region
      %113 = dma.done [#allocation12], 4096
    $region65: #{tpu_custom_call.1} parent=1 // pred_fallthru
      _
    %v115 = vld [vmem:[#allocation2] sm:$0xff]
    %v116 = vld [vmem:[#allocation2 + $0x8] sm:$0xff]
    %v117 = vld [vmem:[#allocation2 + $0x10] sm:$0xff]
    %v118 = vld [vmem:[#allocation2 + $0x18] sm:$0xff]
    %v119 = vld [vmem:[#allocation2 + $0x20] sm:$0xff]
    %v120 = vld [vmem:[#allocation2 + $0x28] sm:$0xff]
    %v121 = vld [vmem:[#allocation2 + $0x30] sm:$0xff]
    %v122 = vld [vmem:[#allocation2 + $0x38] sm:$0xff]
    %v123 = vld [vmem:[#allocation5] sm:$0xff]
    %v124 = vld [vmem:[#allocation5 + $0x8] sm:$0xff]
    %v125 = vld [vmem:[#allocation5 + $0x10] sm:$0xff]
    %v126 = vld [vmem:[#allocation5 + $0x18] sm:$0xff]
    %v127 = vpack.c.bf16 %v116, %v115
    %v128 = vpack.c.bf16 %v118, %v117
    %v129 = vpack.c.bf16 %v120, %v119
    %v130 = vpack.c.bf16 %v122, %v121
    %v131 = vpack.c.bf16 %v123, %v123
    %v132 = vpack.c.bf16 %v124, %v124
    %v133 = vpack.c.bf16 %v125, %v125
    %v134 = vpack.c.bf16 %v126, %v126
    %v135 = vld [vmem:[%s4] sm:$0xf]
    %v137 = vlaneseq
    %v138 = vshrl.u32 %v137, 7
    %v139 = vsub.s32 0, %v138
    %v140 = vrot.slane %v135, %v139
    %v141 = vlaneseq
    %v142 = vshrl.u32 %v141, 7
    %v143 = vsub.s32 1, %v142
    %v144 = vrot.slane %v135, %v143
    %v145 = vlaneseq
    %v146 = vshrl.u32 %v145, 7
    %v147 = vsub.s32 2, %v146
    %v148 = vrot.slane %v135, %v147
    %v149 = vlaneseq
    %v150 = vshrl.u32 %v149, 7
    %v151 = vsub.s32 3, %v150
    %v152 = vrot.slane %v135, %v151
    %vm157 = vcmask 64512
    %v159 = vsel %vm157, %v127, 0
    %v162 = vsel %vm157, %v128, 0
    %v165 = vsel %vm157, %v129, 0
    %v168 = vsel %vm157, %v130, 0
    %vm170 = vcmask 1043456
    %v172 = vsel %vm170, %v131, 0
    %v175 = vsel %vm170, %v132, 0
    %v178 = vsel %vm170, %v133, 0
    %v181 = vsel %vm170, %v134, 0
    %183 = vmatprep.subr.bf16.mxu0 %v175
    %184 = vmatpush1.bf16.msra.mxu0 %v172
    %185 = vmatprep.subr.bf16.mxu0 0
    %186 = vmatpush1.bf16.msra.mxu0 0
    %187 = vmatprep.subr.bf16.mxu0 0
    %188 = vmatpush1.bf16.msra.mxu0 0
    %189 = vmatprep.subr.bf16.mxu0 0
    %190 = vmatpush1.bf16.msra.mxu0 0
    %191 = vmatprep.subr.bf16.mxu0 0
    %192 = vmatpush1.bf16.msra.mxu0 0
    %193 = vmatprep.subr.bf16.mxu0 0
    %194 = vmatpush1.bf16.msra.mxu0 0
    %195 = vmatprep.subr.bf16.mxu0 0
    %196 = vmatpush1.bf16.msra.mxu0 0
    %197 = vmatprep.subr.bf16.mxu0 0
    %198 = vmatpush1.bf16.msra.mxu0 0
    %199 = vmatprep.subr.bf16.mxu0 0
    %200 = vmatpush1.bf16.msra.mxu0 0
    %201 = vmatprep.subr.bf16.mxu0 0
    %202 = vmatpush1.bf16.msra.mxu0 0
    %203 = vmatprep.subr.bf16.mxu0 0
    %204 = vmatpush1.bf16.msra.mxu0 0
    %205 = vmatprep.subr.bf16.mxu0 0
    %206 = vmatpush1.bf16.msra.mxu0 0
    %207 = vmatprep.subr.bf16.mxu0 0
    %208 = vmatpush1.bf16.msra.mxu0 0
    %209 = vmatprep.subr.bf16.mxu0 0
    %210 = vmatpush1.bf16.msra.mxu0 0
    %211 = vmatprep.subr.bf16.mxu0 0
    %212 = vmatpush1.bf16.msra.mxu0 0
    %213 = vmatprep.subr.bf16.mxu0 0
    %214 = vmatpush1.bf16.msra.mxu0 0
    %215 = vmatprep.mubr.bf16.mxu0 0
    %216 = vmatmul.mubr.bf16.gmra.mrb[0].mxu0 %v159
    %v217 = vpop.f32.mrb[0].mxu0
    %v218 = vadd.f32 %v140, %v217
    %v219 = vpop.f32.mrb[0].mxu0
    %v220 = vadd.f32 %v144, %v219
    %v221 = vpop.f32.mrb[0].mxu0
    %v222 = vadd.f32 %v140, %v221
    %v223 = vpop.f32.mrb[0].mxu0
    %v224 = vadd.f32 %v144, %v223
    %225 = vmatprep.mubr.bf16.mxu0 0
    %226 = vmatmul.mubr.bf16.gmra.mrb[0].mxu0 %v162
    %v227 = vpop.f32.mrb[0].mxu0
    %v228 = vadd.f32 %v140, %v227
    %v229 = vpop.f32.mrb[0].mxu0
    %v230 = vadd.f32 %v144, %v229
    %v231 = vpop.f32.mrb[0].mxu0
    %v232 = vadd.f32 %v140, %v231
    %v233 = vpop.f32.mrb[0].mxu0
    %v234 = vadd.f32 %v144, %v233
    %235 = vmatprep.mubr.bf16.mxu0 0
    %236 = vmatmul.mubr.bf16.gmra.mrb[0].mxu0 %v165
    %v237 = vpop.f32.mrb[0].mxu0
    %v238 = vadd.f32 %v140, %v237
    %v239 = vpop.f32.mrb[0].mxu0
    %v240 = vadd.f32 %v144, %v239
    %v241 = vpop.f32.mrb[0].mxu0
    %v242 = vadd.f32 %v140, %v241
    %v243 = vpop.f32.mrb[0].mxu0
    %v244 = vadd.f32 %v144, %v243
    %245 = vmatprep.mubr.bf16.mxu0 0
    %246 = vmatmul.mubr.bf16.gmra.mrb[0].mxu0 %v168
    %v247 = vpop.f32.mrb[0].mxu0
    %v248 = vadd.f32 %v140, %v247
    %v249 = vpop.f32.mrb[0].mxu0
    %v250 = vadd.f32 %v144, %v249
    %v251 = vpop.f32.mrb[0].mxu0
    %v252 = vadd.f32 %v140, %v251
    %v253 = vpop.f32.mrb[0].mxu0
    %v254 = vadd.f32 %v144, %v253
    %255 = vdwg.mxu0
    %256 = vmatprep.subr.bf16.mxu0 %v181
    %257 = vmatpush1.bf16.msra.mxu0 %v178
    %258 = vmatprep.subr.bf16.mxu0 0
    %259 = vmatpush1.bf16.msra.mxu0 0
    %260 = vmatprep.subr.bf16.mxu0 0
    %261 = vmatpush1.bf16.msra.mxu0 0
    %262 = vmatprep.subr.bf16.mxu0 0
    %263 = vmatpush1.bf16.msra.mxu0 0
    %264 = vmatprep.subr.bf16.mxu0 0
    %265 = vmatpush1.bf16.msra.mxu0 0
    %266 = vmatprep.subr.bf16.mxu0 0
    %267 = vmatpush1.bf16.msra.mxu0 0
    %268 = vmatprep.subr.bf16.mxu0 0
    %269 = vmatpush1.bf16.msra.mxu0 0
    %270 = vmatprep.subr.bf16.mxu0 0
    %271 = vmatpush1.bf16.msra.mxu0 0
    %272 = vmatprep.subr.bf16.mxu0 0
    %273 = vmatpush1.bf16.msra.mxu0 0
    %274 = vmatprep.subr.bf16.mxu0 0
    %275 = vmatpush1.bf16.msra.mxu0 0
    %276 = vmatprep.subr.bf16.mxu0 0
    %277 = vmatpush1.bf16.msra.mxu0 0
    %278 = vmatprep.subr.bf16.mxu0 0
    %279 = vmatpush1.bf16.msra.mxu0 0
    %280 = vmatprep.subr.bf16.mxu0 0
    %281 = vmatpush1.bf16.msra.mxu0 0
    %282 = vmatprep.subr.bf16.mxu0 0
    %283 = vmatpush1.bf16.msra.mxu0 0
    %284 = vmatprep.subr.bf16.mxu0 0
    %285 = vmatpush1.bf16.msra.mxu0 0
    %286 = vmatprep.subr.bf16.mxu0 0
    %287 = vmatpush1.bf16.msra.mxu0 0
    %288 = vmatprep.mubr.bf16.mxu0 0
    %289 = vmatmul.mubr.bf16.gmra.mrb[0].mxu0 %v159
    %v290 = vpop.f32.mrb[0].mxu0
    %v291 = vadd.f32 %v148, %v290
    %v292 = vpop.f32.mrb[0].mxu0
    %v293 = vadd.f32 %v152, %v292
    %v294 = vpop.f32.mrb[0].mxu0
    %v295 = vadd.f32 %v148, %v294
    %v296 = vpop.f32.mrb[0].mxu0
    %v297 = vadd.f32 %v152, %v296
    %298 = vmatprep.mubr.bf16.mxu0 0
    %299 = vmatmul.mubr.bf16.gmra.mrb[0].mxu0 %v162
    %v300 = vpop.f32.mrb[0].mxu0
    %v301 = vadd.f32 %v148, %v300
    %v302 = vpop.f32.mrb[0].mxu0
    %v303 = vadd.f32 %v152, %v302
    %v304 = vpop.f32.mrb[0].mxu0
    %v305 = vadd.f32 %v148, %v304
    %v306 = vpop.f32.mrb[0].mxu0
    %v307 = vadd.f32 %v152, %v306
    %308 = vmatprep.mubr.bf16.mxu0 0
    %309 = vmatmul.mubr.bf16.gmra.mrb[0].mxu0 %v165
    %v310 = vpop.f32.mrb[0].mxu0
    %v311 = vadd.f32 %v148, %v310
    %v312 = vpop.f32.mrb[0].mxu0
    %v313 = vadd.f32 %v152, %v312
    %v314 = vpop.f32.mrb[0].mxu0
    %v315 = vadd.f32 %v148, %v314
    %v316 = vpop.f32.mrb[0].mxu0
    %v317 = vadd.f32 %v152, %v316
    %318 = vmatprep.mubr.bf16.mxu0 0
    %319 = vmatmul.mubr.bf16.gmra.mrb[0].mxu0 %v168
    %v320 = vpop.f32.mrb[0].mxu0
    %v321 = vadd.f32 %v148, %v320
    %v322 = vpop.f32.mrb[0].mxu0
    %v323 = vadd.f32 %v152, %v322
    %v324 = vpop.f32.mrb[0].mxu0
    %v325 = vadd.f32 %v148, %v324
    %v326 = vpop.f32.mrb[0].mxu0
    %v327 = vadd.f32 %v152, %v326
    %328 = vdwg.mxu0
    %v329 = vld [vmem:[#allocation8] sm:$0xff]
    %v330 = vld [vmem:[#allocation8 + $0x8] sm:$0xff]
    %v331 = vld [vmem:[#allocation8 + $0x10] sm:$0xff]
    %v332 = vld [vmem:[#allocation8 + $0x18] sm:$0xff]
    %v333 = vpack.c.bf16 %v329, %v329
    %v334 = vpack.c.bf16 %v330, %v330
    %v335 = vpack.c.bf16 %v331, %v331
    %v336 = vpack.c.bf16 %v332, %v332
    %v337 = vld [vmem:[%s7] sm:$0xf]
    %v339 = vlaneseq
    %v340 = vshrl.u32 %v339, 7
    %v341 = vsub.s32 0, %v340
    %v342 = vrot.slane %v337, %v341
    %v343 = vlaneseq
    %v344 = vshrl.u32 %v343, 7
    %v345 = vsub.s32 1, %v344
    %v346 = vrot.slane %v337, %v345
    %v347 = vlaneseq
    %v348 = vshrl.u32 %v347, 7
    %v349 = vsub.s32 2, %v348
    %v350 = vrot.slane %v337, %v349
    %v351 = vlaneseq
    %v352 = vshrl.u32 %v351, 7
    %v353 = vsub.s32 3, %v352
    %v354 = vrot.slane %v337, %v353
    %v360 = vsel %vm170, %v333, 0
    %v363 = vsel %vm170, %v334, 0
    %v366 = vsel %vm170, %v335, 0
    %v369 = vsel %vm170, %v336, 0
    %371 = vmatprep.subr.bf16.mxu0 %v363
    %372 = vmatpush1.bf16.msra.mxu0 %v360
    %373 = vmatprep.subr.bf16.mxu0 0
    %374 = vmatpush1.bf16.msra.mxu0 0
    %375 = vmatprep.subr.bf16.mxu0 0
    %376 = vmatpush1.bf16.msra.mxu0 0
    %377 = vmatprep.subr.bf16.mxu0 0
    %378 = vmatpush1.bf16.msra.mxu0 0
    %379 = vmatprep.subr.bf16.mxu0 0
    %380 = vmatpush1.bf16.msra.mxu0 0
    %381 = vmatprep.subr.bf16.mxu0 0
    %382 = vmatpush1.bf16.msra.mxu0 0
    %383 = vmatprep.subr.bf16.mxu0 0
    %384 = vmatpush1.bf16.msra.mxu0 0
    %385 = vmatprep.subr.bf16.mxu0 0
    %386 = vmatpush1.bf16.msra.mxu0 0
    %387 = vmatprep.subr.bf16.mxu0 0
    %388 = vmatpush1.bf16.msra.mxu0 0
    %389 = vmatprep.subr.bf16.mxu0 0
    %390 = vmatpush1.bf16.msra.mxu0 0
    %391 = vmatprep.subr.bf16.mxu0 0
    %392 = vmatpush1.bf16.msra.mxu0 0
    %393 = vmatprep.subr.bf16.mxu0 0
    %394 = vmatpush1.bf16.msra.mxu0 0
    %395 = vmatprep.subr.bf16.mxu0 0
    %396 = vmatpush1.bf16.msra.mxu0 0
    %397 = vmatprep.subr.bf16.mxu0 0
    %398 = vmatpush1.bf16.msra.mxu0 0
    %399 = vmatprep.subr.bf16.mxu0 0
    %400 = vmatpush1.bf16.msra.mxu0 0
    %401 = vmatprep.subr.bf16.mxu0 0
    %402 = vmatpush1.bf16.msra.mxu0 0
    %403 = vmatprep.mubr.bf16.mxu0 0
    %404 = vmatmul.mubr.bf16.gmra.mrb[0].mxu0 %v159
    %v405 = vpop.f32.mrb[0].mxu0
    %v406 = vadd.f32 %v342, %v405
    %v407 = vpop.f32.mrb[0].mxu0
    %v408 = vadd.f32 %v346, %v407
    %v409 = vpop.f32.mrb[0].mxu0
    %v410 = vadd.f32 %v342, %v409
    %v411 = vpop.f32.mrb[0].mxu0
    %v412 = vadd.f32 %v346, %v411
    %413 = vmatprep.mubr.bf16.mxu0 0
    %414 = vmatmul.mubr.bf16.gmra.mrb[0].mxu0 %v162
    %v415 = vpop.f32.mrb[0].mxu0
    %v416 = vadd.f32 %v342, %v415
    %v417 = vpop.f32.mrb[0].mxu0
    %v418 = vadd.f32 %v346, %v417
    %v419 = vpop.f32.mrb[0].mxu0
    %v420 = vadd.f32 %v342, %v419
    %v421 = vpop.f32.mrb[0].mxu0
    %v422 = vadd.f32 %v346, %v421
    %423 = vmatprep.mubr.bf16.mxu0 0
    %424 = vmatmul.mubr.bf16.gmra.mrb[0].mxu0 %v165
    %v425 = vpop.f32.mrb[0].mxu0
    %v426 = vadd.f32 %v342, %v425
    %v427 = vpop.f32.mrb[0].mxu0
    %v428 = vadd.f32 %v346, %v427
    %v429 = vpop.f32.mrb[0].mxu0
    %v430 = vadd.f32 %v342, %v429
    %v431 = vpop.f32.mrb[0].mxu0
    %v432 = vadd.f32 %v346, %v431
    %433 = vmatprep.mubr.bf16.mxu0 0
    %434 = vmatmul.mubr.bf16.gmra.mrb[0].mxu0 %v168
    %v435 = vpop.f32.mrb[0].mxu0
    %v436 = vadd.f32 %v342, %v435
    %v437 = vpop.f32.mrb[0].mxu0
    %v438 = vadd.f32 %v346, %v437
    %v439 = vpop.f32.mrb[0].mxu0
    %v440 = vadd.f32 %v342, %v439
    %v441 = vpop.f32.mrb[0].mxu0
    %v442 = vadd.f32 %v346, %v441
    %443 = vdwg.mxu0
    %444 = vmatprep.subr.bf16.mxu0 %v369
    %445 = vmatpush1.bf16.msra.mxu0 %v366
    %446 = vmatprep.subr.bf16.mxu0 0
    %447 = vmatpush1.bf16.msra.mxu0 0
    %448 = vmatprep.subr.bf16.mxu0 0
    %449 = vmatpush1.bf16.msra.mxu0 0
    %450 = vmatprep.subr.bf16.mxu0 0
    %451 = vmatpush1.bf16.msra.mxu0 0
    %452 = vmatprep.subr.bf16.mxu0 0
    %453 = vmatpush1.bf16.msra.mxu0 0
    %454 = vmatprep.subr.bf16.mxu0 0
    %455 = vmatpush1.bf16.msra.mxu0 0
    %456 = vmatprep.subr.bf16.mxu0 0
    %457 = vmatpush1.bf16.msra.mxu0 0
    %458 = vmatprep.subr.bf16.mxu0 0
    %459 = vmatpush1.bf16.msra.mxu0 0
    %460 = vmatprep.subr.bf16.mxu0 0
    %461 = vmatpush1.bf16.msra.mxu0 0
    %462 = vmatprep.subr.bf16.mxu0 0
    %463 = vmatpush1.bf16.msra.mxu0 0
    %464 = vmatprep.subr.bf16.mxu0 0
    %465 = vmatpush1.bf16.msra.mxu0 0
    %466 = vmatprep.subr.bf16.mxu0 0
    %467 = vmatpush1.bf16.msra.mxu0 0
    %468 = vmatprep.subr.bf16.mxu0 0
    %469 = vmatpush1.bf16.msra.mxu0 0
    %470 = vmatprep.subr.bf16.mxu0 0
    %471 = vmatpush1.bf16.msra.mxu0 0
    %472 = vmatprep.subr.bf16.mxu0 0
    %473 = vmatpush1.bf16.msra.mxu0 0
    %474 = vmatprep.subr.bf16.mxu0 0
    %475 = vmatpush1.bf16.msra.mxu0 0
    %476 = vmatprep.mubr.bf16.mxu0 0
    %477 = vmatmul.mubr.bf16.gmra.mrb[0].mxu0 %v159
    %v478 = vpop.f32.mrb[0].mxu0
    %v479 = vadd.f32 %v350, %v478
    %v480 = vpop.f32.mrb[0].mxu0
    %v481 = vadd.f32 %v354, %v480
    %v482 = vpop.f32.mrb[0].mxu0
    %v483 = vadd.f32 %v350, %v482
    %v484 = vpop.f32.mrb[0].mxu0
    %v485 = vadd.f32 %v354, %v484
    %486 = vmatprep.mubr.bf16.mxu0 0
    %487 = vmatmul.mubr.bf16.gmra.mrb[0].mxu0 %v162
    %v488 = vpop.f32.mrb[0].mxu0
    %v489 = vadd.f32 %v350, %v488
    %v490 = vpop.f32.mrb[0].mxu0
    %v491 = vadd.f32 %v354, %v490
    %v492 = vpop.f32.mrb[0].mxu0
    %v493 = vadd.f32 %v350, %v492
    %v494 = vpop.f32.mrb[0].mxu0
    %v495 = vadd.f32 %v354, %v494
    %496 = vmatprep.mubr.bf16.mxu0 0
    %497 = vmatmul.mubr.bf16.gmra.mrb[0].mxu0 %v165
    %v498 = vpop.f32.mrb[0].mxu0
    %v499 = vadd.f32 %v350, %v498
    %v500 = vpop.f32.mrb[0].mxu0
    %v501 = vadd.f32 %v354, %v500
    %v502 = vpop.f32.mrb[0].mxu0
    %v503 = vadd.f32 %v350, %v502
    %v504 = vpop.f32.mrb[0].mxu0
    %v505 = vadd.f32 %v354, %v504
    %506 = vmatprep.mubr.bf16.mxu0 0
    %507 = vmatmul.mubr.bf16.gmra.mrb[0].mxu0 %v168
    %v508 = vpop.f32.mrb[0].mxu0
    %v509 = vadd.f32 %v350, %v508
    %v510 = vpop.f32.mrb[0].mxu0
    %v511 = vadd.f32 %v354, %v510
    %v512 = vpop.f32.mrb[0].mxu0
    %v513 = vadd.f32 %v350, %v512
    %v514 = vpop.f32.mrb[0].mxu0
    %v515 = vadd.f32 %v354, %v514
    %516 = vdwg.mxu0
    %v517 = vld [vmem:[#allocation7] sm:$0xff]
    %v518 = vld [vmem:[#allocation7 + $0x8] sm:$0xff]
    %v519 = vld [vmem:[#allocation7 + $0x10] sm:$0xff]
    %v520 = vld [vmem:[#allocation7 + $0x18] sm:$0xff]
    %v521 = vld [vmem:[#allocation7 + $0x20] sm:$0xff]
    %v522 = vld [vmem:[#allocation7 + $0x28] sm:$0xff]
    %v523 = vld [vmem:[#allocation7 + $0x30] sm:$0xff]
    %v524 = vld [vmem:[#allocation7 + $0x38] sm:$0xff]
    %v525 = vld [vmem:[#allocation7 + $0x40] sm:$0xff]
    %v526 = vld [vmem:[#allocation7 + $0x48] sm:$0xff]
    %v527 = vld [vmem:[#allocation7 + $0x50] sm:$0xff]
    %v528 = vld [vmem:[#allocation7 + $0x58] sm:$0xff]
    %v529 = vld [vmem:[#allocation7 + $0x60] sm:$0xff]
    %v530 = vld [vmem:[#allocation7 + $0x68] sm:$0xff]
    %v531 = vld [vmem:[#allocation7 + $0x70] sm:$0xff]
    %v532 = vld [vmem:[#allocation7 + $0x78] sm:$0xff]
    %v533 = vld [vmem:[#allocation7 + $0x80] sm:$0xff]
    %v534 = vld [vmem:[#allocation7 + $0x88] sm:$0xff]
    %v535 = vld [vmem:[#allocation7 + $0x90] sm:$0xff]
    %v536 = vld [vmem:[#allocation7 + $0x98] sm:$0xff]
    %v537 = vld [vmem:[#allocation7 + $0xa0] sm:$0xff]
    %v538 = vld [vmem:[#allocation7 + $0xa8] sm:$0xff]
    %v539 = vld [vmem:[#allocation7 + $0xb0] sm:$0xff]
    %v540 = vld [vmem:[#allocation7 + $0xb8] sm:$0xff]
    %v541 = vld [vmem:[#allocation7 + $0xc0] sm:$0xff]
    %v542 = vld [vmem:[#allocation7 + $0xc8] sm:$0xff]
    %v543 = vld [vmem:[#allocation7 + $0xd0] sm:$0xff]
    %v544 = vld [vmem:[#allocation7 + $0xd8] sm:$0xff]
    %v545 = vld [vmem:[#allocation7 + $0xe0] sm:$0xff]
    %v546 = vld [vmem:[#allocation7 + $0xe8] sm:$0xff]
    %v547 = vld [vmem:[#allocation7 + $0xf0] sm:$0xff]
    %v548 = vld [vmem:[#allocation7 + $0xf8] sm:$0xff]
    %v549 = vld [vmem:[#allocation7 + $0x100] sm:$0xff]
    %v550 = vld [vmem:[#allocation7 + $0x108] sm:$0xff]
    %v551 = vld [vmem:[#allocation7 + $0x110] sm:$0xff]
    %v552 = vld [vmem:[#allocation7 + $0x118] sm:$0xff]
    %v553 = vld [vmem:[#allocation7 + $0x120] sm:$0xff]
    %v554 = vld [vmem:[#allocation7 + $0x128] sm:$0xff]
    %v555 = vld [vmem:[#allocation7 + $0x130] sm:$0xff]
    %v556 = vld [vmem:[#allocation7 + $0x138] sm:$0xff]
    %v557 = vld [vmem:[#allocation7 + $0x140] sm:$0xff]
    %v558 = vld [vmem:[#allocation7 + $0x148] sm:$0xff]
    %v559 = vld [vmem:[#allocation7 + $0x150] sm:$0xff]
    %v560 = vld [vmem:[#allocation7 + $0x158] sm:$0xff]
    %v561 = vld [vmem:[#allocation7 + $0x160] sm:$0xff]
    %v562 = vld [vmem:[#allocation7 + $0x168] sm:$0xff]
    %v563 = vld [vmem:[#allocation7 + $0x170] sm:$0xff]
    %v564 = vld [vmem:[#allocation7 + $0x178] sm:$0xff]
    %v565 = vld [vmem:[#allocation7 + $0x180] sm:$0xff]
    %v566 = vld [vmem:[#allocation7 + $0x188] sm:$0xff]
    %v567 = vld [vmem:[#allocation7 + $0x190] sm:$0xff]
    %v568 = vld [vmem:[#allocation7 + $0x198] sm:$0xff]
    %v569 = vld [vmem:[#allocation7 + $0x1a0] sm:$0xff]
    %v570 = vld [vmem:[#allocation7 + $0x1a8] sm:$0xff]
    %v571 = vld [vmem:[#allocation7 + $0x1b0] sm:$0xff]
    %v572 = vld [vmem:[#allocation7 + $0x1b8] sm:$0xff]
    %v573 = vld [vmem:[#allocation7 + $0x1c0] sm:$0xff]
    %v574 = vld [vmem:[#allocation7 + $0x1c8] sm:$0xff]
    %v575 = vld [vmem:[#allocation7 + $0x1d0] sm:$0xff]
    %v576 = vld [vmem:[#allocation7 + $0x1d8] sm:$0xff]
    %v577 = vld [vmem:[#allocation7 + $0x1e0] sm:$0xff]
    %v578 = vld [vmem:[#allocation7 + $0x1e8] sm:$0xff]
    %v579 = vld [vmem:[#allocation7 + $0x1f0] sm:$0xff]
    %v580 = vld [vmem:[#allocation7 + $0x1f8] sm:$0xff]
    %v581 = vld [vmem:[#allocation10] sm:$0xff]
    %v582 = vld [vmem:[#allocation10 + $0x8] sm:$0xff]
    %v583 = vld [vmem:[#allocation10 + $0x10] sm:$0xff]
    %v584 = vld [vmem:[#allocation10 + $0x18] sm:$0xff]
    %v585 = vld [vmem:[#allocation10 + $0x20] sm:$0xff]
    %v586 = vld [vmem:[#allocation10 + $0x28] sm:$0xff]
    %v587 = vld [vmem:[#allocation10 + $0x30] sm:$0xff]
    %v588 = vld [vmem:[#allocation10 + $0x38] sm:$0xff]
    %v589 = vld [vmem:[#allocation10 + $0x40] sm:$0xff]
    %v590 = vld [vmem:[#allocation10 + $0x48] sm:$0xff]
    %v591 = vld [vmem:[#allocation10 + $0x50] sm:$0xff]
    %v592 = vld [vmem:[#allocation10 + $0x58] sm:$0xff]
    %v593 = vld [vmem:[#allocation10 + $0x60] sm:$0xff]
    %v594 = vld [vmem:[#allocation10 + $0x68] sm:$0xff]
    %v595 = vld [vmem:[#allocation10 + $0x70] sm:$0xff]
    %v596 = vld [vmem:[#allocation10 + $0x78] sm:$0xff]
    %v597 = vld [vmem:[#allocation10 + $0x80] sm:$0xff]
    %v598 = vld [vmem:[#allocation10 + $0x88] sm:$0xff]
    %v599 = vld [vmem:[#allocation10 + $0x90] sm:$0xff]
    %v600 = vld [vmem:[#allocation10 + $0x98] sm:$0xff]
    %v601 = vld [vmem:[#allocation10 + $0xa0] sm:$0xff]
    %v602 = vld [vmem:[#allocation10 + $0xa8] sm:$0xff]
    %v603 = vld [vmem:[#allocation10 + $0xb0] sm:$0xff]
    %v604 = vld [vmem:[#allocation10 + $0xb8] sm:$0xff]
    %v605 = vld [vmem:[#allocation10 + $0xc0] sm:$0xff]
    %v606 = vld [vmem:[#allocation10 + $0xc8] sm:$0xff]
    %v607 = vld [vmem:[#allocation10 + $0xd0] sm:$0xff]
    %v608 = vld [vmem:[#allocation10 + $0xd8] sm:$0xff]
    %v609 = vld [vmem:[#allocation10 + $0xe0] sm:$0xff]
    %v610 = vld [vmem:[#allocation10 + $0xe8] sm:$0xff]
    %v611 = vld [vmem:[#allocation10 + $0xf0] sm:$0xff]
    %v612 = vld [vmem:[#allocation10 + $0xf8] sm:$0xff]
    %v613 = vld [vmem:[#allocation10 + $0x100] sm:$0xff]
    %v614 = vld [vmem:[#allocation10 + $0x108] sm:$0xff]
    %v615 = vld [vmem:[#allocation10 + $0x110] sm:$0xff]
    %v616 = vld [vmem:[#allocation10 + $0x118] sm:$0xff]
    %v617 = vld [vmem:[#allocation10 + $0x120] sm:$0xff]
    %v618 = vld [vmem:[#allocation10 + $0x128] sm:$0xff]
    %v619 = vld [vmem:[#allocation10 + $0x130] sm:$0xff]
    %v620 = vld [vmem:[#allocation10 + $0x138] sm:$0xff]
    %v621 = vld [vmem:[#allocation10 + $0x140] sm:$0xff]
    %v622 = vld [vmem:[#allocation10 + $0x148] sm:$0xff]
    %v623 = vld [vmem:[#allocation10 + $0x150] sm:$0xff]
    %v624 = vld [vmem:[#allocation10 + $0x158] sm:$0xff]
    %v625 = vld [vmem:[#allocation10 + $0x160] sm:$0xff]
    %v626 = vld [vmem:[#allocation10 + $0x168] sm:$0xff]
    %v627 = vld [vmem:[#allocation10 + $0x170] sm:$0xff]
    %v628 = vld [vmem:[#allocation10 + $0x178] sm:$0xff]
    %v629 = vld [vmem:[#allocation10 + $0x180] sm:$0xff]
    %v630 = vld [vmem:[#allocation10 + $0x188] sm:$0xff]
    %v631 = vld [vmem:[#allocation10 + $0x190] sm:$0xff]
    %v632 = vld [vmem:[#allocation10 + $0x198] sm:$0xff]
    %v633 = vld [vmem:[#allocation10 + $0x1a0] sm:$0xff]
    %v634 = vld [vmem:[#allocation10 + $0x1a8] sm:$0xff]
    %v635 = vld [vmem:[#allocation10 + $0x1b0] sm:$0xff]
    %v636 = vld [vmem:[#allocation10 + $0x1b8] sm:$0xff]
    %v637 = vld [vmem:[#allocation10 + $0x1c0] sm:$0xff]
    %v638 = vld [vmem:[#allocation10 + $0x1c8] sm:$0xff]
    %v639 = vld [vmem:[#allocation10 + $0x1d0] sm:$0xff]
    %v640 = vld [vmem:[#allocation10 + $0x1d8] sm:$0xff]
    %v641 = vld [vmem:[#allocation10 + $0x1e0] sm:$0xff]
    %v642 = vld [vmem:[#allocation10 + $0x1e8] sm:$0xff]
    %v643 = vld [vmem:[#allocation10 + $0x1f0] sm:$0xff]
    %v644 = vld [vmem:[#allocation10 + $0x1f8] sm:$0xff]
    %v645 = vld [vmem:[%s1] sm:$0xff]
    %v646 = vpack.c.bf16 %v521, %v517
    %v647 = vpack.c.bf16 %v522, %v518
    %v648 = vpack.c.bf16 %v523, %v519
    %v649 = vpack.c.bf16 %v524, %v520
    %v650 = vpack.c.bf16 %v529, %v525
    %v651 = vpack.c.bf16 %v530, %v526
    %v652 = vpack.c.bf16 %v531, %v527
    %v653 = vpack.c.bf16 %v532, %v528
    %v654 = vpack.c.bf16 %v537, %v533
    %v655 = vpack.c.bf16 %v538, %v534
    %v656 = vpack.c.bf16 %v539, %v535
    %v657 = vpack.c.bf16 %v540, %v536
    %v658 = vpack.c.bf16 %v545, %v541
    %v659 = vpack.c.bf16 %v546, %v542
    %v660 = vpack.c.bf16 %v547, %v543
    %v661 = vpack.c.bf16 %v548, %v544
    %v662 = vpack.c.bf16 %v553, %v549
    %v663 = vpack.c.bf16 %v554, %v550
    %v664 = vpack.c.bf16 %v555, %v551
    %v665 = vpack.c.bf16 %v556, %v552
    %v666 = vpack.c.bf16 %v561, %v557
    %v667 = vpack.c.bf16 %v562, %v558
    %v668 = vpack.c.bf16 %v563, %v559
    %v669 = vpack.c.bf16 %v564, %v560
    %v670 = vpack.c.bf16 %v569, %v565
    %v671 = vpack.c.bf16 %v570, %v566
    %v672 = vpack.c.bf16 %v571, %v567
    %v673 = vpack.c.bf16 %v572, %v568
    %v674 = vpack.c.bf16 %v577, %v573
    %v675 = vpack.c.bf16 %v578, %v574
    %v676 = vpack.c.bf16 %v579, %v575
    %v677 = vpack.c.bf16 %v580, %v576
    %v678 = vpack.c.bf16 %v585, %v581
    %v679 = vpack.c.bf16 %v586, %v582
    %v680 = vpack.c.bf16 %v587, %v583
    %v681 = vpack.c.bf16 %v588, %v584
    %v682 = vpack.c.bf16 %v593, %v589
    %v683 = vpack.c.bf16 %v594, %v590
    %v684 = vpack.c.bf16 %v595, %v591
    %v685 = vpack.c.bf16 %v596, %v592
    %v686 = vpack.c.bf16 %v601, %v597
    %v687 = vpack.c.bf16 %v602, %v598
    %v688 = vpack.c.bf16 %v603, %v599
    %v689 = vpack.c.bf16 %v604, %v600
    %v690 = vpack.c.bf16 %v609, %v605
    %v691 = vpack.c.bf16 %v610, %v606
    %v692 = vpack.c.bf16 %v611, %v607
    %v693 = vpack.c.bf16 %v612, %v608
    %v694 = vpack.c.bf16 %v617, %v613
    %v695 = vpack.c.bf16 %v618, %v614
    %v696 = vpack.c.bf16 %v619, %v615
    %v697 = vpack.c.bf16 %v620, %v616
    %v698 = vpack.c.bf16 %v625, %v621
    %v699 = vpack.c.bf16 %v626, %v622
    %v700 = vpack.c.bf16 %v627, %v623
    %v701 = vpack.c.bf16 %v628, %v624
    %v702 = vpack.c.bf16 %v633, %v629
    %v703 = vpack.c.bf16 %v634, %v630
    %v704 = vpack.c.bf16 %v635, %v631
    %v705 = vpack.c.bf16 %v636, %v632
    %v706 = vpack.c.bf16 %v641, %v637
    %v707 = vpack.c.bf16 %v642, %v638
    %v708 = vpack.c.bf16 %v643, %v639
    %v709 = vpack.c.bf16 %v644, %v640
    %710 = vmatprep.subr.bf16.mxu0 %v647
    %711 = vmatpush1.bf16.msra.mxu0 %v646
    %712 = vmatprep.subr.bf16.mxu0 %v651
    %713 = vmatpush1.bf16.msra.mxu0 %v650
    %714 = vmatprep.subr.bf16.mxu0 %v655
    %715 = vmatpush1.bf16.msra.mxu0 %v654
    %716 = vmatprep.subr.bf16.mxu0 %v659
    %717 = vmatpush1.bf16.msra.mxu0 %v658
    %718 = vmatprep.subr.bf16.mxu0 %v663
    %719 = vmatpush1.bf16.msra.mxu0 %v662
    %720 = vmatprep.subr.bf16.mxu0 %v667
    %721 = vmatpush1.bf16.msra.mxu0 %v666
    %722 = vmatprep.subr.bf16.mxu0 %v671
    %723 = vmatpush1.bf16.msra.mxu0 %v670
    %724 = vmatprep.subr.bf16.mxu0 %v675
    %725 = vmatpush1.bf16.msra.mxu0 %v674
    %726 = vmatprep.subr.bf16.mxu0 0
    %727 = vmatpush1.bf16.msra.mxu0 0
    %728 = vmatprep.subr.bf16.mxu0 0
    %729 = vmatpush1.bf16.msra.mxu0 0
    %730 = vmatprep.subr.bf16.mxu0 0
    %731 = vmatpush1.bf16.msra.mxu0 0
    %732 = vmatprep.subr.bf16.mxu0 0
    %733 = vmatpush1.bf16.msra.mxu0 0
    %734 = vmatprep.subr.bf16.mxu0 0
    %735 = vmatpush1.bf16.msra.mxu0 0
    %736 = vmatprep.subr.bf16.mxu0 0
    %737 = vmatpush1.bf16.msra.mxu0 0
    %738 = vmatprep.subr.bf16.mxu0 0
    %739 = vmatpush1.bf16.msra.mxu0 0
    %740 = vmatprep.subr.bf16.mxu0 0
    %741 = vmatpush1.bf16.msra.mxu0 0
    %742 = vmatprep.mubr.bf16.mxu0 0
    %743 = vmatmul.mubr.bf16.gmra.mrb[0].mxu0 0
    %v744 = vpop.f32.mrb[0].mxu0
    %v745 = vadd.f32 0.0, %v744
    %v746 = vpop.f32.mrb[0].mxu0
    %v747 = vadd.f32 0.0, %v746
    %v748 = vpop.f32.mrb[0].mxu0
    %v749 = vpop.f32.mrb[0].mxu0
    %750 = vdwg.mxu0
    %751 = vmatprep.subr.bf16.mxu0 %v649
    %752 = vmatpush1.bf16.msra.mxu0 %v648
    %753 = vmatprep.subr.bf16.mxu0 %v653
    %754 = vmatpush1.bf16.msra.mxu0 %v652
    %755 = vmatprep.subr.bf16.mxu0 %v657
    %756 = vmatpush1.bf16.msra.mxu0 %v656
    %757 = vmatprep.subr.bf16.mxu0 %v661
    %758 = vmatpush1.bf16.msra.mxu0 %v660
    %759 = vmatprep.subr.bf16.mxu0 %v665
    %760 = vmatpush1.bf16.msra.mxu0 %v664
    %761 = vmatprep.subr.bf16.mxu0 %v669
    %762 = vmatpush1.bf16.msra.mxu0 %v668
    %763 = vmatprep.subr.bf16.mxu0 %v673
    %764 = vmatpush1.bf16.msra.mxu0 %v672
    %765 = vmatprep.subr.bf16.mxu0 %v677
    %766 = vmatpush1.bf16.msra.mxu0 %v676
    %767 = vmatprep.subr.bf16.mxu0 0
    %768 = vmatpush1.bf16.msra.mxu0 0
    %769 = vmatprep.subr.bf16.mxu0 0
    %770 = vmatpush1.bf16.msra.mxu0 0
    %771 = vmatprep.subr.bf16.mxu0 0
    %772 = vmatpush1.bf16.msra.mxu0 0
    %773 = vmatprep.subr.bf16.mxu0 0
    %774 = vmatpush1.bf16.msra.mxu0 0
    %775 = vmatprep.subr.bf16.mxu0 0
    %776 = vmatpush1.bf16.msra.mxu0 0
    %777 = vmatprep.subr.bf16.mxu0 0
    %778 = vmatpush1.bf16.msra.mxu0 0
    %779 = vmatprep.subr.bf16.mxu0 0
    %780 = vmatpush1.bf16.msra.mxu0 0
    %781 = vmatprep.subr.bf16.mxu0 0
    %782 = vmatpush1.bf16.msra.mxu0 0
    %783 = vmatprep.mubr.bf16.mxu0 0
    %784 = vmatmul.mubr.bf16.gmra.mrb[0].mxu0 0
    %v785 = vpop.f32.mrb[0].mxu0
    %v786 = vadd.f32 0.0, %v785
    %v787 = vpop.f32.mrb[0].mxu0
    %v788 = vadd.f32 0.0, %v787
    %v789 = vpop.f32.mrb[0].mxu0
    %v790 = vpop.f32.mrb[0].mxu0
    %791 = vdwg.mxu0
    %792 = vmatprep.subr.bf16.mxu0 %v679
    %793 = vmatpush1.bf16.msra.mxu0 %v678
    %794 = vmatprep.subr.bf16.mxu0 %v683
    %795 = vmatpush1.bf16.msra.mxu0 %v682
    %796 = vmatprep.subr.bf16.mxu0 %v687
    %797 = vmatpush1.bf16.msra.mxu0 %v686
    %798 = vmatprep.subr.bf16.mxu0 %v691
    %799 = vmatpush1.bf16.msra.mxu0 %v690
    %800 = vmatprep.subr.bf16.mxu0 %v695
    %801 = vmatpush1.bf16.msra.mxu0 %v694
    %802 = vmatprep.subr.bf16.mxu0 %v699
    %803 = vmatpush1.bf16.msra.mxu0 %v698
    %804 = vmatprep.subr.bf16.mxu0 %v703
    %805 = vmatpush1.bf16.msra.mxu0 %v702
    %806 = vmatprep.subr.bf16.mxu0 %v707
    %807 = vmatpush1.bf16.msra.mxu0 %v706
    %808 = vmatprep.subr.bf16.mxu0 0
    %809 = vmatpush1.bf16.msra.mxu0 0
    %810 = vmatprep.subr.bf16.mxu0 0
    %811 = vmatpush1.bf16.msra.mxu0 0
    %812 = vmatprep.subr.bf16.mxu0 0
    %813 = vmatpush1.bf16.msra.mxu0 0
    %814 = vmatprep.subr.bf16.mxu0 0
    %815 = vmatpush1.bf16.msra.mxu0 0
    %816 = vmatprep.subr.bf16.mxu0 0
    %817 = vmatpush1.bf16.msra.mxu0 0
    %818 = vmatprep.subr.bf16.mxu0 0
    %819 = vmatpush1.bf16.msra.mxu0 0
    %820 = vmatprep.subr.bf16.mxu0 0
    %821 = vmatpush1.bf16.msra.mxu0 0
    %822 = vmatprep.subr.bf16.mxu0 0
    %823 = vmatpush1.bf16.msra.mxu0 0
    %824 = vmatprep.mubr.bf16.mxu0 0
    %825 = vmatmul.mubr.bf16.gmra.mrb[0].mxu0 0
    %v826 = vpop.f32.mrb[0].mxu0
    %v827 = vadd.f32 0.0, %v826
    %v828 = vpop.f32.mrb[0].mxu0
    %v829 = vadd.f32 0.0, %v828
    %v830 = vpop.f32.mrb[0].mxu0
    %v831 = vpop.f32.mrb[0].mxu0
    %832 = vdwg.mxu0
    %833 = vmatprep.subr.bf16.mxu0 %v681
    %834 = vmatpush1.bf16.msra.mxu0 %v680
    %835 = vmatprep.subr.bf16.mxu0 %v685
    %836 = vmatpush1.bf16.msra.mxu0 %v684
    %837 = vmatprep.subr.bf16.mxu0 %v689
    %838 = vmatpush1.bf16.msra.mxu0 %v688
    %839 = vmatprep.subr.bf16.mxu0 %v693
    %840 = vmatpush1.bf16.msra.mxu0 %v692
    %841 = vmatprep.subr.bf16.mxu0 %v697
    %842 = vmatpush1.bf16.msra.mxu0 %v696
    %843 = vmatprep.subr.bf16.mxu0 %v701
    %844 = vmatpush1.bf16.msra.mxu0 %v700
    %845 = vmatprep.subr.bf16.mxu0 %v705
    %846 = vmatpush1.bf16.msra.mxu0 %v704
    %847 = vmatprep.subr.bf16.mxu0 %v709
    %848 = vmatpush1.bf16.msra.mxu0 %v708
    %849 = vmatprep.subr.bf16.mxu0 0
    %850 = vmatpush1.bf16.msra.mxu0 0
    %851 = vmatprep.subr.bf16.mxu0 0
    %852 = vmatpush1.bf16.msra.mxu0 0
    %853 = vmatprep.subr.bf16.mxu0 0
    %854 = vmatpush1.bf16.msra.mxu0 0
    %855 = vmatprep.subr.bf16.mxu0 0
    %856 = vmatpush1.bf16.msra.mxu0 0
    %857 = vmatprep.subr.bf16.mxu0 0
    %858 = vmatpush1.bf16.msra.mxu0 0
    %859 = vmatprep.subr.bf16.mxu0 0
    %860 = vmatpush1.bf16.msra.mxu0 0
    %861 = vmatprep.subr.bf16.mxu0 0
    %862 = vmatpush1.bf16.msra.mxu0 0
    %863 = vmatprep.subr.bf16.mxu0 0
    %864 = vmatpush1.bf16.msra.mxu0 0
    %865 = vmatprep.mubr.bf16.mxu0 0
    %866 = vmatmul.mubr.bf16.gmra.mrb[0].mxu0 0
    %v867 = vpop.f32.mrb[0].mxu0
    %v868 = vadd.f32 0.0, %v867
    %v869 = vpop.f32.mrb[0].mxu0
    %v870 = vadd.f32 0.0, %v869
    %v871 = vpop.f32.mrb[0].mxu0
    %v872 = vpop.f32.mrb[0].mxu0
    %873 = vdwg.mxu0
    %v874 = vadd.f32 %v218, %v745
    %v875 = vadd.f32 %v220, %v747
    %v876 = vadd.f32 %v291, %v786
    %v877 = vadd.f32 %v293, %v788
    %v878 = vxor.u32 %v874, 2147483648
    %v879 = vmul.f32 %v878, 1.442695
    %v880 = vpow.pop %v879
    %v881 = vadd.f32 %v880, 1.0
    %v882 = vrcp.pop %v881
    %v883 = vmul.f32 1.0, %v882
    %v884 = vxor.u32 %v875, 2147483648
    %v885 = vmul.f32 %v884, 1.442695
    %v886 = vpow.pop %v885
    %v887 = vadd.f32 %v886, 1.0
    %v888 = vrcp.pop %v887
    %v889 = vmul.f32 1.0, %v888
    %v890 = vtanh.pop %v876
    %v891 = vxor.u32 %v877, 2147483648
    %v892 = vmul.f32 %v891, 1.442695
    %v893 = vpow.pop %v892
    %v894 = vadd.f32 %v893, 1.0
    %v895 = vrcp.pop %v894
    %v896 = vmul.f32 1.0, %v895
    %v897 = vmul.f32 %v889, 0.0
    %v898 = vmul.f32 %v883, %v890
    %v899 = vadd.f32 %v897, %v898
    %v900 = vtanh.pop %v899
    %v901 = vmul.f32 %v896, %v900
    %v902 = vadd.f32 %v440, %v827
    %v903 = vadd.f32 %v442, %v829
    %v904 = vadd.f32 %v513, %v868
    %v905 = vadd.f32 %v515, %v870
    %v906 = vxor.u32 %v902, 2147483648
    %v907 = vmul.f32 %v906, 1.442695
    %v908 = vpow.pop %v907
    %v909 = vadd.f32 %v908, 1.0
    %v910 = vrcp.pop %v909
    %v911 = vmul.f32 1.0, %v910
    %v912 = vxor.u32 %v903, 2147483648
    %v913 = vmul.f32 %v912, 1.442695
    %v914 = vpow.pop %v913
    %v915 = vadd.f32 %v914, 1.0
    %v916 = vrcp.pop %v915
    %v917 = vmul.f32 1.0, %v916
    %v918 = vtanh.pop %v904
    %v919 = vxor.u32 %v905, 2147483648
    %v920 = vmul.f32 %v919, 1.442695
    %v921 = vpow.pop %v920
    %v922 = vadd.f32 %v921, 1.0
    %v923 = vrcp.pop %v922
    %v924 = vmul.f32 1.0, %v923
    %v925 = vmul.f32 %v917, 0.0
    %v926 = vmul.f32 %v911, %v918
    %v927 = vadd.f32 %v925, %v926
    %v928 = vtanh.pop %v927
    %v929 = vmul.f32 %v924, %v928
    %vm930 = vcmp.gt.s32.totalorder %v645, 0
    %vm931 = vcmp.gt.s32.totalorder %v645, 7
    %v932 = vsel %vm930, 1, 0
    %933 = vset.pattern.permute.xlu0 0
    %934 = vperm.xlu0 %933, %v932
    %v935 = vpop.permute.xlu0 %934
    %vm936 = vcmp.eq.s32.totalorder %v935, 1
    %v937 = vsel %vm936, %v901, 0.0
    %v938 = vsel %vm936, %v899, 0.0
    %v939 = vsel %vm931, 1, 0
    %940 = vset.pattern.permute.xlu0 0
    %941 = vperm.xlu0 %940, %v939
    %v942 = vpop.permute.xlu0 %941
    %vm943 = vcmp.eq.s32.totalorder %v942, 1
    %v944 = vsel %vm943, %v929, 0.0
    %v945 = vsel %vm943, %v927, 0.0
    %v946 = vpack.c.bf16 %v937, %v937
    %947 = vmatprep.subr.bf16.mxu0 %v647
    %948 = vmatpush1.bf16.msra.mxu0 %v646
    %949 = vmatprep.subr.bf16.mxu0 %v651
    %950 = vmatpush1.bf16.msra.mxu0 %v650
    %951 = vmatprep.subr.bf16.mxu0 %v655
    %952 = vmatpush1.bf16.msra.mxu0 %v654
    %953 = vmatprep.subr.bf16.mxu0 %v659
    %954 = vmatpush1.bf16.msra.mxu0 %v658
    %955 = vmatprep.subr.bf16.mxu0 %v663
    %956 = vmatpush1.bf16.msra.mxu0 %v662
    %957 = vmatprep.subr.bf16.mxu0 %v667
    %958 = vmatpush1.bf16.msra.mxu0 %v666
    %959 = vmatprep.subr.bf16.mxu0 %v671
    %960 = vmatpush1.bf16.msra.mxu0 %v670
    %961 = vmatprep.subr.bf16.mxu0 %v675
    %962 = vmatpush1.bf16.msra.mxu0 %v674
    %963 = vmatprep.subr.bf16.mxu0 0
    %964 = vmatpush1.bf16.msra.mxu0 0
    %965 = vmatprep.subr.bf16.mxu0 0
    %966 = vmatpush1.bf16.msra.mxu0 0
    %967 = vmatprep.subr.bf16.mxu0 0
    %968 = vmatpush1.bf16.msra.mxu0 0
    %969 = vmatprep.subr.bf16.mxu0 0
    %970 = vmatpush1.bf16.msra.mxu0 0
    %971 = vmatprep.subr.bf16.mxu0 0
    %972 = vmatpush1.bf16.msra.mxu0 0
    %973 = vmatprep.subr.bf16.mxu0 0
    %974 = vmatpush1.bf16.msra.mxu0 0
    %975 = vmatprep.subr.bf16.mxu0 0
    %976 = vmatpush1.bf16.msra.mxu0 0
    %977 = vmatprep.subr.bf16.mxu0 0
    %978 = vmatpush1.bf16.msra.mxu0 0
    %979 = vmatprep.mubr.bf16.mxu0 0
    %980 = vmatmul.mubr.bf16.gmra.mrb[0].mxu0 %v946
    %v981 = vpop.f32.mrb[0].mxu0
    %v982 = vadd.f32 0.0, %v981
    %v983 = vpop.f32.mrb[0].mxu0
    %v984 = vadd.f32 0.0, %v983
    %v985 = vpop.f32.mrb[0].mxu0
    %v986 = vpop.f32.mrb[0].mxu0
    %987 = vdwg.mxu0
    %988 = vmatprep.subr.bf16.mxu0 %v649
    %989 = vmatpush1.bf16.msra.mxu0 %v648
    %990 = vmatprep.subr.bf16.mxu0 %v653
    %991 = vmatpush1.bf16.msra.mxu0 %v652
    %992 = vmatprep.subr.bf16.mxu0 %v657
    %993 = vmatpush1.bf16.msra.mxu0 %v656
    %994 = vmatprep.subr.bf16.mxu0 %v661
    %995 = vmatpush1.bf16.msra.mxu0 %v660
    %996 = vmatprep.subr.bf16.mxu0 %v665
    %997 = vmatpush1.bf16.msra.mxu0 %v664
    %998 = vmatprep.subr.bf16.mxu0 %v669
    %999 = vmatpush1.bf16.msra.mxu0 %v668
    %1000 = vmatprep.subr.bf16.mxu0 %v673
    %1001 = vmatpush1.bf16.msra.mxu0 %v672
    %1002 = vmatprep.subr.bf16.mxu0 %v677
    %1003 = vmatpush1.bf16.msra.mxu0 %v676
    %1004 = vmatprep.subr.bf16.mxu0 0
    %1005 = vmatpush1.bf16.msra.mxu0 0
    %1006 = vmatprep.subr.bf16.mxu0 0
    %1007 = vmatpush1.bf16.msra.mxu0 0
    %1008 = vmatprep.subr.bf16.mxu0 0
    %1009 = vmatpush1.bf16.msra.mxu0 0
    %1010 = vmatprep.subr.bf16.mxu0 0
    %1011 = vmatpush1.bf16.msra.mxu0 0
    %1012 = vmatprep.subr.bf16.mxu0 0
    %1013 = vmatpush1.bf16.msra.mxu0 0
    %1014 = vmatprep.subr.bf16.mxu0 0
    %1015 = vmatpush1.bf16.msra.mxu0 0
    %1016 = vmatprep.subr.bf16.mxu0 0
    %1017 = vmatpush1.bf16.msra.mxu0 0
    %1018 = vmatprep.subr.bf16.mxu0 0
    %1019 = vmatpush1.bf16.msra.mxu0 0
    %1020 = vmatprep.mubr.bf16.mxu0 0
    %1021 = vmatmul.mubr.bf16.gmra.mrb[0].mxu0 %v946
    %v1022 = vpop.f32.mrb[0].mxu0
    %v1023 = vadd.f32 0.0, %v1022
    %v1024 = vpop.f32.mrb[0].mxu0
    %v1025 = vadd.f32 0.0, %v1024
    %v1026 = vpop.f32.mrb[0].mxu0
    %v1027 = vpop.f32.mrb[0].mxu0
    %1028 = vdwg.mxu0
    %v1029 = vpack.c.bf16 %v944, %v944
    %1030 = vmatprep.subr.bf16.mxu0 %v679
    %1031 = vmatpush1.bf16.msra.mxu0 %v678
    %1032 = vmatprep.subr.bf16.mxu0 %v683
    %1033 = vmatpush1.bf16.msra.mxu0 %v682
    %1034 = vmatprep.subr.bf16.mxu0 %v687
    %1035 = vmatpush1.bf16.msra.mxu0 %v686
    %1036 = vmatprep.subr.bf16.mxu0 %v691
    %1037 = vmatpush1.bf16.msra.mxu0 %v690
    %1038 = vmatprep.subr.bf16.mxu0 %v695
    %1039 = vmatpush1.bf16.msra.mxu0 %v694
    %1040 = vmatprep.subr.bf16.mxu0 %v699
    %1041 = vmatpush1.bf16.msra.mxu0 %v698
    %1042 = vmatprep.subr.bf16.mxu0 %v703
    %1043 = vmatpush1.bf16.msra.mxu0 %v702
    %1044 = vmatprep.subr.bf16.mxu0 %v707
    %1045 = vmatpush1.bf16.msra.mxu0 %v706
    %1046 = vmatprep.subr.bf16.mxu0 0
    %1047 = vmatpush1.bf16.msra.mxu0 0
    %1048 = vmatprep.subr.bf16.mxu0 0
    %1049 = vmatpush1.bf16.msra.mxu0 0
    %1050 = vmatprep.subr.bf16.mxu0 0
    %1051 = vmatpush1.bf16.msra.mxu0 0
    %1052 = vmatprep.subr.bf16.mxu0 0
    %1053 = vmatpush1.bf16.msra.mxu0 0
    %1054 = vmatprep.subr.bf16.mxu0 0
    %1055 = vmatpush1.bf16.msra.mxu0 0
    %1056 = vmatprep.subr.bf16.mxu0 0
    %1057 = vmatpush1.bf16.msra.mxu0 0
    %1058 = vmatprep.subr.bf16.mxu0 0
    %1059 = vmatpush1.bf16.msra.mxu0 0
    %1060 = vmatprep.subr.bf16.mxu0 0
    %1061 = vmatpush1.bf16.msra.mxu0 0
    %1062 = vmatprep.mubr.bf16.mxu0 0
    %1063 = vmatmul.mubr.bf16.gmra.mrb[0].mxu0 %v1029
    %v1064 = vpop.f32.mrb[0].mxu0
    %v1065 = vadd.f32 0.0, %v1064
    %v1066 = vpop.f32.mrb[0].mxu0
    %v1067 = vadd.f32 0.0, %v1066
    %v1068 = vpop.f32.mrb[0].mxu0
    %v1069 = vpop.f32.mrb[0].mxu0
    %1070 = vdwg.mxu0
    %1071 = vmatprep.subr.bf16.mxu0 %v681
    %1072 = vmatpush1.bf16.msra.mxu0 %v680
    %1073 = vmatprep.subr.bf16.mxu0 %v685
    %1074 = vmatpush1.bf16.msra.mxu0 %v684
    %1075 = vmatprep.subr.bf16.mxu0 %v689
    %1076 = vmatpush1.bf16.msra.mxu0 %v688
    %1077 = vmatprep.subr.bf16.mxu0 %v693
    %1078 = vmatpush1.bf16.msra.mxu0 %v692
    %1079 = vmatprep.subr.bf16.mxu0 %v697
    %1080 = vmatpush1.bf16.msra.mxu0 %v696
    %1081 = vmatprep.subr.bf16.mxu0 %v701
    %1082 = vmatpush1.bf16.msra.mxu0 %v700
    %1083 = vmatprep.subr.bf16.mxu0 %v705
    %1084 = vmatpush1.bf16.msra.mxu0 %v704
    %1085 = vmatprep.subr.bf16.mxu0 %v709
    %1086 = vmatpush1.bf16.msra.mxu0 %v708
    %1087 = vmatprep.subr.bf16.mxu0 0
    %1088 = vmatpush1.bf16.msra.mxu0 0
    %1089 = vmatprep.subr.bf16.mxu0 0
    %1090 = vmatpush1.bf16.msra.mxu0 0
    %1091 = vmatprep.subr.bf16.mxu0 0
    %1092 = vmatpush1.bf16.msra.mxu0 0
    %1093 = vmatprep.subr.bf16.mxu0 0
    %1094 = vmatpush1.bf16.msra.mxu0 0
    %1095 = vmatprep.subr.bf16.mxu0 0
    %1096 = vmatpush1.bf16.msra.mxu0 0
    %1097 = vmatprep.subr.bf16.mxu0 0
    %1098 = vmatpush1.bf16.msra.mxu0 0
    %1099 = vmatprep.subr.bf16.mxu0 0
    %1100 = vmatpush1.bf16.msra.mxu0 0
    %1101 = vmatprep.subr.bf16.mxu0 0
    %1102 = vmatpush1.bf16.msra.mxu0 0
    %1103 = vmatprep.mubr.bf16.mxu0 0
    %1104 = vmatmul.mubr.bf16.gmra.mrb[0].mxu0 %v1029
    %v1105 = vpop.f32.mrb[0].mxu0
    %v1106 = vadd.f32 0.0, %v1105
    %v1107 = vpop.f32.mrb[0].mxu0
    %v1108 = vadd.f32 0.0, %v1107
    %v1109 = vpop.f32.mrb[0].mxu0
    %v1110 = vpop.f32.mrb[0].mxu0
    %1111 = vdwg.mxu0
    %v1112 = vadd.f32 %v222, %v982
    %v1113 = vadd.f32 %v224, %v984
    %v1114 = vadd.f32 %v295, %v1023
    %v1115 = vadd.f32 %v297, %v1025
    %v1116 = vxor.u32 %v1112, 2147483648
    %v1117 = vmul.f32 %v1116, 1.442695
    %v1118 = vpow.pop %v1117
    %v1119 = vadd.f32 %v1118, 1.0
    %v1120 = vrcp.pop %v1119
    %v1121 = vmul.f32 1.0, %v1120
    %v1122 = vxor.u32 %v1113, 2147483648
    %v1123 = vmul.f32 %v1122, 1.442695
    %v1124 = vpow.pop %v1123
    %v1125 = vadd.f32 %v1124, 1.0
    %v1126 = vrcp.pop %v1125
    %v1127 = vmul.f32 1.0, %v1126
    %v1128 = vtanh.pop %v1114
    %v1129 = vxor.u32 %v1115, 2147483648
    %v1130 = vmul.f32 %v1129, 1.442695
    %v1131 = vpow.pop %v1130
    %v1132 = vadd.f32 %v1131, 1.0
    %v1133 = vrcp.pop %v1132
    %v1134 = vmul.f32 1.0, %v1133
    %v1135 = vmul.f32 %v1127, %v938
    %v1136 = vmul.f32 %v1121, %v1128
    %v1137 = vadd.f32 %v1135, %v1136
    %v1138 = vtanh.pop %v1137
    %v1139 = vmul.f32 %v1134, %v1138
    %v1140 = vadd.f32 %v436, %v1065
    %v1141 = vadd.f32 %v438, %v1067
    %v1142 = vadd.f32 %v509, %v1106
    %v1143 = vadd.f32 %v511, %v1108
    %v1144 = vxor.u32 %v1140, 2147483648
    %v1145 = vmul.f32 %v1144, 1.442695
    %v1146 = vpow.pop %v1145
    %v1147 = vadd.f32 %v1146, 1.0
    %v1148 = vrcp.pop %v1147
    %v1149 = vmul.f32 1.0, %v1148
    %v1150 = vxor.u32 %v1141, 2147483648
    %v1151 = vmul.f32 %v1150, 1.442695
    %v1152 = vpow.pop %v1151
    %v1153 = vadd.f32 %v1152, 1.0
    %v1154 = vrcp.pop %v1153
    %v1155 = vmul.f32 1.0, %v1154
    %v1156 = vtanh.pop %v1142
    %v1157 = vxor.u32 %v1143, 2147483648
    %v1158 = vmul.f32 %v1157, 1.442695
    %v1159 = vpow.pop %v1158
    %v1160 = vadd.f32 %v1159, 1.0
    %v1161 = vrcp.pop %v1160
    %v1162 = vmul.f32 1.0, %v1161
    %v1163 = vmul.f32 %v1155, %v945
    %v1164 = vmul.f32 %v1149, %v1156
    %v1165 = vadd.f32 %v1163, %v1164
    %v1166 = vtanh.pop %v1165
    %v1167 = vmul.f32 %v1162, %v1166
    %vm1168 = vcmp.gt.s32.totalorder %v645, 1
    %vm1169 = vcmp.gt.s32.totalorder %v645, 6
    %v1170 = vsel %vm1168, 1, 0
    %1171 = vset.pattern.permute.xlu0 0
    %1172 = vperm.xlu0 %1171, %v1170
    %v1173 = vpop.permute.xlu0 %1172
    %vm1174 = vcmp.eq.s32.totalorder %v1173, 1
    %v1175 = vsel %vm1174, %v1139, %v937
    %v1176 = vsel %vm1174, %v1137, %v938
    %v1177 = vsel %vm1169, 1, 0
    %1178 = vset.pattern.permute.xlu0 0
    %1179 = vperm.xlu0 %1178, %v1177
    %v1180 = vpop.permute.xlu0 %1179
    %vm1181 = vcmp.eq.s32.totalorder %v1180, 1
    %v1182 = vsel %vm1181, %v1167, %v944
    %v1183 = vsel %vm1181, %v1165, %v945
    %v1184 = vpack.c.bf16 %v1175, %v1175
    %1185 = vmatprep.subr.bf16.mxu0 %v647
    %1186 = vmatpush1.bf16.msra.mxu0 %v646
    %1187 = vmatprep.subr.bf16.mxu0 %v651
    %1188 = vmatpush1.bf16.msra.mxu0 %v650
    %1189 = vmatprep.subr.bf16.mxu0 %v655
    %1190 = vmatpush1.bf16.msra.mxu0 %v654
    %1191 = vmatprep.subr.bf16.mxu0 %v659
    %1192 = vmatpush1.bf16.msra.mxu0 %v658
    %1193 = vmatprep.subr.bf16.mxu0 %v663
    %1194 = vmatpush1.bf16.msra.mxu0 %v662
    %1195 = vmatprep.subr.bf16.mxu0 %v667
    %1196 = vmatpush1.bf16.msra.mxu0 %v666
    %1197 = vmatprep.subr.bf16.mxu0 %v671
    %1198 = vmatpush1.bf16.msra.mxu0 %v670
    %1199 = vmatprep.subr.bf16.mxu0 %v675
    %1200 = vmatpush1.bf16.msra.mxu0 %v674
    %1201 = vmatprep.subr.bf16.mxu0 0
    %1202 = vmatpush1.bf16.msra.mxu0 0
    %1203 = vmatprep.subr.bf16.mxu0 0
    %1204 = vmatpush1.bf16.msra.mxu0 0
    %1205 = vmatprep.subr.bf16.mxu0 0
    %1206 = vmatpush1.bf16.msra.mxu0 0
    %1207 = vmatprep.subr.bf16.mxu0 0
    %1208 = vmatpush1.bf16.msra.mxu0 0
    %1209 = vmatprep.subr.bf16.mxu0 0
    %1210 = vmatpush1.bf16.msra.mxu0 0
    %1211 = vmatprep.subr.bf16.mxu0 0
    %1212 = vmatpush1.bf16.msra.mxu0 0
    %1213 = vmatprep.subr.bf16.mxu0 0
    %1214 = vmatpush1.bf16.msra.mxu0 0
    %1215 = vmatprep.subr.bf16.mxu0 0
    %1216 = vmatpush1.bf16.msra.mxu0 0
    %1217 = vmatprep.mubr.bf16.mxu0 0
    %1218 = vmatmul.mubr.bf16.gmra.mrb[0].mxu0 %v1184
    %v1219 = vpop.f32.mrb[0].mxu0
    %v1220 = vadd.f32 0.0, %v1219
    %v1221 = vpop.f32.mrb[0].mxu0
    %v1222 = vadd.f32 0.0, %v1221
    %v1223 = vpop.f32.mrb[0].mxu0
    %v1224 = vpop.f32.mrb[0].mxu0
    %1225 = vdwg.mxu0
    %1226 = vmatprep.subr.bf16.mxu0 %v649
    %1227 = vmatpush1.bf16.msra.mxu0 %v648
    %1228 = vmatprep.subr.bf16.mxu0 %v653
    %1229 = vmatpush1.bf16.msra.mxu0 %v652
    %1230 = vmatprep.subr.bf16.mxu0 %v657
    %1231 = vmatpush1.bf16.msra.mxu0 %v656
    %1232 = vmatprep.subr.bf16.mxu0 %v661
    %1233 = vmatpush1.bf16.msra.mxu0 %v660
    %1234 = vmatprep.subr.bf16.mxu0 %v665
    %1235 = vmatpush1.bf16.msra.mxu0 %v664
    %1236 = vmatprep.subr.bf16.mxu0 %v669
    %1237 = vmatpush1.bf16.msra.mxu0 %v668
    %1238 = vmatprep.subr.bf16.mxu0 %v673
    %1239 = vmatpush1.bf16.msra.mxu0 %v672
    %1240 = vmatprep.subr.bf16.mxu0 %v677
    %1241 = vmatpush1.bf16.msra.mxu0 %v676
    %1242 = vmatprep.subr.bf16.mxu0 0
    %1243 = vmatpush1.bf16.msra.mxu0 0
    %1244 = vmatprep.subr.bf16.mxu0 0
    %1245 = vmatpush1.bf16.msra.mxu0 0
    %1246 = vmatprep.subr.bf16.mxu0 0
    %1247 = vmatpush1.bf16.msra.mxu0 0
    %1248 = vmatprep.subr.bf16.mxu0 0
    %1249 = vmatpush1.bf16.msra.mxu0 0
    %1250 = vmatprep.subr.bf16.mxu0 0
    %1251 = vmatpush1.bf16.msra.mxu0 0
    %1252 = vmatprep.subr.bf16.mxu0 0
    %1253 = vmatpush1.bf16.msra.mxu0 0
    %1254 = vmatprep.subr.bf16.mxu0 0
    %1255 = vmatpush1.bf16.msra.mxu0 0
    %1256 = vmatprep.subr.bf16.mxu0 0
    %1257 = vmatpush1.bf16.msra.mxu0 0
    %1258 = vmatprep.mubr.bf16.mxu0 0
    %1259 = vmatmul.mubr.bf16.gmra.mrb[0].mxu0 %v1184
    %v1260 = vpop.f32.mrb[0].mxu0
    %v1261 = vadd.f32 0.0, %v1260
    %v1262 = vpop.f32.mrb[0].mxu0
    %v1263 = vadd.f32 0.0, %v1262
    %v1264 = vpop.f32.mrb[0].mxu0
    %v1265 = vpop.f32.mrb[0].mxu0
    %1266 = vdwg.mxu0
    %v1267 = vpack.c.bf16 %v1182, %v1182
    %1268 = vmatprep.subr.bf16.mxu0 %v679
    %1269 = vmatpush1.bf16.msra.mxu0 %v678
    %1270 = vmatprep.subr.bf16.mxu0 %v683
    %1271 = vmatpush1.bf16.msra.mxu0 %v682
    %1272 = vmatprep.subr.bf16.mxu0 %v687
    %1273 = vmatpush1.bf16.msra.mxu0 %v686
    %1274 = vmatprep.subr.bf16.mxu0 %v691
    %1275 = vmatpush1.bf16.msra.mxu0 %v690
    %1276 = vmatprep.subr.bf16.mxu0 %v695
    %1277 = vmatpush1.bf16.msra.mxu0 %v694
    %1278 = vmatprep.subr.bf16.mxu0 %v699
    %1279 = vmatpush1.bf16.msra.mxu0 %v698
    %1280 = vmatprep.subr.bf16.mxu0 %v703
    %1281 = vmatpush1.bf16.msra.mxu0 %v702
    %1282 = vmatprep.subr.bf16.mxu0 %v707
    %1283 = vmatpush1.bf16.msra.mxu0 %v706
    %1284 = vmatprep.subr.bf16.mxu0 0
    %1285 = vmatpush1.bf16.msra.mxu0 0
    %1286 = vmatprep.subr.bf16.mxu0 0
    %1287 = vmatpush1.bf16.msra.mxu0 0
    %1288 = vmatprep.subr.bf16.mxu0 0
    %1289 = vmatpush1.bf16.msra.mxu0 0
    %1290 = vmatprep.subr.bf16.mxu0 0
    %1291 = vmatpush1.bf16.msra.mxu0 0
    %1292 = vmatprep.subr.bf16.mxu0 0
    %1293 = vmatpush1.bf16.msra.mxu0 0
    %1294 = vmatprep.subr.bf16.mxu0 0
    %1295 = vmatpush1.bf16.msra.mxu0 0
    %1296 = vmatprep.subr.bf16.mxu0 0
    %1297 = vmatpush1.bf16.msra.mxu0 0
    %1298 = vmatprep.subr.bf16.mxu0 0
    %1299 = vmatpush1.bf16.msra.mxu0 0
    %1300 = vmatprep.mubr.bf16.mxu0 0
    %1301 = vmatmul.mubr.bf16.gmra.mrb[0].mxu0 %v1267
    %v1302 = vpop.f32.mrb[0].mxu0
    %v1303 = vadd.f32 0.0, %v1302
    %v1304 = vpop.f32.mrb[0].mxu0
    %v1305 = vadd.f32 0.0, %v1304
    %v1306 = vpop.f32.mrb[0].mxu0
    %v1307 = vpop.f32.mrb[0].mxu0
    %1308 = vdwg.mxu0
    %1309 = vmatprep.subr.bf16.mxu0 %v681
    %1310 = vmatpush1.bf16.msra.mxu0 %v680
    %1311 = vmatprep.subr.bf16.mxu0 %v685
    %1312 = vmatpush1.bf16.msra.mxu0 %v684
    %1313 = vmatprep.subr.bf16.mxu0 %v689
    %1314 = vmatpush1.bf16.msra.mxu0 %v688
    %1315 = vmatprep.subr.bf16.mxu0 %v693
    %1316 = vmatpush1.bf16.msra.mxu0 %v692
    %1317 = vmatprep.subr.bf16.mxu0 %v697
    %1318 = vmatpush1.bf16.msra.mxu0 %v696
    %1319 = vmatprep.subr.bf16.mxu0 %v701
    %1320 = vmatpush1.bf16.msra.mxu0 %v700
    %1321 = vmatprep.subr.bf16.mxu0 %v705
    %1322 = vmatpush1.bf16.msra.mxu0 %v704
    %1323 = vmatprep.subr.bf16.mxu0 %v709
    %1324 = vmatpush1.bf16.msra.mxu0 %v708
    %1325 = vmatprep.subr.bf16.mxu0 0
    %1326 = vmatpush1.bf16.msra.mxu0 0
    %1327 = vmatprep.subr.bf16.mxu0 0
    %1328 = vmatpush1.bf16.msra.mxu0 0
    %1329 = vmatprep.subr.bf16.mxu0 0
    %1330 = vmatpush1.bf16.msra.mxu0 0
    %1331 = vmatprep.subr.bf16.mxu0 0
    %1332 = vmatpush1.bf16.msra.mxu0 0
    %1333 = vmatprep.subr.bf16.mxu0 0
    %1334 = vmatpush1.bf16.msra.mxu0 0
    %1335 = vmatprep.subr.bf16.mxu0 0
    %1336 = vmatpush1.bf16.msra.mxu0 0
    %1337 = vmatprep.subr.bf16.mxu0 0
    %1338 = vmatpush1.bf16.msra.mxu0 0
    %1339 = vmatprep.subr.bf16.mxu0 0
    %1340 = vmatpush1.bf16.msra.mxu0 0
    %1341 = vmatprep.mubr.bf16.mxu0 0
    %1342 = vmatmul.mubr.bf16.gmra.mrb[0].mxu0 %v1267
    %v1343 = vpop.f32.mrb[0].mxu0
    %v1344 = vadd.f32 0.0, %v1343
    %v1345 = vpop.f32.mrb[0].mxu0
    %v1346 = vadd.f32 0.0, %v1345
    %v1347 = vpop.f32.mrb[0].mxu0
    %v1348 = vpop.f32.mrb[0].mxu0
    %1349 = vdwg.mxu0
    %v1350 = vadd.f32 %v228, %v1220
    %v1351 = vadd.f32 %v230, %v1222
    %v1352 = vadd.f32 %v301, %v1261
    %v1353 = vadd.f32 %v303, %v1263
    %v1354 = vxor.u32 %v1350, 2147483648
    %v1355 = vmul.f32 %v1354, 1.442695
    %v1356 = vpow.pop %v1355
    %v1357 = vadd.f32 %v1356, 1.0
    %v1358 = vrcp.pop %v1357
    %v1359 = vmul.f32 1.0, %v1358
    %v1360 = vxor.u32 %v1351, 2147483648
    %v1361 = vmul.f32 %v1360, 1.442695
    %v1362 = vpow.pop %v1361
    %v1363 = vadd.f32 %v1362, 1.0
    %v1364 = vrcp.pop %v1363
    %v1365 = vmul.f32 1.0, %v1364
    %v1366 = vtanh.pop %v1352
    %v1367 = vxor.u32 %v1353, 2147483648
    %v1368 = vmul.f32 %v1367, 1.442695
    %v1369 = vpow.pop %v1368
    %v1370 = vadd.f32 %v1369, 1.0
    %v1371 = vrcp.pop %v1370
    %v1372 = vmul.f32 1.0, %v1371
    %v1373 = vmul.f32 %v1365, %v1176
    %v1374 = vmul.f32 %v1359, %v1366
    %v1375 = vadd.f32 %v1373, %v1374
    %v1376 = vtanh.pop %v1375
    %v1377 = vmul.f32 %v1372, %v1376
    %v1378 = vadd.f32 %v430, %v1303
    %v1379 = vadd.f32 %v432, %v1305
    %v1380 = vadd.f32 %v503, %v1344
    %v1381 = vadd.f32 %v505, %v1346
    %v1382 = vxor.u32 %v1378, 2147483648
    %v1383 = vmul.f32 %v1382, 1.442695
    %v1384 = vpow.pop %v1383
    %v1385 = vadd.f32 %v1384, 1.0
    %v1386 = vrcp.pop %v1385
    %v1387 = vmul.f32 1.0, %v1386
    %v1388 = vxor.u32 %v1379, 2147483648
    %v1389 = vmul.f32 %v1388, 1.442695
    %v1390 = vpow.pop %v1389
    %v1391 = vadd.f32 %v1390, 1.0
    %v1392 = vrcp.pop %v1391
    %v1393 = vmul.f32 1.0, %v1392
    %v1394 = vtanh.pop %v1380
    %v1395 = vxor.u32 %v1381, 2147483648
    %v1396 = vmul.f32 %v1395, 1.442695
    %v1397 = vpow.pop %v1396
    %v1398 = vadd.f32 %v1397, 1.0
    %v1399 = vrcp.pop %v1398
    %v1400 = vmul.f32 1.0, %v1399
    %v1401 = vmul.f32 %v1393, %v1183
    %v1402 = vmul.f32 %v1387, %v1394
    %v1403 = vadd.f32 %v1401, %v1402
    %v1404 = vtanh.pop %v1403
    %v1405 = vmul.f32 %v1400, %v1404
    %vm1406 = vcmp.gt.s32.totalorder %v645, 2
    %vm1407 = vcmp.gt.s32.totalorder %v645, 5
    %v1408 = vsel %vm1406, 1, 0
    %1409 = vset.pattern.permute.xlu0 0
    %1410 = vperm.xlu0 %1409, %v1408
    %v1411 = vpop.permute.xlu0 %1410
    %vm1412 = vcmp.eq.s32.totalorder %v1411, 1
    %v1413 = vsel %vm1412, %v1377, %v1175
    %v1414 = vsel %vm1412, %v1375, %v1176
    %v1415 = vsel %vm1407, 1, 0
    %1416 = vset.pattern.permute.xlu0 0
    %1417 = vperm.xlu0 %1416, %v1415
    %v1418 = vpop.permute.xlu0 %1417
    %vm1419 = vcmp.eq.s32.totalorder %v1418, 1
    %v1420 = vsel %vm1419, %v1405, %v1182
    %v1421 = vsel %vm1419, %v1403, %v1183
    %v1422 = vpack.c.bf16 %v1413, %v1413
    %1423 = vmatprep.subr.bf16.mxu0 %v647
    %1424 = vmatpush1.bf16.msra.mxu0 %v646
    %1425 = vmatprep.subr.bf16.mxu0 %v651
    %1426 = vmatpush1.bf16.msra.mxu0 %v650
    %1427 = vmatprep.subr.bf16.mxu0 %v655
    %1428 = vmatpush1.bf16.msra.mxu0 %v654
    %1429 = vmatprep.subr.bf16.mxu0 %v659
    %1430 = vmatpush1.bf16.msra.mxu0 %v658
    %1431 = vmatprep.subr.bf16.mxu0 %v663
    %1432 = vmatpush1.bf16.msra.mxu0 %v662
    %1433 = vmatprep.subr.bf16.mxu0 %v667
    %1434 = vmatpush1.bf16.msra.mxu0 %v666
    %1435 = vmatprep.subr.bf16.mxu0 %v671
    %1436 = vmatpush1.bf16.msra.mxu0 %v670
    %1437 = vmatprep.subr.bf16.mxu0 %v675
    %1438 = vmatpush1.bf16.msra.mxu0 %v674
    %1439 = vmatprep.subr.bf16.mxu0 0
    %1440 = vmatpush1.bf16.msra.mxu0 0
    %1441 = vmatprep.subr.bf16.mxu0 0
    %1442 = vmatpush1.bf16.msra.mxu0 0
    %1443 = vmatprep.subr.bf16.mxu0 0
    %1444 = vmatpush1.bf16.msra.mxu0 0
    %1445 = vmatprep.subr.bf16.mxu0 0
    %1446 = vmatpush1.bf16.msra.mxu0 0
    %1447 = vmatprep.subr.bf16.mxu0 0
    %1448 = vmatpush1.bf16.msra.mxu0 0
    %1449 = vmatprep.subr.bf16.mxu0 0
    %1450 = vmatpush1.bf16.msra.mxu0 0
    %1451 = vmatprep.subr.bf16.mxu0 0
    %1452 = vmatpush1.bf16.msra.mxu0 0
    %1453 = vmatprep.subr.bf16.mxu0 0
    %1454 = vmatpush1.bf16.msra.mxu0 0
    %1455 = vmatprep.mubr.bf16.mxu0 0
    %1456 = vmatmul.mubr.bf16.gmra.mrb[0].mxu0 %v1422
    %v1457 = vpop.f32.mrb[0].mxu0
    %v1458 = vadd.f32 0.0, %v1457
    %v1459 = vpop.f32.mrb[0].mxu0
    %v1460 = vadd.f32 0.0, %v1459
    %v1461 = vpop.f32.mrb[0].mxu0
    %v1462 = vpop.f32.mrb[0].mxu0
    %1463 = vdwg.mxu0
    %1464 = vmatprep.subr.bf16.mxu0 %v649
    %1465 = vmatpush1.bf16.msra.mxu0 %v648
    %1466 = vmatprep.subr.bf16.mxu0 %v653
    %1467 = vmatpush1.bf16.msra.mxu0 %v652
    %1468 = vmatprep.subr.bf16.mxu0 %v657
    %1469 = vmatpush1.bf16.msra.mxu0 %v656
    %1470 = vmatprep.subr.bf16.mxu0 %v661
    %1471 = vmatpush1.bf16.msra.mxu0 %v660
    %1472 = vmatprep.subr.bf16.mxu0 %v665
    %1473 = vmatpush1.bf16.msra.mxu0 %v664
    %1474 = vmatprep.subr.bf16.mxu0 %v669
    %1475 = vmatpush1.bf16.msra.mxu0 %v668
    %1476 = vmatprep.subr.bf16.mxu0 %v673
    %1477 = vmatpush1.bf16.msra.mxu0 %v672
    %1478 = vmatprep.subr.bf16.mxu0 %v677
    %1479 = vmatpush1.bf16.msra.mxu0 %v676
    %1480 = vmatprep.subr.bf16.mxu0 0
    %1481 = vmatpush1.bf16.msra.mxu0 0
    %1482 = vmatprep.subr.bf16.mxu0 0
    %1483 = vmatpush1.bf16.msra.mxu0 0
    %1484 = vmatprep.subr.bf16.mxu0 0
    %1485 = vmatpush1.bf16.msra.mxu0 0
    %1486 = vmatprep.subr.bf16.mxu0 0
    %1487 = vmatpush1.bf16.msra.mxu0 0
    %1488 = vmatprep.subr.bf16.mxu0 0
    %1489 = vmatpush1.bf16.msra.mxu0 0
    %1490 = vmatprep.subr.bf16.mxu0 0
    %1491 = vmatpush1.bf16.msra.mxu0 0
    %1492 = vmatprep.subr.bf16.mxu0 0
    %1493 = vmatpush1.bf16.msra.mxu0 0
    %1494 = vmatprep.subr.bf16.mxu0 0
    %1495 = vmatpush1.bf16.msra.mxu0 0
    %1496 = vmatprep.mubr.bf16.mxu0 0
    %1497 = vmatmul.mubr.bf16.gmra.mrb[0].mxu0 %v1422
    %v1498 = vpop.f32.mrb[0].mxu0
    %v1499 = vadd.f32 0.0, %v1498
    %v1500 = vpop.f32.mrb[0].mxu0
    %v1501 = vadd.f32 0.0, %v1500
    %v1502 = vpop.f32.mrb[0].mxu0
    %v1503 = vpop.f32.mrb[0].mxu0
    %1504 = vdwg.mxu0
    %v1505 = vpack.c.bf16 %v1420, %v1420
    %1506 = vmatprep.subr.bf16.mxu0 %v679
    %1507 = vmatpush1.bf16.msra.mxu0 %v678
    %1508 = vmatprep.subr.bf16.mxu0 %v683
    %1509 = vmatpush1.bf16.msra.mxu0 %v682
    %1510 = vmatprep.subr.bf16.mxu0 %v687
    %1511 = vmatpush1.bf16.msra.mxu0 %v686
    %1512 = vmatprep.subr.bf16.mxu0 %v691
    %1513 = vmatpush1.bf16.msra.mxu0 %v690
    %1514 = vmatprep.subr.bf16.mxu0 %v695
    %1515 = vmatpush1.bf16.msra.mxu0 %v694
    %1516 = vmatprep.subr.bf16.mxu0 %v699
    %1517 = vmatpush1.bf16.msra.mxu0 %v698
    %1518 = vmatprep.subr.bf16.mxu0 %v703
    %1519 = vmatpush1.bf16.msra.mxu0 %v702
    %1520 = vmatprep.subr.bf16.mxu0 %v707
    %1521 = vmatpush1.bf16.msra.mxu0 %v706
    %1522 = vmatprep.subr.bf16.mxu0 0
    %1523 = vmatpush1.bf16.msra.mxu0 0
    %1524 = vmatprep.subr.bf16.mxu0 0
    %1525 = vmatpush1.bf16.msra.mxu0 0
    %1526 = vmatprep.subr.bf16.mxu0 0
    %1527 = vmatpush1.bf16.msra.mxu0 0
    %1528 = vmatprep.subr.bf16.mxu0 0
    %1529 = vmatpush1.bf16.msra.mxu0 0
    %1530 = vmatprep.subr.bf16.mxu0 0
    %1531 = vmatpush1.bf16.msra.mxu0 0
    %1532 = vmatprep.subr.bf16.mxu0 0
    %1533 = vmatpush1.bf16.msra.mxu0 0
    %1534 = vmatprep.subr.bf16.mxu0 0
    %1535 = vmatpush1.bf16.msra.mxu0 0
    %1536 = vmatprep.subr.bf16.mxu0 0
    %1537 = vmatpush1.bf16.msra.mxu0 0
    %1538 = vmatprep.mubr.bf16.mxu0 0
    %1539 = vmatmul.mubr.bf16.gmra.mrb[0].mxu0 %v1505
    %v1540 = vpop.f32.mrb[0].mxu0
    %v1541 = vadd.f32 0.0, %v1540
    %v1542 = vpop.f32.mrb[0].mxu0
    %v1543 = vadd.f32 0.0, %v1542
    %v1544 = vpop.f32.mrb[0].mxu0
    %v1545 = vpop.f32.mrb[0].mxu0
    %1546 = vdwg.mxu0
    %1547 = vmatprep.subr.bf16.mxu0 %v681
    %1548 = vmatpush1.bf16.msra.mxu0 %v680
    %1549 = vmatprep.subr.bf16.mxu0 %v685
    %1550 = vmatpush1.bf16.msra.mxu0 %v684
    %1551 = vmatprep.subr.bf16.mxu0 %v689
    %1552 = vmatpush1.bf16.msra.mxu0 %v688
    %1553 = vmatprep.subr.bf16.mxu0 %v693
    %1554 = vmatpush1.bf16.msra.mxu0 %v692
    %1555 = vmatprep.subr.bf16.mxu0 %v697
    %1556 = vmatpush1.bf16.msra.mxu0 %v696
    %1557 = vmatprep.subr.bf16.mxu0 %v701
    %1558 = vmatpush1.bf16.msra.mxu0 %v700
    %1559 = vmatprep.subr.bf16.mxu0 %v705
    %1560 = vmatpush1.bf16.msra.mxu0 %v704
    %1561 = vmatprep.subr.bf16.mxu0 %v709
    %1562 = vmatpush1.bf16.msra.mxu0 %v708
    %1563 = vmatprep.subr.bf16.mxu0 0
    %1564 = vmatpush1.bf16.msra.mxu0 0
    %1565 = vmatprep.subr.bf16.mxu0 0
    %1566 = vmatpush1.bf16.msra.mxu0 0
    %1567 = vmatprep.subr.bf16.mxu0 0
    %1568 = vmatpush1.bf16.msra.mxu0 0
    %1569 = vmatprep.subr.bf16.mxu0 0
    %1570 = vmatpush1.bf16.msra.mxu0 0
    %1571 = vmatprep.subr.bf16.mxu0 0
    %1572 = vmatpush1.bf16.msra.mxu0 0
    %1573 = vmatprep.subr.bf16.mxu0 0
    %1574 = vmatpush1.bf16.msra.mxu0 0
    %1575 = vmatprep.subr.bf16.mxu0 0
    %1576 = vmatpush1.bf16.msra.mxu0 0
    %1577 = vmatprep.subr.bf16.mxu0 0
    %1578 = vmatpush1.bf16.msra.mxu0 0
    %1579 = vmatprep.mubr.bf16.mxu0 0
    %1580 = vmatmul.mubr.bf16.gmra.mrb[0].mxu0 %v1505
    %v1581 = vpop.f32.mrb[0].mxu0
    %v1582 = vadd.f32 0.0, %v1581
    %v1583 = vpop.f32.mrb[0].mxu0
    %v1584 = vadd.f32 0.0, %v1583
    %v1585 = vpop.f32.mrb[0].mxu0
    %v1586 = vpop.f32.mrb[0].mxu0
    %1587 = vdwg.mxu0
    %v1588 = vadd.f32 %v232, %v1458
    %v1589 = vadd.f32 %v234, %v1460
    %v1590 = vadd.f32 %v305, %v1499
    %v1591 = vadd.f32 %v307, %v1501
    %v1592 = vxor.u32 %v1588, 2147483648
    %v1593 = vmul.f32 %v1592, 1.442695
    %v1594 = vpow.pop %v1593
    %v1595 = vadd.f32 %v1594, 1.0
    %v1596 = vrcp.pop %v1595
    %v1597 = vmul.f32 1.0, %v1596
    %v1598 = vxor.u32 %v1589, 2147483648
    %v1599 = vmul.f32 %v1598, 1.442695
    %v1600 = vpow.pop %v1599
    %v1601 = vadd.f32 %v1600, 1.0
    %v1602 = vrcp.pop %v1601
    %v1603 = vmul.f32 1.0, %v1602
    %v1604 = vtanh.pop %v1590
    %v1605 = vxor.u32 %v1591, 2147483648
    %v1606 = vmul.f32 %v1605, 1.442695
    %v1607 = vpow.pop %v1606
    %v1608 = vadd.f32 %v1607, 1.0
    %v1609 = vrcp.pop %v1608
    %v1610 = vmul.f32 1.0, %v1609
    %v1611 = vmul.f32 %v1603, %v1414
    %v1612 = vmul.f32 %v1597, %v1604
    %v1613 = vadd.f32 %v1611, %v1612
    %v1614 = vtanh.pop %v1613
    %v1615 = vmul.f32 %v1610, %v1614
    %v1616 = vadd.f32 %v426, %v1541
    %v1617 = vadd.f32 %v428, %v1543
    %v1618 = vadd.f32 %v499, %v1582
    %v1619 = vadd.f32 %v501, %v1584
    %v1620 = vxor.u32 %v1616, 2147483648
    %v1621 = vmul.f32 %v1620, 1.442695
    %v1622 = vpow.pop %v1621
    %v1623 = vadd.f32 %v1622, 1.0
    %v1624 = vrcp.pop %v1623
    %v1625 = vmul.f32 1.0, %v1624
    %v1626 = vxor.u32 %v1617, 2147483648
    %v1627 = vmul.f32 %v1626, 1.442695
    %v1628 = vpow.pop %v1627
    %v1629 = vadd.f32 %v1628, 1.0
    %v1630 = vrcp.pop %v1629
    %v1631 = vmul.f32 1.0, %v1630
    %v1632 = vtanh.pop %v1618
    %v1633 = vxor.u32 %v1619, 2147483648
    %v1634 = vmul.f32 %v1633, 1.442695
    %v1635 = vpow.pop %v1634
    %v1636 = vadd.f32 %v1635, 1.0
    %v1637 = vrcp.pop %v1636
    %v1638 = vmul.f32 1.0, %v1637
    %v1639 = vmul.f32 %v1631, %v1421
    %v1640 = vmul.f32 %v1625, %v1632
    %v1641 = vadd.f32 %v1639, %v1640
    %v1642 = vtanh.pop %v1641
    %v1643 = vmul.f32 %v1638, %v1642
    %vm1644 = vcmp.gt.s32.totalorder %v645, 3
    %vm1645 = vcmp.gt.s32.totalorder %v645, 4
    %v1646 = vsel %vm1644, 1, 0
    %1647 = vset.pattern.permute.xlu0 0
    %1648 = vperm.xlu0 %1647, %v1646
    %v1649 = vpop.permute.xlu0 %1648
    %vm1650 = vcmp.eq.s32.totalorder %v1649, 1
    %v1651 = vsel %vm1650, %v1615, %v1413
    %v1652 = vsel %vm1650, %v1613, %v1414
    %v1653 = vsel %vm1645, 1, 0
    %1654 = vset.pattern.permute.xlu0 0
    %1655 = vperm.xlu0 %1654, %v1653
    %v1656 = vpop.permute.xlu0 %1655
    %vm1657 = vcmp.eq.s32.totalorder %v1656, 1
    %v1658 = vsel %vm1657, %v1643, %v1420
    %v1659 = vsel %vm1657, %v1641, %v1421
    %v1660 = vpack.c.bf16 %v1651, %v1651
    %1661 = vmatprep.subr.bf16.mxu0 %v647
    %1662 = vmatpush1.bf16.msra.mxu0 %v646
    %1663 = vmatprep.subr.bf16.mxu0 %v651
    %1664 = vmatpush1.bf16.msra.mxu0 %v650
    %1665 = vmatprep.subr.bf16.mxu0 %v655
    %1666 = vmatpush1.bf16.msra.mxu0 %v654
    %1667 = vmatprep.subr.bf16.mxu0 %v659
    %1668 = vmatpush1.bf16.msra.mxu0 %v658
    %1669 = vmatprep.subr.bf16.mxu0 %v663
    %1670 = vmatpush1.bf16.msra.mxu0 %v662
    %1671 = vmatprep.subr.bf16.mxu0 %v667
    %1672 = vmatpush1.bf16.msra.mxu0 %v666
    %1673 = vmatprep.subr.bf16.mxu0 %v671
    %1674 = vmatpush1.bf16.msra.mxu0 %v670
    %1675 = vmatprep.subr.bf16.mxu0 %v675
    %1676 = vmatpush1.bf16.msra.mxu0 %v674
    %1677 = vmatprep.subr.bf16.mxu0 0
    %1678 = vmatpush1.bf16.msra.mxu0 0
    %1679 = vmatprep.subr.bf16.mxu0 0
    %1680 = vmatpush1.bf16.msra.mxu0 0
    %1681 = vmatprep.subr.bf16.mxu0 0
    %1682 = vmatpush1.bf16.msra.mxu0 0
    %1683 = vmatprep.subr.bf16.mxu0 0
    %1684 = vmatpush1.bf16.msra.mxu0 0
    %1685 = vmatprep.subr.bf16.mxu0 0
    %1686 = vmatpush1.bf16.msra.mxu0 0
    %1687 = vmatprep.subr.bf16.mxu0 0
    %1688 = vmatpush1.bf16.msra.mxu0 0
    %1689 = vmatprep.subr.bf16.mxu0 0
    %1690 = vmatpush1.bf16.msra.mxu0 0
    %1691 = vmatprep.subr.bf16.mxu0 0
    %1692 = vmatpush1.bf16.msra.mxu0 0
    %1693 = vmatprep.mubr.bf16.mxu0 0
    %1694 = vmatmul.mubr.bf16.gmra.mrb[0].mxu0 %v1660
    %v1695 = vpop.f32.mrb[0].mxu0
    %v1696 = vadd.f32 0.0, %v1695
    %v1697 = vpop.f32.mrb[0].mxu0
    %v1698 = vadd.f32 0.0, %v1697
    %v1699 = vpop.f32.mrb[0].mxu0
    %v1700 = vpop.f32.mrb[0].mxu0
    %1701 = vdwg.mxu0
    %1702 = vmatprep.subr.bf16.mxu0 %v649
    %1703 = vmatpush1.bf16.msra.mxu0 %v648
    %1704 = vmatprep.subr.bf16.mxu0 %v653
    %1705 = vmatpush1.bf16.msra.mxu0 %v652
    %1706 = vmatprep.subr.bf16.mxu0 %v657
    %1707 = vmatpush1.bf16.msra.mxu0 %v656
    %1708 = vmatprep.subr.bf16.mxu0 %v661
    %1709 = vmatpush1.bf16.msra.mxu0 %v660
    %1710 = vmatprep.subr.bf16.mxu0 %v665
    %1711 = vmatpush1.bf16.msra.mxu0 %v664
    %1712 = vmatprep.subr.bf16.mxu0 %v669
    %1713 = vmatpush1.bf16.msra.mxu0 %v668
    %1714 = vmatprep.subr.bf16.mxu0 %v673
    %1715 = vmatpush1.bf16.msra.mxu0 %v672
    %1716 = vmatprep.subr.bf16.mxu0 %v677
    %1717 = vmatpush1.bf16.msra.mxu0 %v676
    %1718 = vmatprep.subr.bf16.mxu0 0
    %1719 = vmatpush1.bf16.msra.mxu0 0
    %1720 = vmatprep.subr.bf16.mxu0 0
    %1721 = vmatpush1.bf16.msra.mxu0 0
    %1722 = vmatprep.subr.bf16.mxu0 0
    %1723 = vmatpush1.bf16.msra.mxu0 0
    %1724 = vmatprep.subr.bf16.mxu0 0
    %1725 = vmatpush1.bf16.msra.mxu0 0
    %1726 = vmatprep.subr.bf16.mxu0 0
    %1727 = vmatpush1.bf16.msra.mxu0 0
    %1728 = vmatprep.subr.bf16.mxu0 0
    %1729 = vmatpush1.bf16.msra.mxu0 0
    %1730 = vmatprep.subr.bf16.mxu0 0
    %1731 = vmatpush1.bf16.msra.mxu0 0
    %1732 = vmatprep.subr.bf16.mxu0 0
    %1733 = vmatpush1.bf16.msra.mxu0 0
    %1734 = vmatprep.mubr.bf16.mxu0 0
    %1735 = vmatmul.mubr.bf16.gmra.mrb[0].mxu0 %v1660
    %v1736 = vpop.f32.mrb[0].mxu0
    %v1737 = vadd.f32 0.0, %v1736
    %v1738 = vpop.f32.mrb[0].mxu0
    %v1739 = vadd.f32 0.0, %v1738
    %v1740 = vpop.f32.mrb[0].mxu0
    %v1741 = vpop.f32.mrb[0].mxu0
    %1742 = vdwg.mxu0
    %v1743 = vpack.c.bf16 %v1658, %v1658
    %1744 = vmatprep.subr.bf16.mxu0 %v679
    %1745 = vmatpush1.bf16.msra.mxu0 %v678
    %1746 = vmatprep.subr.bf16.mxu0 %v683
    %1747 = vmatpush1.bf16.msra.mxu0 %v682
    %1748 = vmatprep.subr.bf16.mxu0 %v687
    %1749 = vmatpush1.bf16.msra.mxu0 %v686
    %1750 = vmatprep.subr.bf16.mxu0 %v691
    %1751 = vmatpush1.bf16.msra.mxu0 %v690
    %1752 = vmatprep.subr.bf16.mxu0 %v695
    %1753 = vmatpush1.bf16.msra.mxu0 %v694
    %1754 = vmatprep.subr.bf16.mxu0 %v699
    %1755 = vmatpush1.bf16.msra.mxu0 %v698
    %1756 = vmatprep.subr.bf16.mxu0 %v703
    %1757 = vmatpush1.bf16.msra.mxu0 %v702
    %1758 = vmatprep.subr.bf16.mxu0 %v707
    %1759 = vmatpush1.bf16.msra.mxu0 %v706
    %1760 = vmatprep.subr.bf16.mxu0 0
    %1761 = vmatpush1.bf16.msra.mxu0 0
    %1762 = vmatprep.subr.bf16.mxu0 0
    %1763 = vmatpush1.bf16.msra.mxu0 0
    %1764 = vmatprep.subr.bf16.mxu0 0
    %1765 = vmatpush1.bf16.msra.mxu0 0
    %1766 = vmatprep.subr.bf16.mxu0 0
    %1767 = vmatpush1.bf16.msra.mxu0 0
    %1768 = vmatprep.subr.bf16.mxu0 0
    %1769 = vmatpush1.bf16.msra.mxu0 0
    %1770 = vmatprep.subr.bf16.mxu0 0
    %1771 = vmatpush1.bf16.msra.mxu0 0
    %1772 = vmatprep.subr.bf16.mxu0 0
    %1773 = vmatpush1.bf16.msra.mxu0 0
    %1774 = vmatprep.subr.bf16.mxu0 0
    %1775 = vmatpush1.bf16.msra.mxu0 0
    %1776 = vmatprep.mubr.bf16.mxu0 0
    %1777 = vmatmul.mubr.bf16.gmra.mrb[0].mxu0 %v1743
    %v1778 = vpop.f32.mrb[0].mxu0
    %v1779 = vadd.f32 0.0, %v1778
    %v1780 = vpop.f32.mrb[0].mxu0
    %v1781 = vadd.f32 0.0, %v1780
    %v1782 = vpop.f32.mrb[0].mxu0
    %v1783 = vpop.f32.mrb[0].mxu0
    %1784 = vdwg.mxu0
    %1785 = vmatprep.subr.bf16.mxu0 %v681
    %1786 = vmatpush1.bf16.msra.mxu0 %v680
    %1787 = vmatprep.subr.bf16.mxu0 %v685
    %1788 = vmatpush1.bf16.msra.mxu0 %v684
    %1789 = vmatprep.subr.bf16.mxu0 %v689
    %1790 = vmatpush1.bf16.msra.mxu0 %v688
    %1791 = vmatprep.subr.bf16.mxu0 %v693
    %1792 = vmatpush1.bf16.msra.mxu0 %v692
    %1793 = vmatprep.subr.bf16.mxu0 %v697
    %1794 = vmatpush1.bf16.msra.mxu0 %v696
    %1795 = vmatprep.subr.bf16.mxu0 %v701
    %1796 = vmatpush1.bf16.msra.mxu0 %v700
    %1797 = vmatprep.subr.bf16.mxu0 %v705
    %1798 = vmatpush1.bf16.msra.mxu0 %v704
    %1799 = vmatprep.subr.bf16.mxu0 %v709
    %1800 = vmatpush1.bf16.msra.mxu0 %v708
    %1801 = vmatprep.subr.bf16.mxu0 0
    %1802 = vmatpush1.bf16.msra.mxu0 0
    %1803 = vmatprep.subr.bf16.mxu0 0
    %1804 = vmatpush1.bf16.msra.mxu0 0
    %1805 = vmatprep.subr.bf16.mxu0 0
    %1806 = vmatpush1.bf16.msra.mxu0 0
    %1807 = vmatprep.subr.bf16.mxu0 0
    %1808 = vmatpush1.bf16.msra.mxu0 0
    %1809 = vmatprep.subr.bf16.mxu0 0
    %1810 = vmatpush1.bf16.msra.mxu0 0
    %1811 = vmatprep.subr.bf16.mxu0 0
    %1812 = vmatpush1.bf16.msra.mxu0 0
    %1813 = vmatprep.subr.bf16.mxu0 0
    %1814 = vmatpush1.bf16.msra.mxu0 0
    %1815 = vmatprep.subr.bf16.mxu0 0
    %1816 = vmatpush1.bf16.msra.mxu0 0
    %1817 = vmatprep.mubr.bf16.mxu0 0
    %1818 = vmatmul.mubr.bf16.gmra.mrb[0].mxu0 %v1743
    %v1819 = vpop.f32.mrb[0].mxu0
    %v1820 = vadd.f32 0.0, %v1819
    %v1821 = vpop.f32.mrb[0].mxu0
    %v1822 = vadd.f32 0.0, %v1821
    %v1823 = vpop.f32.mrb[0].mxu0
    %v1824 = vpop.f32.mrb[0].mxu0
    %1825 = vdwg.mxu0
    %v1826 = vadd.f32 %v238, %v1696
    %v1827 = vadd.f32 %v240, %v1698
    %v1828 = vadd.f32 %v311, %v1737
    %v1829 = vadd.f32 %v313, %v1739
    %v1830 = vxor.u32 %v1826, 2147483648
    %v1831 = vmul.f32 %v1830, 1.442695
    %v1832 = vpow.pop %v1831
    %v1833 = vadd.f32 %v1832, 1.0
    %v1834 = vrcp.pop %v1833
    %v1835 = vmul.f32 1.0, %v1834
    %v1836 = vxor.u32 %v1827, 2147483648
    %v1837 = vmul.f32 %v1836, 1.442695
    %v1838 = vpow.pop %v1837
    %v1839 = vadd.f32 %v1838, 1.0
    %v1840 = vrcp.pop %v1839
    %v1841 = vmul.f32 1.0, %v1840
    %v1842 = vtanh.pop %v1828
    %v1843 = vxor.u32 %v1829, 2147483648
    %v1844 = vmul.f32 %v1843, 1.442695
    %v1845 = vpow.pop %v1844
    %v1846 = vadd.f32 %v1845, 1.0
    %v1847 = vrcp.pop %v1846
    %v1848 = vmul.f32 1.0, %v1847
    %v1849 = vmul.f32 %v1841, %v1652
    %v1850 = vmul.f32 %v1835, %v1842
    %v1851 = vadd.f32 %v1849, %v1850
    %v1852 = vtanh.pop %v1851
    %v1853 = vmul.f32 %v1848, %v1852
    %v1854 = vadd.f32 %v420, %v1779
    %v1855 = vadd.f32 %v422, %v1781
    %v1856 = vadd.f32 %v493, %v1820
    %v1857 = vadd.f32 %v495, %v1822
    %v1858 = vxor.u32 %v1854, 2147483648
    %v1859 = vmul.f32 %v1858, 1.442695
    %v1860 = vpow.pop %v1859
    %v1861 = vadd.f32 %v1860, 1.0
    %v1862 = vrcp.pop %v1861
    %v1863 = vmul.f32 1.0, %v1862
    %v1864 = vxor.u32 %v1855, 2147483648
    %v1865 = vmul.f32 %v1864, 1.442695
    %v1866 = vpow.pop %v1865
    %v1867 = vadd.f32 %v1866, 1.0
    %v1868 = vrcp.pop %v1867
    %v1869 = vmul.f32 1.0, %v1868
    %v1870 = vtanh.pop %v1856
    %v1871 = vxor.u32 %v1857, 2147483648
    %v1872 = vmul.f32 %v1871, 1.442695
    %v1873 = vpow.pop %v1872
    %v1874 = vadd.f32 %v1873, 1.0
    %v1875 = vrcp.pop %v1874
    %v1876 = vmul.f32 1.0, %v1875
    %v1877 = vmul.f32 %v1869, %v1659
    %v1878 = vmul.f32 %v1863, %v1870
    %v1879 = vadd.f32 %v1877, %v1878
    %v1880 = vtanh.pop %v1879
    %v1881 = vmul.f32 %v1876, %v1880
    %v1882 = vsel %vm1657, %v1853, %v1651
    %v1883 = vsel %vm1657, %v1851, %v1652
    %v1884 = vsel %vm1650, %v1881, %v1658
    %v1885 = vsel %vm1650, %v1879, %v1659
    %v1886 = vpack.c.bf16 %v1882, %v1882
    %1887 = vmatprep.subr.bf16.mxu0 %v647
    %1888 = vmatpush1.bf16.msra.mxu0 %v646
    %1889 = vmatprep.subr.bf16.mxu0 %v651
    %1890 = vmatpush1.bf16.msra.mxu0 %v650
    %1891 = vmatprep.subr.bf16.mxu0 %v655
    %1892 = vmatpush1.bf16.msra.mxu0 %v654
    %1893 = vmatprep.subr.bf16.mxu0 %v659
    %1894 = vmatpush1.bf16.msra.mxu0 %v658
    %1895 = vmatprep.subr.bf16.mxu0 %v663
    %1896 = vmatpush1.bf16.msra.mxu0 %v662
    %1897 = vmatprep.subr.bf16.mxu0 %v667
    %1898 = vmatpush1.bf16.msra.mxu0 %v666
    %1899 = vmatprep.subr.bf16.mxu0 %v671
    %1900 = vmatpush1.bf16.msra.mxu0 %v670
    %1901 = vmatprep.subr.bf16.mxu0 %v675
    %1902 = vmatpush1.bf16.msra.mxu0 %v674
    %1903 = vmatprep.subr.bf16.mxu0 0
    %1904 = vmatpush1.bf16.msra.mxu0 0
    %1905 = vmatprep.subr.bf16.mxu0 0
    %1906 = vmatpush1.bf16.msra.mxu0 0
    %1907 = vmatprep.subr.bf16.mxu0 0
    %1908 = vmatpush1.bf16.msra.mxu0 0
    %1909 = vmatprep.subr.bf16.mxu0 0
    %1910 = vmatpush1.bf16.msra.mxu0 0
    %1911 = vmatprep.subr.bf16.mxu0 0
    %1912 = vmatpush1.bf16.msra.mxu0 0
    %1913 = vmatprep.subr.bf16.mxu0 0
    %1914 = vmatpush1.bf16.msra.mxu0 0
    %1915 = vmatprep.subr.bf16.mxu0 0
    %1916 = vmatpush1.bf16.msra.mxu0 0
    %1917 = vmatprep.subr.bf16.mxu0 0
    %1918 = vmatpush1.bf16.msra.mxu0 0
    %1919 = vmatprep.mubr.bf16.mxu0 0
    %1920 = vmatmul.mubr.bf16.gmra.mrb[0].mxu0 %v1886
    %v1921 = vpop.f32.mrb[0].mxu0
    %v1922 = vadd.f32 0.0, %v1921
    %v1923 = vpop.f32.mrb[0].mxu0
    %v1924 = vadd.f32 0.0, %v1923
    %v1925 = vpop.f32.mrb[0].mxu0
    %v1926 = vpop.f32.mrb[0].mxu0
    %1927 = vdwg.mxu0
    %1928 = vmatprep.subr.bf16.mxu0 %v649
    %1929 = vmatpush1.bf16.msra.mxu0 %v648
    %1930 = vmatprep.subr.bf16.mxu0 %v653
    %1931 = vmatpush1.bf16.msra.mxu0 %v652
    %1932 = vmatprep.subr.bf16.mxu0 %v657
    %1933 = vmatpush1.bf16.msra.mxu0 %v656
    %1934 = vmatprep.subr.bf16.mxu0 %v661
    %1935 = vmatpush1.bf16.msra.mxu0 %v660
    %1936 = vmatprep.subr.bf16.mxu0 %v665
    %1937 = vmatpush1.bf16.msra.mxu0 %v664
    %1938 = vmatprep.subr.bf16.mxu0 %v669
    %1939 = vmatpush1.bf16.msra.mxu0 %v668
    %1940 = vmatprep.subr.bf16.mxu0 %v673
    %1941 = vmatpush1.bf16.msra.mxu0 %v672
    %1942 = vmatprep.subr.bf16.mxu0 %v677
    %1943 = vmatpush1.bf16.msra.mxu0 %v676
    %1944 = vmatprep.subr.bf16.mxu0 0
    %1945 = vmatpush1.bf16.msra.mxu0 0
    %1946 = vmatprep.subr.bf16.mxu0 0
    %1947 = vmatpush1.bf16.msra.mxu0 0
    %1948 = vmatprep.subr.bf16.mxu0 0
    %1949 = vmatpush1.bf16.msra.mxu0 0
    %1950 = vmatprep.subr.bf16.mxu0 0
    %1951 = vmatpush1.bf16.msra.mxu0 0
    %1952 = vmatprep.subr.bf16.mxu0 0
    %1953 = vmatpush1.bf16.msra.mxu0 0
    %1954 = vmatprep.subr.bf16.mxu0 0
    %1955 = vmatpush1.bf16.msra.mxu0 0
    %1956 = vmatprep.subr.bf16.mxu0 0
    %1957 = vmatpush1.bf16.msra.mxu0 0
    %1958 = vmatprep.subr.bf16.mxu0 0
    %1959 = vmatpush1.bf16.msra.mxu0 0
    %1960 = vmatprep.mubr.bf16.mxu0 0
    %1961 = vmatmul.mubr.bf16.gmra.mrb[0].mxu0 %v1886
    %v1962 = vpop.f32.mrb[0].mxu0
    %v1963 = vadd.f32 0.0, %v1962
    %v1964 = vpop.f32.mrb[0].mxu0
    %v1965 = vadd.f32 0.0, %v1964
    %v1966 = vpop.f32.mrb[0].mxu0
    %v1967 = vpop.f32.mrb[0].mxu0
    %1968 = vdwg.mxu0
    %v1969 = vpack.c.bf16 %v1884, %v1884
    %1970 = vmatprep.subr.bf16.mxu0 %v679
    %1971 = vmatpush1.bf16.msra.mxu0 %v678
    %1972 = vmatprep.subr.bf16.mxu0 %v683
    %1973 = vmatpush1.bf16.msra.mxu0 %v682
    %1974 = vmatprep.subr.bf16.mxu0 %v687
    %1975 = vmatpush1.bf16.msra.mxu0 %v686
    %1976 = vmatprep.subr.bf16.mxu0 %v691
    %1977 = vmatpush1.bf16.msra.mxu0 %v690
    %1978 = vmatprep.subr.bf16.mxu0 %v695
    %1979 = vmatpush1.bf16.msra.mxu0 %v694
    %1980 = vmatprep.subr.bf16.mxu0 %v699
    %1981 = vmatpush1.bf16.msra.mxu0 %v698
    %1982 = vmatprep.subr.bf16.mxu0 %v703
    %1983 = vmatpush1.bf16.msra.mxu0 %v702
    %1984 = vmatprep.subr.bf16.mxu0 %v707
    %1985 = vmatpush1.bf16.msra.mxu0 %v706
    %1986 = vmatprep.subr.bf16.mxu0 0
    %1987 = vmatpush1.bf16.msra.mxu0 0
    %1988 = vmatprep.subr.bf16.mxu0 0
    %1989 = vmatpush1.bf16.msra.mxu0 0
    %1990 = vmatprep.subr.bf16.mxu0 0
    %1991 = vmatpush1.bf16.msra.mxu0 0
    %1992 = vmatprep.subr.bf16.mxu0 0
    %1993 = vmatpush1.bf16.msra.mxu0 0
    %1994 = vmatprep.subr.bf16.mxu0 0
    %1995 = vmatpush1.bf16.msra.mxu0 0
    %1996 = vmatprep.subr.bf16.mxu0 0
    %1997 = vmatpush1.bf16.msra.mxu0 0
    %1998 = vmatprep.subr.bf16.mxu0 0
    %1999 = vmatpush1.bf16.msra.mxu0 0
    %2000 = vmatprep.subr.bf16.mxu0 0
    %2001 = vmatpush1.bf16.msra.mxu0 0
    %2002 = vmatprep.mubr.bf16.mxu0 0
    %2003 = vmatmul.mubr.bf16.gmra.mrb[0].mxu0 %v1969
    %v2004 = vpop.f32.mrb[0].mxu0
    %v2005 = vadd.f32 0.0, %v2004
    %v2006 = vpop.f32.mrb[0].mxu0
    %v2007 = vadd.f32 0.0, %v2006
    %v2008 = vpop.f32.mrb[0].mxu0
    %v2009 = vpop.f32.mrb[0].mxu0
    %2010 = vdwg.mxu0
    %2011 = vmatprep.subr.bf16.mxu0 %v681
    %2012 = vmatpush1.bf16.msra.mxu0 %v680
    %2013 = vmatprep.subr.bf16.mxu0 %v685
    %2014 = vmatpush1.bf16.msra.mxu0 %v684
    %2015 = vmatprep.subr.bf16.mxu0 %v689
    %2016 = vmatpush1.bf16.msra.mxu0 %v688
    %2017 = vmatprep.subr.bf16.mxu0 %v693
    %2018 = vmatpush1.bf16.msra.mxu0 %v692
    %2019 = vmatprep.subr.bf16.mxu0 %v697
    %2020 = vmatpush1.bf16.msra.mxu0 %v696
    %2021 = vmatprep.subr.bf16.mxu0 %v701
    %2022 = vmatpush1.bf16.msra.mxu0 %v700
    %2023 = vmatprep.subr.bf16.mxu0 %v705
    %2024 = vmatpush1.bf16.msra.mxu0 %v704
    %2025 = vmatprep.subr.bf16.mxu0 %v709
    %2026 = vmatpush1.bf16.msra.mxu0 %v708
    %2027 = vmatprep.subr.bf16.mxu0 0
    %2028 = vmatpush1.bf16.msra.mxu0 0
    %2029 = vmatprep.subr.bf16.mxu0 0
    %2030 = vmatpush1.bf16.msra.mxu0 0
    %2031 = vmatprep.subr.bf16.mxu0 0
    %2032 = vmatpush1.bf16.msra.mxu0 0
    %2033 = vmatprep.subr.bf16.mxu0 0
    %2034 = vmatpush1.bf16.msra.mxu0 0
    %2035 = vmatprep.subr.bf16.mxu0 0
    %2036 = vmatpush1.bf16.msra.mxu0 0
    %2037 = vmatprep.subr.bf16.mxu0 0
    %2038 = vmatpush1.bf16.msra.mxu0 0
    %2039 = vmatprep.subr.bf16.mxu0 0
    %2040 = vmatpush1.bf16.msra.mxu0 0
    %2041 = vmatprep.subr.bf16.mxu0 0
    %2042 = vmatpush1.bf16.msra.mxu0 0
    %2043 = vmatprep.mubr.bf16.mxu0 0
    %2044 = vmatmul.mubr.bf16.gmra.mrb[0].mxu0 %v1969
    %v2045 = vpop.f32.mrb[0].mxu0
    %v2046 = vadd.f32 0.0, %v2045
    %v2047 = vpop.f32.mrb[0].mxu0
    %v2048 = vadd.f32 0.0, %v2047
    %v2049 = vpop.f32.mrb[0].mxu0
    %v2050 = vpop.f32.mrb[0].mxu0
    %2051 = vdwg.mxu0
    %v2052 = vadd.f32 %v242, %v1922
    %v2053 = vadd.f32 %v244, %v1924
    %v2054 = vadd.f32 %v315, %v1963
    %v2055 = vadd.f32 %v317, %v1965
    %v2056 = vxor.u32 %v2052, 2147483648
    %v2057 = vmul.f32 %v2056, 1.442695
    %v2058 = vpow.pop %v2057
    %v2059 = vadd.f32 %v2058, 1.0
    %v2060 = vrcp.pop %v2059
    %v2061 = vmul.f32 1.0, %v2060
    %v2062 = vxor.u32 %v2053, 2147483648
    %v2063 = vmul.f32 %v2062, 1.442695
    %v2064 = vpow.pop %v2063
    %v2065 = vadd.f32 %v2064, 1.0
    %v2066 = vrcp.pop %v2065
    %v2067 = vmul.f32 1.0, %v2066
    %v2068 = vtanh.pop %v2054
    %v2069 = vxor.u32 %v2055, 2147483648
    %v2070 = vmul.f32 %v2069, 1.442695
    %v2071 = vpow.pop %v2070
    %v2072 = vadd.f32 %v2071, 1.0
    %v2073 = vrcp.pop %v2072
    %v2074 = vmul.f32 1.0, %v2073
    %v2075 = vmul.f32 %v2067, %v1883
    %v2076 = vmul.f32 %v2061, %v2068
    %v2077 = vadd.f32 %v2075, %v2076
    %v2078 = vtanh.pop %v2077
    %v2079 = vmul.f32 %v2074, %v2078
    %v2080 = vadd.f32 %v416, %v2005
    %v2081 = vadd.f32 %v418, %v2007
    %v2082 = vadd.f32 %v489, %v2046
    %v2083 = vadd.f32 %v491, %v2048
    %v2084 = vxor.u32 %v2080, 2147483648
    %v2085 = vmul.f32 %v2084, 1.442695
    %v2086 = vpow.pop %v2085
    %v2087 = vadd.f32 %v2086, 1.0
    %v2088 = vrcp.pop %v2087
    %v2089 = vmul.f32 1.0, %v2088
    %v2090 = vxor.u32 %v2081, 2147483648
    %v2091 = vmul.f32 %v2090, 1.442695
    %v2092 = vpow.pop %v2091
    %v2093 = vadd.f32 %v2092, 1.0
    %v2094 = vrcp.pop %v2093
    %v2095 = vmul.f32 1.0, %v2094
    %v2096 = vtanh.pop %v2082
    %v2097 = vxor.u32 %v2083, 2147483648
    %v2098 = vmul.f32 %v2097, 1.442695
    %v2099 = vpow.pop %v2098
    %v2100 = vadd.f32 %v2099, 1.0
    %v2101 = vrcp.pop %v2100
    %v2102 = vmul.f32 1.0, %v2101
    %v2103 = vmul.f32 %v2095, %v1885
    %v2104 = vmul.f32 %v2089, %v2096
    %v2105 = vadd.f32 %v2103, %v2104
    %v2106 = vtanh.pop %v2105
    %v2107 = vmul.f32 %v2102, %v2106
    %v2108 = vsel %vm1419, %v2079, %v1882
    %v2109 = vsel %vm1419, %v2077, %v1883
    %v2110 = vsel %vm1412, %v2107, %v1884
    %v2111 = vsel %vm1412, %v2105, %v1885
    %v2112 = vpack.c.bf16 %v2108, %v2108
    %2113 = vmatprep.subr.bf16.mxu0 %v647
    %2114 = vmatpush1.bf16.msra.mxu0 %v646
    %2115 = vmatprep.subr.bf16.mxu0 %v651
    %2116 = vmatpush1.bf16.msra.mxu0 %v650
    %2117 = vmatprep.subr.bf16.mxu0 %v655
    %2118 = vmatpush1.bf16.msra.mxu0 %v654
    %2119 = vmatprep.subr.bf16.mxu0 %v659
    %2120 = vmatpush1.bf16.msra.mxu0 %v658
    %2121 = vmatprep.subr.bf16.mxu0 %v663
    %2122 = vmatpush1.bf16.msra.mxu0 %v662
    %2123 = vmatprep.subr.bf16.mxu0 %v667
    %2124 = vmatpush1.bf16.msra.mxu0 %v666
    %2125 = vmatprep.subr.bf16.mxu0 %v671
    %2126 = vmatpush1.bf16.msra.mxu0 %v670
    %2127 = vmatprep.subr.bf16.mxu0 %v675
    %2128 = vmatpush1.bf16.msra.mxu0 %v674
    %2129 = vmatprep.subr.bf16.mxu0 0
    %2130 = vmatpush1.bf16.msra.mxu0 0
    %2131 = vmatprep.subr.bf16.mxu0 0
    %2132 = vmatpush1.bf16.msra.mxu0 0
    %2133 = vmatprep.subr.bf16.mxu0 0
    %2134 = vmatpush1.bf16.msra.mxu0 0
    %2135 = vmatprep.subr.bf16.mxu0 0
    %2136 = vmatpush1.bf16.msra.mxu0 0
    %2137 = vmatprep.subr.bf16.mxu0 0
    %2138 = vmatpush1.bf16.msra.mxu0 0
    %2139 = vmatprep.subr.bf16.mxu0 0
    %2140 = vmatpush1.bf16.msra.mxu0 0
    %2141 = vmatprep.subr.bf16.mxu0 0
    %2142 = vmatpush1.bf16.msra.mxu0 0
    %2143 = vmatprep.subr.bf16.mxu0 0
    %2144 = vmatpush1.bf16.msra.mxu0 0
    %2145 = vmatprep.mubr.bf16.mxu0 0
    %2146 = vmatmul.mubr.bf16.gmra.mrb[0].mxu0 %v2112
    %v2147 = vpop.f32.mrb[0].mxu0
    %v2148 = vadd.f32 0.0, %v2147
    %v2149 = vpop.f32.mrb[0].mxu0
    %v2150 = vadd.f32 0.0, %v2149
    %v2151 = vpop.f32.mrb[0].mxu0
    %v2152 = vpop.f32.mrb[0].mxu0
    %2153 = vdwg.mxu0
    %2154 = vmatprep.subr.bf16.mxu0 %v649
    %2155 = vmatpush1.bf16.msra.mxu0 %v648
    %2156 = vmatprep.subr.bf16.mxu0 %v653
    %2157 = vmatpush1.bf16.msra.mxu0 %v652
    %2158 = vmatprep.subr.bf16.mxu0 %v657
    %2159 = vmatpush1.bf16.msra.mxu0 %v656
    %2160 = vmatprep.subr.bf16.mxu0 %v661
    %2161 = vmatpush1.bf16.msra.mxu0 %v660
    %2162 = vmatprep.subr.bf16.mxu0 %v665
    %2163 = vmatpush1.bf16.msra.mxu0 %v664
    %2164 = vmatprep.subr.bf16.mxu0 %v669
    %2165 = vmatpush1.bf16.msra.mxu0 %v668
    %2166 = vmatprep.subr.bf16.mxu0 %v673
    %2167 = vmatpush1.bf16.msra.mxu0 %v672
    %2168 = vmatprep.subr.bf16.mxu0 %v677
    %2169 = vmatpush1.bf16.msra.mxu0 %v676
    %2170 = vmatprep.subr.bf16.mxu0 0
    %2171 = vmatpush1.bf16.msra.mxu0 0
    %2172 = vmatprep.subr.bf16.mxu0 0
    %2173 = vmatpush1.bf16.msra.mxu0 0
    %2174 = vmatprep.subr.bf16.mxu0 0
    %2175 = vmatpush1.bf16.msra.mxu0 0
    %2176 = vmatprep.subr.bf16.mxu0 0
    %2177 = vmatpush1.bf16.msra.mxu0 0
    %2178 = vmatprep.subr.bf16.mxu0 0
    %2179 = vmatpush1.bf16.msra.mxu0 0
    %2180 = vmatprep.subr.bf16.mxu0 0
    %2181 = vmatpush1.bf16.msra.mxu0 0
    %2182 = vmatprep.subr.bf16.mxu0 0
    %2183 = vmatpush1.bf16.msra.mxu0 0
    %2184 = vmatprep.subr.bf16.mxu0 0
    %2185 = vmatpush1.bf16.msra.mxu0 0
    %2186 = vmatprep.mubr.bf16.mxu0 0
    %2187 = vmatmul.mubr.bf16.gmra.mrb[0].mxu0 %v2112
    %v2188 = vpop.f32.mrb[0].mxu0
    %v2189 = vadd.f32 0.0, %v2188
    %v2190 = vpop.f32.mrb[0].mxu0
    %v2191 = vadd.f32 0.0, %v2190
    %v2192 = vpop.f32.mrb[0].mxu0
    %v2193 = vpop.f32.mrb[0].mxu0
    %2194 = vdwg.mxu0
    %v2195 = vpack.c.bf16 %v2110, %v2110
    %2196 = vmatprep.subr.bf16.mxu0 %v679
    %2197 = vmatpush1.bf16.msra.mxu0 %v678
    %2198 = vmatprep.subr.bf16.mxu0 %v683
    %2199 = vmatpush1.bf16.msra.mxu0 %v682
    %2200 = vmatprep.subr.bf16.mxu0 %v687
    %2201 = vmatpush1.bf16.msra.mxu0 %v686
    %2202 = vmatprep.subr.bf16.mxu0 %v691
    %2203 = vmatpush1.bf16.msra.mxu0 %v690
    %2204 = vmatprep.subr.bf16.mxu0 %v695
    %2205 = vmatpush1.bf16.msra.mxu0 %v694
    %2206 = vmatprep.subr.bf16.mxu0 %v699
    %2207 = vmatpush1.bf16.msra.mxu0 %v698
    %2208 = vmatprep.subr.bf16.mxu0 %v703
    %2209 = vmatpush1.bf16.msra.mxu0 %v702
    %2210 = vmatprep.subr.bf16.mxu0 %v707
    %2211 = vmatpush1.bf16.msra.mxu0 %v706
    %2212 = vmatprep.subr.bf16.mxu0 0
    %2213 = vmatpush1.bf16.msra.mxu0 0
    %2214 = vmatprep.subr.bf16.mxu0 0
    %2215 = vmatpush1.bf16.msra.mxu0 0
    %2216 = vmatprep.subr.bf16.mxu0 0
    %2217 = vmatpush1.bf16.msra.mxu0 0
    %2218 = vmatprep.subr.bf16.mxu0 0
    %2219 = vmatpush1.bf16.msra.mxu0 0
    %2220 = vmatprep.subr.bf16.mxu0 0
    %2221 = vmatpush1.bf16.msra.mxu0 0
    %2222 = vmatprep.subr.bf16.mxu0 0
    %2223 = vmatpush1.bf16.msra.mxu0 0
    %2224 = vmatprep.subr.bf16.mxu0 0
    %2225 = vmatpush1.bf16.msra.mxu0 0
    %2226 = vmatprep.subr.bf16.mxu0 0
    %2227 = vmatpush1.bf16.msra.mxu0 0
    %2228 = vmatprep.mubr.bf16.mxu0 0
    %2229 = vmatmul.mubr.bf16.gmra.mrb[0].mxu0 %v2195
    %v2230 = vpop.f32.mrb[0].mxu0
    %v2231 = vadd.f32 0.0, %v2230
    %v2232 = vpop.f32.mrb[0].mxu0
    %v2233 = vadd.f32 0.0, %v2232
    %v2234 = vpop.f32.mrb[0].mxu0
    %v2235 = vpop.f32.mrb[0].mxu0
    %2236 = vdwg.mxu0
    %2237 = vmatprep.subr.bf16.mxu0 %v681
    %2238 = vmatpush1.bf16.msra.mxu0 %v680
    %2239 = vmatprep.subr.bf16.mxu0 %v685
    %2240 = vmatpush1.bf16.msra.mxu0 %v684
    %2241 = vmatprep.subr.bf16.mxu0 %v689
    %2242 = vmatpush1.bf16.msra.mxu0 %v688
    %2243 = vmatprep.subr.bf16.mxu0 %v693
    %2244 = vmatpush1.bf16.msra.mxu0 %v692
    %2245 = vmatprep.subr.bf16.mxu0 %v697
    %2246 = vmatpush1.bf16.msra.mxu0 %v696
    %2247 = vmatprep.subr.bf16.mxu0 %v701
    %2248 = vmatpush1.bf16.msra.mxu0 %v700
    %2249 = vmatprep.subr.bf16.mxu0 %v705
    %2250 = vmatpush1.bf16.msra.mxu0 %v704
    %2251 = vmatprep.subr.bf16.mxu0 %v709
    %2252 = vmatpush1.bf16.msra.mxu0 %v708
    %2253 = vmatprep.subr.bf16.mxu0 0
    %2254 = vmatpush1.bf16.msra.mxu0 0
    %2255 = vmatprep.subr.bf16.mxu0 0
    %2256 = vmatpush1.bf16.msra.mxu0 0
    %2257 = vmatprep.subr.bf16.mxu0 0
    %2258 = vmatpush1.bf16.msra.mxu0 0
    %2259 = vmatprep.subr.bf16.mxu0 0
    %2260 = vmatpush1.bf16.msra.mxu0 0
    %2261 = vmatprep.subr.bf16.mxu0 0
    %2262 = vmatpush1.bf16.msra.mxu0 0
    %2263 = vmatprep.subr.bf16.mxu0 0
    %2264 = vmatpush1.bf16.msra.mxu0 0
    %2265 = vmatprep.subr.bf16.mxu0 0
    %2266 = vmatpush1.bf16.msra.mxu0 0
    %2267 = vmatprep.subr.bf16.mxu0 0
    %2268 = vmatpush1.bf16.msra.mxu0 0
    %2269 = vmatprep.mubr.bf16.mxu0 0
    %2270 = vmatmul.mubr.bf16.gmra.mrb[0].mxu0 %v2195
    %v2271 = vpop.f32.mrb[0].mxu0
    %v2272 = vadd.f32 0.0, %v2271
    %v2273 = vpop.f32.mrb[0].mxu0
    %v2274 = vadd.f32 0.0, %v2273
    %v2275 = vpop.f32.mrb[0].mxu0
    %v2276 = vpop.f32.mrb[0].mxu0
    %2277 = vdwg.mxu0
    %v2278 = vadd.f32 %v248, %v2148
    %v2279 = vadd.f32 %v250, %v2150
    %v2280 = vadd.f32 %v321, %v2189
    %v2281 = vadd.f32 %v323, %v2191
    %v2282 = vxor.u32 %v2278, 2147483648
    %v2283 = vmul.f32 %v2282, 1.442695
    %v2284 = vpow.pop %v2283
    %v2285 = vadd.f32 %v2284, 1.0
    %v2286 = vrcp.pop %v2285
    %v2287 = vmul.f32 1.0, %v2286
    %v2288 = vxor.u32 %v2279, 2147483648
    %v2289 = vmul.f32 %v2288, 1.442695
    %v2290 = vpow.pop %v2289
    %v2291 = vadd.f32 %v2290, 1.0
    %v2292 = vrcp.pop %v2291
    %v2293 = vmul.f32 1.0, %v2292
    %v2294 = vtanh.pop %v2280
    %v2295 = vxor.u32 %v2281, 2147483648
    %v2296 = vmul.f32 %v2295, 1.442695
    %v2297 = vpow.pop %v2296
    %v2298 = vadd.f32 %v2297, 1.0
    %v2299 = vrcp.pop %v2298
    %v2300 = vmul.f32 1.0, %v2299
    %v2301 = vmul.f32 %v2293, %v2109
    %v2302 = vmul.f32 %v2287, %v2294
    %v2303 = vadd.f32 %v2301, %v2302
    %v2304 = vtanh.pop %v2303
    %v2305 = vmul.f32 %v2300, %v2304
    %v2306 = vadd.f32 %v410, %v2231
    %v2307 = vadd.f32 %v412, %v2233
    %v2308 = vadd.f32 %v483, %v2272
    %v2309 = vadd.f32 %v485, %v2274
    %v2310 = vxor.u32 %v2306, 2147483648
    %v2311 = vmul.f32 %v2310, 1.442695
    %v2312 = vpow.pop %v2311
    %v2313 = vadd.f32 %v2312, 1.0
    %v2314 = vrcp.pop %v2313
    %v2315 = vmul.f32 1.0, %v2314
    %v2316 = vxor.u32 %v2307, 2147483648
    %v2317 = vmul.f32 %v2316, 1.442695
    %v2318 = vpow.pop %v2317
    %v2319 = vadd.f32 %v2318, 1.0
    %v2320 = vrcp.pop %v2319
    %v2321 = vmul.f32 1.0, %v2320
    %v2322 = vtanh.pop %v2308
    %v2323 = vxor.u32 %v2309, 2147483648
    %v2324 = vmul.f32 %v2323, 1.442695
    %v2325 = vpow.pop %v2324
    %v2326 = vadd.f32 %v2325, 1.0
    %v2327 = vrcp.pop %v2326
    %v2328 = vmul.f32 1.0, %v2327
    %v2329 = vmul.f32 %v2321, %v2111
    %v2330 = vmul.f32 %v2315, %v2322
    %v2331 = vadd.f32 %v2329, %v2330
    %v2332 = vtanh.pop %v2331
    %v2333 = vmul.f32 %v2328, %v2332
    %v2334 = vsel %vm1181, %v2305, %v2108
    %v2335 = vsel %vm1181, %v2303, %v2109
    %v2336 = vsel %vm1174, %v2333, %v2110
    %v2337 = vsel %vm1174, %v2331, %v2111
    %v2338 = vpack.c.bf16 %v2334, %v2334
    %2339 = vmatprep.subr.bf16.mxu0 %v647
    %2340 = vmatpush1.bf16.msra.mxu0 %v646
    %2341 = vmatprep.subr.bf16.mxu0 %v651
    %2342 = vmatpush1.bf16.msra.mxu0 %v650
    %2343 = vmatprep.subr.bf16.mxu0 %v655
    %2344 = vmatpush1.bf16.msra.mxu0 %v654
    %2345 = vmatprep.subr.bf16.mxu0 %v659
    %2346 = vmatpush1.bf16.msra.mxu0 %v658
    %2347 = vmatprep.subr.bf16.mxu0 %v663
    %2348 = vmatpush1.bf16.msra.mxu0 %v662
    %2349 = vmatprep.subr.bf16.mxu0 %v667
    %2350 = vmatpush1.bf16.msra.mxu0 %v666
    %2351 = vmatprep.subr.bf16.mxu0 %v671
    %2352 = vmatpush1.bf16.msra.mxu0 %v670
    %2353 = vmatprep.subr.bf16.mxu0 %v675
    %2354 = vmatpush1.bf16.msra.mxu0 %v674
    %2355 = vmatprep.subr.bf16.mxu0 0
    %2356 = vmatpush1.bf16.msra.mxu0 0
    %2357 = vmatprep.subr.bf16.mxu0 0
    %2358 = vmatpush1.bf16.msra.mxu0 0
    %2359 = vmatprep.subr.bf16.mxu0 0
    %2360 = vmatpush1.bf16.msra.mxu0 0
    %2361 = vmatprep.subr.bf16.mxu0 0
    %2362 = vmatpush1.bf16.msra.mxu0 0
    %2363 = vmatprep.subr.bf16.mxu0 0
    %2364 = vmatpush1.bf16.msra.mxu0 0
    %2365 = vmatprep.subr.bf16.mxu0 0
    %2366 = vmatpush1.bf16.msra.mxu0 0
    %2367 = vmatprep.subr.bf16.mxu0 0
    %2368 = vmatpush1.bf16.msra.mxu0 0
    %2369 = vmatprep.subr.bf16.mxu0 0
    %2370 = vmatpush1.bf16.msra.mxu0 0
    %2371 = vmatprep.mubr.bf16.mxu0 0
    %2372 = vmatmul.mubr.bf16.gmra.mrb[0].mxu0 %v2338
    %v2373 = vpop.f32.mrb[0].mxu0
    %v2374 = vadd.f32 0.0, %v2373
    %v2375 = vpop.f32.mrb[0].mxu0
    %v2376 = vadd.f32 0.0, %v2375
    %v2377 = vpop.f32.mrb[0].mxu0
    %v2378 = vpop.f32.mrb[0].mxu0
    %2379 = vdwg.mxu0
    %2380 = vmatprep.subr.bf16.mxu0 %v649
    %2381 = vmatpush1.bf16.msra.mxu0 %v648
    %2382 = vmatprep.subr.bf16.mxu0 %v653
    %2383 = vmatpush1.bf16.msra.mxu0 %v652
    %2384 = vmatprep.subr.bf16.mxu0 %v657
    %2385 = vmatpush1.bf16.msra.mxu0 %v656
    %2386 = vmatprep.subr.bf16.mxu0 %v661
    %2387 = vmatpush1.bf16.msra.mxu0 %v660
    %2388 = vmatprep.subr.bf16.mxu0 %v665
    %2389 = vmatpush1.bf16.msra.mxu0 %v664
    %2390 = vmatprep.subr.bf16.mxu0 %v669
    %2391 = vmatpush1.bf16.msra.mxu0 %v668
    %2392 = vmatprep.subr.bf16.mxu0 %v673
    %2393 = vmatpush1.bf16.msra.mxu0 %v672
    %2394 = vmatprep.subr.bf16.mxu0 %v677
    %2395 = vmatpush1.bf16.msra.mxu0 %v676
    %2396 = vmatprep.subr.bf16.mxu0 0
    %2397 = vmatpush1.bf16.msra.mxu0 0
    %2398 = vmatprep.subr.bf16.mxu0 0
    %2399 = vmatpush1.bf16.msra.mxu0 0
    %2400 = vmatprep.subr.bf16.mxu0 0
    %2401 = vmatpush1.bf16.msra.mxu0 0
    %2402 = vmatprep.subr.bf16.mxu0 0
    %2403 = vmatpush1.bf16.msra.mxu0 0
    %2404 = vmatprep.subr.bf16.mxu0 0
    %2405 = vmatpush1.bf16.msra.mxu0 0
    %2406 = vmatprep.subr.bf16.mxu0 0
    %2407 = vmatpush1.bf16.msra.mxu0 0
    %2408 = vmatprep.subr.bf16.mxu0 0
    %2409 = vmatpush1.bf16.msra.mxu0 0
    %2410 = vmatprep.subr.bf16.mxu0 0
    %2411 = vmatpush1.bf16.msra.mxu0 0
    %2412 = vmatprep.mubr.bf16.mxu0 0
    %2413 = vmatmul.mubr.bf16.gmra.mrb[0].mxu0 %v2338
    %v2414 = vpop.f32.mrb[0].mxu0
    %v2415 = vadd.f32 0.0, %v2414
    %v2416 = vpop.f32.mrb[0].mxu0
    %v2417 = vadd.f32 0.0, %v2416
    %v2418 = vpop.f32.mrb[0].mxu0
    %v2419 = vpop.f32.mrb[0].mxu0
    %2420 = vdwg.mxu0
    %v2421 = vpack.c.bf16 %v2336, %v2336
    %2422 = vmatprep.subr.bf16.mxu0 %v679
    %2423 = vmatpush1.bf16.msra.mxu0 %v678
    %2424 = vmatprep.subr.bf16.mxu0 %v683
    %2425 = vmatpush1.bf16.msra.mxu0 %v682
    %2426 = vmatprep.subr.bf16.mxu0 %v687
    %2427 = vmatpush1.bf16.msra.mxu0 %v686
    %2428 = vmatprep.subr.bf16.mxu0 %v691
    %2429 = vmatpush1.bf16.msra.mxu0 %v690
    %2430 = vmatprep.subr.bf16.mxu0 %v695
    %2431 = vmatpush1.bf16.msra.mxu0 %v694
    %2432 = vmatprep.subr.bf16.mxu0 %v699
    %2433 = vmatpush1.bf16.msra.mxu0 %v698
    %2434 = vmatprep.subr.bf16.mxu0 %v703
    %2435 = vmatpush1.bf16.msra.mxu0 %v702
    %2436 = vmatprep.subr.bf16.mxu0 %v707
    %2437 = vmatpush1.bf16.msra.mxu0 %v706
    %2438 = vmatprep.subr.bf16.mxu0 0
    %2439 = vmatpush1.bf16.msra.mxu0 0
    %2440 = vmatprep.subr.bf16.mxu0 0
    %2441 = vmatpush1.bf16.msra.mxu0 0
    %2442 = vmatprep.subr.bf16.mxu0 0
    %2443 = vmatpush1.bf16.msra.mxu0 0
    %2444 = vmatprep.subr.bf16.mxu0 0
    %2445 = vmatpush1.bf16.msra.mxu0 0
    %2446 = vmatprep.subr.bf16.mxu0 0
    %2447 = vmatpush1.bf16.msra.mxu0 0
    %2448 = vmatprep.subr.bf16.mxu0 0
    %2449 = vmatpush1.bf16.msra.mxu0 0
    %2450 = vmatprep.subr.bf16.mxu0 0
    %2451 = vmatpush1.bf16.msra.mxu0 0
    %2452 = vmatprep.subr.bf16.mxu0 0
    %2453 = vmatpush1.bf16.msra.mxu0 0
    %2454 = vmatprep.mubr.bf16.mxu0 0
    %2455 = vmatmul.mubr.bf16.gmra.mrb[0].mxu0 %v2421
    %v2456 = vpop.f32.mrb[0].mxu0
    %v2457 = vadd.f32 0.0, %v2456
    %v2458 = vpop.f32.mrb[0].mxu0
    %v2459 = vadd.f32 0.0, %v2458
    %v2460 = vpop.f32.mrb[0].mxu0
    %v2461 = vpop.f32.mrb[0].mxu0
    %2462 = vdwg.mxu0
    %2463 = vmatprep.subr.bf16.mxu0 %v681
    %2464 = vmatpush1.bf16.msra.mxu0 %v680
    %2465 = vmatprep.subr.bf16.mxu0 %v685
    %2466 = vmatpush1.bf16.msra.mxu0 %v684
    %2467 = vmatprep.subr.bf16.mxu0 %v689
    %2468 = vmatpush1.bf16.msra.mxu0 %v688
    %2469 = vmatprep.subr.bf16.mxu0 %v693
    %2470 = vmatpush1.bf16.msra.mxu0 %v692
    %2471 = vmatprep.subr.bf16.mxu0 %v697
    %2472 = vmatpush1.bf16.msra.mxu0 %v696
    %2473 = vmatprep.subr.bf16.mxu0 %v701
    %2474 = vmatpush1.bf16.msra.mxu0 %v700
    %2475 = vmatprep.subr.bf16.mxu0 %v705
    %2476 = vmatpush1.bf16.msra.mxu0 %v704
    %2477 = vmatprep.subr.bf16.mxu0 %v709
    %2478 = vmatpush1.bf16.msra.mxu0 %v708
    %2479 = vmatprep.subr.bf16.mxu0 0
    %2480 = vmatpush1.bf16.msra.mxu0 0
    %2481 = vmatprep.subr.bf16.mxu0 0
    %2482 = vmatpush1.bf16.msra.mxu0 0
    %2483 = vmatprep.subr.bf16.mxu0 0
    %2484 = vmatpush1.bf16.msra.mxu0 0
    %2485 = vmatprep.subr.bf16.mxu0 0
    %2486 = vmatpush1.bf16.msra.mxu0 0
    %2487 = vmatprep.subr.bf16.mxu0 0
    %2488 = vmatpush1.bf16.msra.mxu0 0
    %2489 = vmatprep.subr.bf16.mxu0 0
    %2490 = vmatpush1.bf16.msra.mxu0 0
    %2491 = vmatprep.subr.bf16.mxu0 0
    %2492 = vmatpush1.bf16.msra.mxu0 0
    %2493 = vmatprep.subr.bf16.mxu0 0
    %2494 = vmatpush1.bf16.msra.mxu0 0
    %2495 = vmatprep.mubr.bf16.mxu0 0
    %2496 = vmatmul.mubr.bf16.gmra.mrb[0].mxu0 %v2421
    %v2497 = vpop.f32.mrb[0].mxu0
    %v2498 = vadd.f32 0.0, %v2497
    %v2499 = vpop.f32.mrb[0].mxu0
    %v2500 = vadd.f32 0.0, %v2499
    %v2501 = vpop.f32.mrb[0].mxu0
    %v2502 = vpop.f32.mrb[0].mxu0
    %2503 = vdwg.mxu0
    %v2504 = vadd.f32 %v252, %v2374
    %v2505 = vadd.f32 %v254, %v2376
    %v2506 = vadd.f32 %v325, %v2415
    %v2507 = vadd.f32 %v327, %v2417
    %v2508 = vxor.u32 %v2504, 2147483648
    %v2509 = vmul.f32 %v2508, 1.442695
    %v2510 = vpow.pop %v2509
    %v2511 = vadd.f32 %v2510, 1.0
    %v2512 = vrcp.pop %v2511
    %v2513 = vmul.f32 1.0, %v2512
    %v2514 = vxor.u32 %v2505, 2147483648
    %v2515 = vmul.f32 %v2514, 1.442695
    %v2516 = vpow.pop %v2515
    %v2517 = vadd.f32 %v2516, 1.0
    %v2518 = vrcp.pop %v2517
    %v2519 = vmul.f32 1.0, %v2518
    %v2520 = vtanh.pop %v2506
    %v2521 = vxor.u32 %v2507, 2147483648
    %v2522 = vmul.f32 %v2521, 1.442695
    %v2523 = vpow.pop %v2522
    %v2524 = vadd.f32 %v2523, 1.0
    %v2525 = vrcp.pop %v2524
    %v2526 = vmul.f32 1.0, %v2525
    %v2527 = vmul.f32 %v2519, %v2335
    %v2528 = vmul.f32 %v2513, %v2520
    %v2529 = vadd.f32 %v2527, %v2528
    %v2530 = vtanh.pop %v2529
    %v2531 = vmul.f32 %v2526, %v2530
    %v2532 = vadd.f32 %v406, %v2457
    %v2533 = vadd.f32 %v408, %v2459
    %v2534 = vadd.f32 %v479, %v2498
    %v2535 = vadd.f32 %v481, %v2500
    %v2536 = vxor.u32 %v2532, 2147483648
    %v2537 = vmul.f32 %v2536, 1.442695
    %v2538 = vpow.pop %v2537
    %v2539 = vadd.f32 %v2538, 1.0
    %v2540 = vrcp.pop %v2539
    %v2541 = vmul.f32 1.0, %v2540
    %v2542 = vxor.u32 %v2533, 2147483648
    %v2543 = vmul.f32 %v2542, 1.442695
    %v2544 = vpow.pop %v2543
    %v2545 = vadd.f32 %v2544, 1.0
    %v2546 = vrcp.pop %v2545
    %v2547 = vmul.f32 1.0, %v2546
    %v2548 = vtanh.pop %v2534
    %v2549 = vxor.u32 %v2535, 2147483648
    %v2550 = vmul.f32 %v2549, 1.442695
    %v2551 = vpow.pop %v2550
    %v2552 = vadd.f32 %v2551, 1.0
    %v2553 = vrcp.pop %v2552
    %v2554 = vmul.f32 1.0, %v2553
    %v2555 = vmul.f32 %v2547, %v2337
    %v2556 = vmul.f32 %v2541, %v2548
    %v2557 = vadd.f32 %v2555, %v2556
    %v2558 = vtanh.pop %v2557
    %v2559 = vmul.f32 %v2554, %v2558
    %v2560 = vsel %vm943, %v2531, %v2334
    %v2561 = vsel %vm936, %v2559, %v2336
    %v2562 = vld [vmem:[#allocation11] sm:$0xff]
    %v2563 = vld [vmem:[#allocation11 + $0x8] sm:$0xff]
    %v2564 = vld [vmem:[#allocation11 + $0x10] sm:$0xff]
    %v2565 = vld [vmem:[#allocation11 + $0x18] sm:$0xff]
    %v2566 = vld [vmem:[#allocation11 + $0x20] sm:$0xff]
    %v2567 = vld [vmem:[#allocation11 + $0x28] sm:$0xff]
    %v2568 = vld [vmem:[#allocation11 + $0x30] sm:$0xff]
    %v2569 = vld [vmem:[#allocation11 + $0x38] sm:$0xff]
    %v2570 = vld [vmem:[#allocation11 + $0x40] sm:$0xff]
    %v2571 = vld [vmem:[#allocation11 + $0x48] sm:$0xff]
    %v2572 = vld [vmem:[#allocation11 + $0x50] sm:$0xff]
    %v2573 = vld [vmem:[#allocation11 + $0x58] sm:$0xff]
    %v2574 = vld [vmem:[#allocation11 + $0x60] sm:$0xff]
    %v2575 = vld [vmem:[#allocation11 + $0x68] sm:$0xff]
    %v2576 = vld [vmem:[#allocation11 + $0x70] sm:$0xff]
    %v2577 = vld [vmem:[#allocation11 + $0x78] sm:$0xff]
    %v2578 = vld [vmem:[#allocation11 + $0x80] sm:$0xff]
    %v2579 = vld [vmem:[#allocation11 + $0x88] sm:$0xff]
    %v2580 = vld [vmem:[#allocation11 + $0x90] sm:$0xff]
    %v2581 = vld [vmem:[#allocation11 + $0x98] sm:$0xff]
    %v2582 = vld [vmem:[#allocation11 + $0xa0] sm:$0xff]
    %v2583 = vld [vmem:[#allocation11 + $0xa8] sm:$0xff]
    %v2584 = vld [vmem:[#allocation11 + $0xb0] sm:$0xff]
    %v2585 = vld [vmem:[#allocation11 + $0xb8] sm:$0xff]
    %v2586 = vld [vmem:[#allocation11 + $0xc0] sm:$0xff]
    %v2587 = vld [vmem:[#allocation11 + $0xc8] sm:$0xff]
    %v2588 = vld [vmem:[#allocation11 + $0xd0] sm:$0xff]
    %v2589 = vld [vmem:[#allocation11 + $0xd8] sm:$0xff]
    %v2590 = vld [vmem:[#allocation11 + $0xe0] sm:$0xff]
    %v2591 = vld [vmem:[#allocation11 + $0xe8] sm:$0xff]
    %v2592 = vld [vmem:[#allocation11 + $0xf0] sm:$0xff]
    %v2593 = vld [vmem:[#allocation11 + $0xf8] sm:$0xff]
    %v2594 = vpack.c.bf16 %v2560, %v2560
    %v2595 = vpack.c.bf16 %v2561, %v2561
    %v2596 = vpack.c.bf16 %v2563, %v2562
    %v2597 = vpack.c.bf16 %v2565, %v2564
    %v2598 = vpack.c.bf16 %v2567, %v2566
    %v2599 = vpack.c.bf16 %v2569, %v2568
    %v2600 = vpack.c.bf16 %v2571, %v2570
    %v2601 = vpack.c.bf16 %v2573, %v2572
    %v2602 = vpack.c.bf16 %v2575, %v2574
    %v2603 = vpack.c.bf16 %v2577, %v2576
    %v2604 = vpack.c.bf16 %v2579, %v2578
    %v2605 = vpack.c.bf16 %v2581, %v2580
    %v2606 = vpack.c.bf16 %v2583, %v2582
    %v2607 = vpack.c.bf16 %v2585, %v2584
    %v2608 = vpack.c.bf16 %v2587, %v2586
    %v2609 = vpack.c.bf16 %v2589, %v2588
    %v2610 = vpack.c.bf16 %v2591, %v2590
    %v2611 = vpack.c.bf16 %v2593, %v2592
    %v2612 = vld [vmem:[%s9] sm:$0x1]
    %v2614 = vlaneseq
    %v2615 = vshrl.u32 %v2614, 7
    %v2616 = vsub.s32 0, %v2615
    %v2617 = vrot.slane %v2612, %v2616
    %2619 = vmatprep.subr.bf16.mxu0 0
    %2620 = vmatpush1.bf16.msra.mxu0 %v2596
    %2621 = vmatprep.subr.bf16.mxu0 0
    %2622 = vmatpush1.bf16.msra.mxu0 %v2597
    %2623 = vmatprep.subr.bf16.mxu0 0
    %2624 = vmatpush1.bf16.msra.mxu0 %v2598
    %2625 = vmatprep.subr.bf16.mxu0 0
    %2626 = vmatpush1.bf16.msra.mxu0 %v2599
    %2627 = vmatprep.subr.bf16.mxu0 0
    %2628 = vmatpush1.bf16.msra.mxu0 %v2600
    %2629 = vmatprep.subr.bf16.mxu0 0
    %2630 = vmatpush1.bf16.msra.mxu0 %v2601
    %2631 = vmatprep.subr.bf16.mxu0 0
    %2632 = vmatpush1.bf16.msra.mxu0 %v2602
    %2633 = vmatprep.subr.bf16.mxu0 0
    %2634 = vmatpush1.bf16.msra.mxu0 %v2603
    %2635 = vmatprep.subr.bf16.mxu0 0
    %2636 = vmatpush1.bf16.msra.mxu0 %v2604
    %2637 = vmatprep.subr.bf16.mxu0 0
    %2638 = vmatpush1.bf16.msra.mxu0 %v2605
    %2639 = vmatprep.subr.bf16.mxu0 0
    %2640 = vmatpush1.bf16.msra.mxu0 %v2606
    %2641 = vmatprep.subr.bf16.mxu0 0
    %2642 = vmatpush1.bf16.msra.mxu0 %v2607
    %2643 = vmatprep.subr.bf16.mxu0 0
    %2644 = vmatpush1.bf16.msra.mxu0 %v2608
    %2645 = vmatprep.subr.bf16.mxu0 0
    %2646 = vmatpush1.bf16.msra.mxu0 %v2609
    %2647 = vmatprep.subr.bf16.mxu0 0
    %2648 = vmatpush1.bf16.msra.mxu0 %v2610
    %2649 = vmatprep.subr.bf16.mxu0 0
    %2650 = vmatpush1.bf16.msra.mxu0 %v2611
    %2651 = vmatprep.mubr.bf16.mxu0 %v2595
    %2652 = vmatmul.mubr.bf16.gmra.mrb[0].mxu0 %v2594
    %v2653 = vpop.f32.mrb[0].mxu0
    %v2654 = vadd.f32 %v2617, %v2653
    %v2655 = vpop.f32.mrb[0].mxu0
    %v2656 = vpop.f32.mrb[0].mxu0
    %v2657 = vpop.f32.mrb[0].mxu0
    %2658 = vdwg.mxu0
    %2659 = vst [vmem:[#allocation13] sm:$0xff] %v2654
    // Predicated region
    $region66: #{tpu_custom_call.1} parent=1 // pred_check
      _
    $region67: #{tpu_custom_call.1} parent=1 // pred_check_branch
      %2661 = sbr.rel (0) target = $region69
    $region68: #{tpu_custom_call.1} parent=1 // pred_region
      %s2663 = ssub.s32 128, 128
      %2664 = vsyncadd [#allocation4], %s2663
      %s2666 = sshll.u32 [#allocation13], 4
      %s2667 = int_to_ptr.vmem [resolvable:$true] %s2666
      %2669 = dma.vmem_to_hbm [thread:$0]  %s2667, 128, %s10, [#allocation4]
    $region69: #{tpu_custom_call.1} parent=1 // pred_fallthru
      _
    // Predicated region
    $region70: #{tpu_custom_call.1} parent=1 // pred_check
      _
    $region71: #{tpu_custom_call.1} parent=1 // pred_check_branch
      %2671 = sbr.rel (0) target = $region73
    $region72: #{tpu_custom_call.1} parent=1 // pred_region
      %2672 = dma.done [#allocation4], 128
    $region73: #{tpu_custom_call.1} parent=1 // pred_fallthru
      _
    %2673 = vsyncpa [#allocation3], 1
    %2674 = vsyncpa [#allocation6], 1
    %2675 = vsyncpa [#allocation9], 1
    %2676 = vsyncpa [#allocation12], 1
    %2677 = vsyncpa [#allocation4], 1

</llo_original>
